<compile_context>
chip_gen: v7x
topology: tpu7x:2x2x1
jax: 0.10.0
libtpu: 0.0.40
codegen_flags: <defaults>
</compile_context>

<pallas_src>
import functools

import jax
import jax.numpy as jnp
from jax import lax
from jax.experimental import pallas as pl
from jax.experimental.pallas import tpu as pltpu

LANE = 128
_VMEM_LIMIT = 48 * 1024 * 1024   # below the 64 MiB physical VMEM of v7x


def _round_up(x, m):
    return (x + m - 1) // m * m


# ---------------------------------------------------------------------------
# Kernel 1: dense matmul + bias (+ optional ReLU)
#   K is small for every call in this block -> single K step, no accumulator
#   scratch.  A K-loop variant is kept only as a fallback for large K.
# ---------------------------------------------------------------------------
def _matmul_bias_kernel(a_ref, w_ref, b_ref, o_ref, *, relu):
    y = jnp.dot(a_ref[...], w_ref[...],
                preferred_element_type=jnp.float32) + b_ref[...]
    if relu:
        y = jnp.maximum(y, 0.0)
    o_ref[...] = y.astype(o_ref.dtype)


def _matmul_bias_kloop_kernel(a_ref, w_ref, b_ref, o_ref, acc_ref, *, relu):
    @pl.when(pl.program_id(2) == 0)
    def _init():
        acc_ref[...] = jnp.zeros_like(acc_ref)

    acc_ref[...] += jnp.dot(a_ref[...], w_ref[...],
                            preferred_element_type=jnp.float32)

    @pl.when(pl.program_id(2) == pl.num_programs(2) - 1)
    def _fin():
        y = acc_ref[...] + b_ref[...]
        if relu:
            y = jnp.maximum(y, 0.0)
        o_ref[...] = y.astype(o_ref.dtype)


def matmul_bias(a, w, bias, *, relu=False, out_dtype=jnp.bfloat16,
                tm=512, tn_cap=512, max_single_k=2048):
    """(M, K) @ (K, N) + bias[N]; padded to lane multiples and sliced back."""
    M, K = a.shape
    Kw, N = w.shape
    assert K == Kw
    Kp = _round_up(K, LANE)
    Np = _round_up(N, LANE)
    # pick tn so that it divides the padded N exactly (no wasted MXU columns)
    if Np <= tn_cap:
        tn = Np
    else:
        tn = LANE
        for t in range(tn_cap // LANE, 0, -1):
            if Np % (t * LANE) == 0:
                tn = t * LANE
                break
    tm = min(tm, _round_up(M, 8))
    Mp = _round_up(M, tm)

    a_p = jnp.pad(a.astype(jnp.bfloat16), ((0, Mp - M), (0, Kp - K)))
    w_p = jnp.pad(w.astype(jnp.bfloat16), ((0, Kp - K), (0, Np - N)))
    b_p = jnp.pad(bias.astype(jnp.float32), (0, Np - N)).reshape(1, Np)

    if Kp <= max_single_k:
        out = pl.pallas_call(
            functools.partial(_matmul_bias_kernel, relu=relu),
            grid=(Mp // tm, Np // tn),
            in_specs=[pl.BlockSpec((tm, Kp), lambda i, j: (i, 0)),
                      pl.BlockSpec((Kp, tn), lambda i, j: (0, j)),
                      pl.BlockSpec((1, tn), lambda i, j: (0, j))],
            out_specs=pl.BlockSpec((tm, tn), lambda i, j: (i, j)),
            out_shape=jax.ShapeDtypeStruct((Mp, Np), out_dtype),
            compiler_params=pltpu.CompilerParams(
                dimension_semantics=("parallel", "parallel"),
                vmem_limit_bytes=_VMEM_LIMIT),
        )(a_p, w_p, b_p)
    else:
        tk = LANE
        for t in (4, 2, 1):
            if Kp % (t * LANE) == 0:
                tk = t * LANE
                break
        out = pl.pallas_call(
            functools.partial(_matmul_bias_kloop_kernel, relu=relu),
            grid=(Mp // tm, Np // tn, Kp // tk),
            in_specs=[pl.BlockSpec((tm, tk), lambda i, j, k: (i, k)),
                      pl.BlockSpec((tk, tn), lambda i, j, k: (k, j)),
                      pl.BlockSpec((1, tn), lambda i, j, k: (0, j))],
            out_specs=pl.BlockSpec((tm, tn), lambda i, j, k: (i, j)),
            out_shape=jax.ShapeDtypeStruct((Mp, Np), out_dtype),
            scratch_shapes=[pltpu.VMEM((tm, tn), jnp.float32)],
            compiler_params=pltpu.CompilerParams(
                dimension_semantics=("parallel", "parallel", "arbitrary"),
                vmem_limit_bytes=_VMEM_LIMIT),
        )(a_p, w_p, b_p)
    if (Mp, Np) != (M, N):
        out = out[:M, :N]
    return out


# ---------------------------------------------------------------------------
# Kernel 2: 3x3 stride-1 pad-1 conv as 9 shifted matmuls (no HBM im2col).
#   One grid step = one batch image.  The zero-padded image is stored as a
#   (rows, C) slab; tap (dh, dw) is the slice starting at row dh*(W+2)+dw.
# ---------------------------------------------------------------------------
def _conv_taps_accumulate(x_ref, w_ref, *, n_acc, row_stride):
    acc = None
    for dh in range(3):
        for dw in range(3):
            off = dh * row_stride + dw
            xt = x_ref[0, off:off + n_acc, :]                 # (n_acc, Cin_p) bf16
            part = jnp.dot(xt, w_ref[dh * 3 + dw],
                           preferred_element_type=jnp.float32)
            acc = part if acc is None else acc + part
    return acc                                                # (n_acc, Cout_p) f32


def _compact_rows(y, *, H, W, row_stride):
    # keep only the W valid columns out of each padded row group
    return jnp.concatenate(
        [y[h * row_stride:h * row_stride + W, :] for h in range(H)], axis=0)


def _conv3x3_bias_relu_kernel(x_ref, w_ref, b_ref, o_ref, *, H, W, n_acc, relu):
    row_stride = W + 2
    acc = _conv_taps_accumulate(x_ref, w_ref, n_acc=n_acc, row_stride=row_stride)
    y = _compact_rows(acc, H=H, W=W, row_stride=row_stride) + b_ref[...]
    if relu:
        y = jnp.maximum(y, 0.0)
    o_ref[0] = y.astype(o_ref.dtype)


def _conv3x3_qkv_res_kernel(x_ref, w_ref, b_ref, sh_ref, wqkv_ref, bqkv_ref,
                            q_ref, k_ref, v_ref, res_ref, *, H, W, n_acc, cqp):
    row_stride = W + 2
    acc = _conv_taps_accumulate(x_ref, w_ref, n_acc=n_acc, row_stride=row_stride)
    y2 = _compact_rows(acc, H=H, W=W, row_stride=row_stride) + b_ref[...]  # (N, Cp) f32

    # single combined residual stream: y2 + shortcut
    res_ref[0] = (y2 + sh_ref[0].astype(jnp.float32)).astype(res_ref.dtype)

    # fused lane-dense Q/K/V projection (gamma already folded into V weights/bias)
    qkv = jnp.dot(y2.astype(jnp.bfloat16), wqkv_ref[...],
                  preferred_element_type=jnp.float32) + bqkv_ref[...]
    q_ref[0] = qkv[:, :cqp].astype(q_ref.dtype)
    k_ref[0] = qkv[:, cqp:2 * cqp].astype(k_ref.dtype)
    v_ref[0] = qkv[:, 2 * cqp:].astype(v_ref.dtype)


def _pad_rows_for_taps(x_nhwc, cin_p):
    """Zero-pad spatially by 1, flatten rows, pad rows/lanes for the tap kernel."""
    B, H, W, C = x_nhwc.shape
    row_stride = W + 2
    n_acc = _round_up(H * row_stride, 8)
    r_in = _round_up(n_acc + 2 * row_stride + 2, 8)
    xp = jnp.pad(x_nhwc.astype(jnp.bfloat16),
                 ((0, 0), (1, 1), (1, 1), (0, cin_p - C)))
    xp = xp.reshape(B, (H + 2) * (W + 2), cin_p)
    xp = jnp.pad(xp, ((0, 0), (0, r_in - (H + 2) * (W + 2)), (0, 0)))
    return xp, n_acc, r_in


def conv3x3_bias_relu(x_nhwc, w9, bias, *, relu=True, out_dtype=jnp.bfloat16):
    """3x3 / stride 1 / pad 1 conv; returns (B, H*W, Cout_p)."""
    # TODO(synk): for very large H*W the per-image VMEM block should be row-tiled.
    B, H, W, _ = x_nhwc.shape
    _, cin_p, cout_p = w9.shape
    xp, n_acc, r_in = _pad_rows_for_taps(x_nhwc, cin_p)
    N = H * W
    return pl.pallas_call(
        functools.partial(_conv3x3_bias_relu_kernel,
                          H=H, W=W, n_acc=n_acc, relu=relu),
        grid=(B,),
        in_specs=[pl.BlockSpec((1, r_in, cin_p), lambda b: (b, 0, 0)),
                  pl.BlockSpec((9, cin_p, cout_p), lambda b: (0, 0, 0)),
                  pl.BlockSpec((1, cout_p), lambda b: (0, 0))],
        out_specs=pl.BlockSpec((1, N, cout_p), lambda b: (b, 0, 0)),
        out_shape=jax.ShapeDtypeStruct((B, N, cout_p), out_dtype),
        compiler_params=pltpu.CompilerParams(
            dimension_semantics=("parallel",), vmem_limit_bytes=_VMEM_LIMIT),
    )(xp, w9.astype(jnp.bfloat16),
      bias.astype(jnp.float32).reshape(1, cout_p))


def conv3x3_qkv_res(y1_nhwc, w9, bias, short, w_qkv, b_qkv):
    """conv2+bn2 fused with residual combine and Q/K/V projection."""
    B, H, W, _ = y1_nhwc.shape
    _, cin_p, cout_p = w9.shape
    N = H * W
    nqkv = w_qkv.shape[1]
    cqp = (nqkv - cout_p) // 2
    xp, n_acc, r_in = _pad_rows_for_taps(y1_nhwc, cin_p)
    return pl.pallas_call(
        functools.partial(_conv3x3_qkv_res_kernel,
                          H=H, W=W, n_acc=n_acc, cqp=cqp),
        grid=(B,),
        in_specs=[pl.BlockSpec((1, r_in, cin_p), lambda b: (b, 0, 0)),
                  pl.BlockSpec((9, cin_p, cout_p), lambda b: (0, 0, 0)),
                  pl.BlockSpec((1, cout_p), lambda b: (0, 0)),
                  pl.BlockSpec((1, N, cout_p), lambda b: (b, 0, 0)),
                  pl.BlockSpec((cin_p, nqkv), lambda b: (0, 0)),
                  pl.BlockSpec((1, nqkv), lambda b: (0, 0))],
        out_specs=[pl.BlockSpec((1, N, cqp), lambda b: (b, 0, 0)),
                   pl.BlockSpec((1, N, cqp), lambda b: (b, 0, 0)),
                   pl.BlockSpec((1, N, cout_p), lambda b: (b, 0, 0)),
                   pl.BlockSpec((1, N, cout_p), lambda b: (b, 0, 0))],
        out_shape=(jax.ShapeDtypeStruct((B, N, cqp), jnp.bfloat16),
                   jax.ShapeDtypeStruct((B, N, cqp), jnp.bfloat16),
                   jax.ShapeDtypeStruct((B, N, cout_p), jnp.bfloat16),
                   jax.ShapeDtypeStruct((B, N, cout_p), jnp.bfloat16)),
        compiler_params=pltpu.CompilerParams(
            dimension_semantics=("parallel",), vmem_limit_bytes=_VMEM_LIMIT),
    )(xp, w9.astype(jnp.bfloat16),
      bias.astype(jnp.float32).reshape(1, cout_p),
      short.astype(jnp.bfloat16),
      w_qkv.astype(jnp.bfloat16),
      b_qkv.astype(jnp.float32).reshape(1, nqkv))


# ---------------------------------------------------------------------------
# Kernel 3: flash-style self-attention + residual add + final ReLU
#   grid = (B * q-blocks, kv-blocks); online softmax in VMEM scratch.
# ---------------------------------------------------------------------------
def _flash_attn_res_kernel(q_ref, k_ref, v_ref, r_ref, o_ref,
                           m_sc, l_sc, acc_sc, *, n_valid, tk, need_mask):
    ki = pl.program_id(1)

    @pl.when(ki == 0)
    def _init():
        m_sc[...] = jnp.full_like(m_sc, -jnp.inf)
        l_sc[...] = jnp.zeros_like(l_sc)
        acc_sc[...] = jnp.zeros_like(acc_sc)

    q = q_ref[0]                          # (tq, Cqp) bf16
    k = k_ref[0]                          # (tk, Cqp) bf16
    s = lax.dot_general(q, k, (((1,), (1,)), ((), ())),
                        preferred_element_type=jnp.float32)        # (tq, tk)
    if need_mask:
        # padded key columns exist only when N % tile != 0 (disabled here)
        col = ki * tk + lax.broadcasted_iota(jnp.int32, s.shape, 1)
        s = jnp.where(col < n_valid, s, -jnp.inf)

    m_prev = m_sc[...]
    m_new = jnp.maximum(m_prev, jnp.max(s, axis=-1, keepdims=True))
    alpha = jnp.exp(m_prev - m_new)
    p = jnp.exp(s - m_new)
    l_sc[...] = alpha * l_sc[...] + jnp.sum(p, axis=-1, keepdims=True)
    acc_sc[...] = alpha * acc_sc[...] + jnp.dot(
        p.astype(v_ref.dtype), v_ref[0], preferred_element_type=jnp.float32)
    m_sc[...] = m_new

    @pl.when(ki == pl.num_programs(1) - 1)
    def _finalize():
        att = acc_sc[...] / l_sc[...]          # exact normalization
        y = att + r_ref[0].astype(jnp.float32)
        o_ref[0] = jnp.maximum(y, 0.0).astype(o_ref.dtype)


def flash_attention_residual(q, k, v, res, *, tile_n=256):
    B, N, cqp = q.shape
    cp = v.shape[-1]
    T = min(tile_n, _round_up(N, 16))
    Np = _round_up(N, T)
    if Np != N:
        pad = ((0, 0), (0, Np - N), (0, 0))
        q, k, v, res = [jnp.pad(t, pad) for t in (q, k, v, res)]
    nq = Np // T
    nkv = Np // T

    kern = functools.partial(_flash_attn_res_kernel,
                             n_valid=N, tk=T, need_mask=(Np != N))
    q_spec = pl.BlockSpec((1, T, cqp), lambda i, ki: (i // nq, i % nq, 0))
    k_spec = pl.BlockSpec((1, T, cqp), lambda i, ki: (i // nq, ki, 0))
    v_spec = pl.BlockSpec((1, T, cp), lambda i, ki: (i // nq, ki, 0))
    r_spec = pl.BlockSpec((1, T, cp), lambda i, ki: (i // nq, i % nq, 0))
    o_spec = pl.BlockSpec((1, T, cp), lambda i, ki: (i // nq, i % nq, 0))

    out = pl.pallas_call(
        kern,
        grid=(B * nq, nkv),     # flattened (batch, q-block) axis -> both v7x cores
        in_specs=[q_spec, k_spec, v_spec, r_spec],
        out_specs=o_spec,
        out_shape=jax.ShapeDtypeStruct((B, Np, cp), jnp.bfloat16),
        scratch_shapes=[pltpu.VMEM((T, 1), jnp.float32),
                        pltpu.VMEM((T, 1), jnp.float32),
                        pltpu.VMEM((T, cp), jnp.float32)],
        compiler_params=pltpu.CompilerParams(
            dimension_semantics=("parallel", "arbitrary"),
            vmem_limit_bytes=_VMEM_LIMIT),
    )(q, k, v, res)
    return out[:, :N, :] if Np != N else out


# ---------------------------------------------------------------------------
# Plain-JAX glue: BN folding, im2col fallback (stride != 1), params, forward.
# ---------------------------------------------------------------------------
def bn_fold(w, b, mean, var, eps=1e-5):
    # TODO(synk): inference-mode BatchNorm (running stats); PyTorch train-mode
    # batch statistics are not reproduced here.
    scale = w / jnp.sqrt(var + eps)
    return scale, b - mean * scale


def im2col_3x3(x_nhwc, stride):
    B, H, W, C = x_nhwc.shape
    xp = jnp.pad(x_nhwc, ((0, 0), (1, 1), (1, 1), (0, 0)))
    Ho = (H - 1) // stride + 1
    Wo = (W - 1) // stride + 1
    cols = []
    for dh in range(3):
        for dw in range(3):
            cols.append(xp[:, dh:dh + stride * (Ho - 1) + 1:stride,
                              dw:dw + stride * (Wo - 1) + 1:stride, :])
    return jnp.concatenate(cols, axis=-1).reshape(B * Ho * Wo, 9 * C), Ho, Wo


def init_params(key, in_channels, out_channels):
    c, cq = out_channels, max(out_channels // 8, 1)
    ks = iter(jax.random.split(key, 16))

    def bn_params(k, n):
        k1, k2, k3, k4 = jax.random.split(k, 4)
        return (jax.random.uniform(k1, (n,), minval=0.5, maxval=1.5),   # weight
                jax.random.normal(k2, (n,)) * 0.1,                      # bias
                jax.random.normal(k3, (n,)) * 0.1,                      # running_mean
                jax.random.uniform(k4, (n,), minval=0.5, maxval=1.5))   # running_var

    return {
        'conv1_w': jax.random.normal(next(ks), (3, 3, in_channels, c)) * 0.1,
        'conv2_w': jax.random.normal(next(ks), (3, 3, c, c)) * 0.1,
        'bn1': bn_params(next(ks), c),
        'bn2': bn_params(next(ks), c),
        'conv_sc_w': jax.random.normal(next(ks), (in_channels, c)) * 0.1,
        'bn_sc': bn_params(next(ks), c),
        'wq': jax.random.normal(next(ks), (c, cq)) * 0.1,
        'bq': jax.random.normal(next(ks), (cq,)) * 0.1,
        'wk': jax.random.normal(next(ks), (c, cq)) * 0.1,
        'bk': jax.random.normal(next(ks), (cq,)) * 0.1,
        'wv': jax.random.normal(next(ks), (c, c)) * 0.1,
        'bv': jax.random.normal(next(ks), (c,)) * 0.1,
        # PyTorch inits gamma to 0; nonzero here so the attention path is exercised.
        'gamma': jnp.array([0.25], dtype=jnp.float32),
    }


def self_block_forward(x_nchw, params, stride=1):
    B, Cin, H, W = x_nchw.shape
    Cout = params['conv1_w'].shape[-1]
    Cq = params['wq'].shape[-1]
    Cp = _round_up(Cout, LANE)
    Cqp = _round_up(Cq, LANE)
    Cinp = _round_up(Cin, LANE)

    x = jnp.transpose(x_nchw, (0, 2, 3, 1))                      # NHWC f32

    s1, b1 = bn_fold(*params['bn1'])
    s2, b2 = bn_fold(*params['bn2'])
    b1p = jnp.pad(b1, (0, Cp - Cout))
    b2p = jnp.pad(b2, (0, Cp - Cout))

    # ---- conv1 (3x3, stride, pad 1) + bn1 + relu ---------------------------
    if stride == 1:
        w1 = jnp.pad(params['conv1_w'] * s1,
                     ((0, 0), (0, 0), (0, Cinp - Cin), (0, Cp - Cout))
                     ).reshape(9, Cinp, Cp)
        y1 = conv3x3_bias_relu(x, w1, b1p, relu=True)            # (B, H*W, Cp)
        H1, W1 = H, W
    else:
        # TODO(synk): strided conv keeps the HBM im2col + matmul fallback.
        w1 = jnp.pad(params['conv1_w'] * s1,
                     ((0, 0), (0, 0), (0, 0), (0, Cp - Cout))).reshape(9 * Cin, Cp)
        p1, H1, W1 = im2col_3x3(x.astype(jnp.bfloat16), stride)
        y1 = matmul_bias(p1, w1, b1p, relu=True).reshape(B, H1 * W1, Cp)

    N = H1 * W1
    M = B * N

    # ---- shortcut ----------------------------------------------------------
    if stride != 1 or Cin != Cout:
        ssc, bsc = bn_fold(*params['bn_sc'])
        wsc = jnp.pad(params['conv_sc_w'] * ssc, ((0, 0), (0, Cp - Cout)))
        bscp = jnp.pad(bsc, (0, Cp - Cout))
        xs = x[:, ::stride, ::stride, :].reshape(M, Cin)
        short = matmul_bias(xs, wsc, bscp, relu=False).reshape(B, N, Cp)
    else:
        short = jnp.pad(x.astype(jnp.bfloat16).reshape(B, N, Cin),
                        ((0, 0), (0, 0), (0, Cp - Cin)))

    # ---- conv2 + bn2, fused with residual combine and Q/K/V projection -----
    w2 = jnp.pad(params['conv2_w'] * s2,
                 ((0, 0), (0, 0), (0, Cp - Cout), (0, Cp - Cout))).reshape(9, Cp, Cp)
    gamma = params['gamma']
    wq = jnp.pad(params['wq'], ((0, Cp - Cout), (0, Cqp - Cq)))
    wk = jnp.pad(params['wk'], ((0, Cp - Cout), (0, Cqp - Cq)))
    wv = jnp.pad(params['wv'] * gamma, ((0, Cp - Cout), (0, Cp - Cout)))
    bq = jnp.pad(params['bq'], (0, Cqp - Cq))
    bk = jnp.pad(params['bk'], (0, Cqp - Cq))
    bv = jnp.pad(params['bv'] * gamma, (0, Cp - Cout))
    w_qkv = jnp.concatenate([wq, wk, wv], axis=1)                # (Cp, 2*Cqp + Cp)
    b_qkv = jnp.concatenate([bq, bk, bv], axis=0)

    y1_img = y1.reshape(B, H1, W1, Cp)
    q, k, v, res = conv3x3_qkv_res(y1_img, w2, b2p, short, w_qkv, b_qkv)

    # ---- flash attention + residual add + final ReLU -----------------------
    out = flash_attention_residual(q, k, v, res)                 # (B, N, Cp) bf16
    out = out[:, :, :Cout].reshape(B, H1, W1, Cout)
    return jnp.transpose(out, (0, 3, 1, 2)).astype(jnp.float32)  # -> NCHW


if __name__ == "__main__":
    key = jax.random.PRNGKey(0)
    k_x, k_p = jax.random.split(key)

    B, Cin, H, W = 2, 4, 16, 16
    Cout = 16                     # out_channels (>= 8 so attention C//8 >= 1)
    x = jax.random.normal(k_x, (B, Cin, H, W), dtype=jnp.float32)
    params = init_params(k_p, Cin, Cout)

    out = self_block_forward(x, params, stride=1)
    out = jax.block_until_ready(out)
    assert out.shape == (B, Cout, H, W), out.shape
    assert bool(jnp.all(jnp.isfinite(out)))
    assert bool(jnp.all(out >= 0.0))          # final ReLU
    print("KERNEL_OK")
</pallas_src>

<mosaic_0001>
module attributes {stable_mosaic.version = 11 : i64} {
  func.func @_conv3x3_bias_relu_kernel(%arg0: i32, %arg1: memref<1x328x128xbf16, #tpu.memory_space<vmem>>, %arg2: memref<9x128x128xbf16, #tpu.memory_space<vmem>>, %arg3: memref<1x128xf32, #tpu.memory_space<vmem>>, %arg4: memref<1x256x128xbf16, #tpu.memory_space<vmem>>) attributes {dimension_semantics = [#tpu.dimension_semantics<parallel>], iteration_bounds = array<i64: 2>, scalar_prefetch = 0 : i64, scratch_operands = 0 : i64, tpu.core_type = #tpu.core_type<tc>, window_params = [{transform_indices = @transform_0, window_bounds = array<i64: 1, 328, 128>}, {pipeline_mode = #tpu.pipeline_mode<synchronous>, transform_indices = @transform_1, window_bounds = array<i64: 9, 128, 128>}, {pipeline_mode = #tpu.pipeline_mode<synchronous>, transform_indices = @transform_2, window_bounds = array<i64: 1, 128>}, {transform_indices = @transform_3, window_bounds = array<i64: 1, 256, 128>}]} {
    %c0 = arith.constant 0 : index
    %c0_0 = arith.constant 0 : index
    %c0_1 = arith.constant 0 : index
    %0 = vector.load %arg1[%c0, %c0_0, %c0_1] : memref<1x328x128xbf16, #tpu.memory_space<vmem>>, vector<1x288x128xbf16>
    %1 = vector.shape_cast %0 : vector<1x288x128xbf16> to vector<288x128xbf16>
    %c0_2 = arith.constant 0 : index
    %c0_3 = arith.constant 0 : index
    %c0_4 = arith.constant 0 : index
    %2 = vector.load %arg2[%c0_2, %c0_3, %c0_4] : memref<9x128x128xbf16, #tpu.memory_space<vmem>>, vector<1x128x128xbf16>
    %3 = vector.shape_cast %2 : vector<1x128x128xbf16> to vector<128x128xbf16>
    %cst = arith.constant dense<0.000000e+00> : vector<288x128xf32>
    %4 = tpu.matmul %1, %3, %cst {dimension_numbers = #tpu.dot_dimension_numbers<[1], [0], [0], [1], [0, 0, 1, 1], [], []>} : vector<288x128xbf16>, vector<128x128xbf16>, vector<288x128xf32> -> vector<288x128xf32>
    %c0_5 = arith.constant 0 : index
    %c1 = arith.constant 1 : index
    %c0_6 = arith.constant 0 : index
    %5 = vector.load %arg1[%c0_5, %c1, %c0_6] : memref<1x328x128xbf16, #tpu.memory_space<vmem>>, vector<1x288x128xbf16>
    %6 = vector.shape_cast %5 : vector<1x288x128xbf16> to vector<288x128xbf16>
    %c1_7 = arith.constant 1 : index
    %c0_8 = arith.constant 0 : index
    %c0_9 = arith.constant 0 : index
    %7 = vector.load %arg2[%c1_7, %c0_8, %c0_9] : memref<9x128x128xbf16, #tpu.memory_space<vmem>>, vector<1x128x128xbf16>
    %8 = vector.shape_cast %7 : vector<1x128x128xbf16> to vector<128x128xbf16>
    %cst_10 = arith.constant dense<0.000000e+00> : vector<288x128xf32>
    %9 = tpu.matmul %6, %8, %cst_10 {dimension_numbers = #tpu.dot_dimension_numbers<[1], [0], [0], [1], [0, 0, 1, 1], [], []>} : vector<288x128xbf16>, vector<128x128xbf16>, vector<288x128xf32> -> vector<288x128xf32>
    %10 = arith.addf %4, %9 : vector<288x128xf32>
    %c0_11 = arith.constant 0 : index
    %c2 = arith.constant 2 : index
    %c0_12 = arith.constant 0 : index
    %11 = vector.load %arg1[%c0_11, %c2, %c0_12] : memref<1x328x128xbf16, #tpu.memory_space<vmem>>, vector<1x288x128xbf16>
    %12 = vector.shape_cast %11 : vector<1x288x128xbf16> to vector<288x128xbf16>
    %c2_13 = arith.constant 2 : index
    %c0_14 = arith.constant 0 : index
    %c0_15 = arith.constant 0 : index
    %13 = vector.load %arg2[%c2_13, %c0_14, %c0_15] : memref<9x128x128xbf16, #tpu.memory_space<vmem>>, vector<1x128x128xbf16>
    %14 = vector.shape_cast %13 : vector<1x128x128xbf16> to vector<128x128xbf16>
    %cst_16 = arith.constant dense<0.000000e+00> : vector<288x128xf32>
    %15 = tpu.matmul %12, %14, %cst_16 {dimension_numbers = #tpu.dot_dimension_numbers<[1], [0], [0], [1], [0, 0, 1, 1], [], []>} : vector<288x128xbf16>, vector<128x128xbf16>, vector<288x128xf32> -> vector<288x128xf32>
    %16 = arith.addf %10, %15 : vector<288x128xf32>
    %c0_17 = arith.constant 0 : index
    %c18 = arith.constant 18 : index
    %c0_18 = arith.constant 0 : index
    %17 = vector.load %arg1[%c0_17, %c18, %c0_18] : memref<1x328x128xbf16, #tpu.memory_space<vmem>>, vector<1x288x128xbf16>
    %18 = vector.shape_cast %17 : vector<1x288x128xbf16> to vector<288x128xbf16>
    %c3 = arith.constant 3 : index
    %c0_19 = arith.constant 0 : index
    %c0_20 = arith.constant 0 : index
    %19 = vector.load %arg2[%c3, %c0_19, %c0_20] : memref<9x128x128xbf16, #tpu.memory_space<vmem>>, vector<1x128x128xbf16>
    %20 = vector.shape_cast %19 : vector<1x128x128xbf16> to vector<128x128xbf16>
    %cst_21 = arith.constant dense<0.000000e+00> : vector<288x128xf32>
    %21 = tpu.matmul %18, %20, %cst_21 {dimension_numbers = #tpu.dot_dimension_numbers<[1], [0], [0], [1], [0, 0, 1, 1], [], []>} : vector<288x128xbf16>, vector<128x128xbf16>, vector<288x128xf32> -> vector<288x128xf32>
    %22 = arith.addf %16, %21 : vector<288x128xf32>
    %c0_22 = arith.constant 0 : index
    %c19 = arith.constant 19 : index
    %c0_23 = arith.constant 0 : index
    %23 = vector.load %arg1[%c0_22, %c19, %c0_23] : memref<1x328x128xbf16, #tpu.memory_space<vmem>>, vector<1x288x128xbf16>
    %24 = vector.shape_cast %23 : vector<1x288x128xbf16> to vector<288x128xbf16>
    %c4 = arith.constant 4 : index
    %c0_24 = arith.constant 0 : index
    %c0_25 = arith.constant 0 : index
    %25 = vector.load %arg2[%c4, %c0_24, %c0_25] : memref<9x128x128xbf16, #tpu.memory_space<vmem>>, vector<1x128x128xbf16>
    %26 = vector.shape_cast %25 : vector<1x128x128xbf16> to vector<128x128xbf16>
    %cst_26 = arith.constant dense<0.000000e+00> : vector<288x128xf32>
    %27 = tpu.matmul %24, %26, %cst_26 {dimension_numbers = #tpu.dot_dimension_numbers<[1], [0], [0], [1], [0, 0, 1, 1], [], []>} : vector<288x128xbf16>, vector<128x128xbf16>, vector<288x128xf32> -> vector<288x128xf32>
    %28 = arith.addf %22, %27 : vector<288x128xf32>
    %c0_27 = arith.constant 0 : index
    %c20 = arith.constant 20 : index
    %c0_28 = arith.constant 0 : index
    %29 = vector.load %arg1[%c0_27, %c20, %c0_28] : memref<1x328x128xbf16, #tpu.memory_space<vmem>>, vector<1x288x128xbf16>
    %30 = vector.shape_cast %29 : vector<1x288x128xbf16> to vector<288x128xbf16>
    %c5 = arith.constant 5 : index
    %c0_29 = arith.constant 0 : index
    %c0_30 = arith.constant 0 : index
    %31 = vector.load %arg2[%c5, %c0_29, %c0_30] : memref<9x128x128xbf16, #tpu.memory_space<vmem>>, vector<1x128x128xbf16>
    %32 = vector.shape_cast %31 : vector<1x128x128xbf16> to vector<128x128xbf16>
    %cst_31 = arith.constant dense<0.000000e+00> : vector<288x128xf32>
    %33 = tpu.matmul %30, %32, %cst_31 {dimension_numbers = #tpu.dot_dimension_numbers<[1], [0], [0], [1], [0, 0, 1, 1], [], []>} : vector<288x128xbf16>, vector<128x128xbf16>, vector<288x128xf32> -> vector<288x128xf32>
    %34 = arith.addf %28, %33 : vector<288x128xf32>
    %c0_32 = arith.constant 0 : index
    %c36 = arith.constant 36 : index
    %c0_33 = arith.constant 0 : index
    %35 = vector.load %arg1[%c0_32, %c36, %c0_33] : memref<1x328x128xbf16, #tpu.memory_space<vmem>>, vector<1x288x128xbf16>
    %36 = vector.shape_cast %35 : vector<1x288x128xbf16> to vector<288x128xbf16>
    %c6 = arith.constant 6 : index
    %c0_34 = arith.constant 0 : index
    %c0_35 = arith.constant 0 : index
    %37 = vector.load %arg2[%c6, %c0_34, %c0_35] : memref<9x128x128xbf16, #tpu.memory_space<vmem>>, vector<1x128x128xbf16>
    %38 = vector.shape_cast %37 : vector<1x128x128xbf16> to vector<128x128xbf16>
    %cst_36 = arith.constant dense<0.000000e+00> : vector<288x128xf32>
    %39 = tpu.matmul %36, %38, %cst_36 {dimension_numbers = #tpu.dot_dimension_numbers<[1], [0], [0], [1], [0, 0, 1, 1], [], []>} : vector<288x128xbf16>, vector<128x128xbf16>, vector<288x128xf32> -> vector<288x128xf32>
    %40 = arith.addf %34, %39 : vector<288x128xf32>
    %c0_37 = arith.constant 0 : index
    %c37 = arith.constant 37 : index
    %c0_38 = arith.constant 0 : index
    %41 = vector.load %arg1[%c0_37, %c37, %c0_38] : memref<1x328x128xbf16, #tpu.memory_space<vmem>>, vector<1x288x128xbf16>
    %42 = vector.shape_cast %41 : vector<1x288x128xbf16> to vector<288x128xbf16>
    %c7 = arith.constant 7 : index
    %c0_39 = arith.constant 0 : index
    %c0_40 = arith.constant 0 : index
    %43 = vector.load %arg2[%c7, %c0_39, %c0_40] : memref<9x128x128xbf16, #tpu.memory_space<vmem>>, vector<1x128x128xbf16>
    %44 = vector.shape_cast %43 : vector<1x128x128xbf16> to vector<128x128xbf16>
    %cst_41 = arith.constant dense<0.000000e+00> : vector<288x128xf32>
    %45 = tpu.matmul %42, %44, %cst_41 {dimension_numbers = #tpu.dot_dimension_numbers<[1], [0], [0], [1], [0, 0, 1, 1], [], []>} : vector<288x128xbf16>, vector<128x128xbf16>, vector<288x128xf32> -> vector<288x128xf32>
    %46 = arith.addf %40, %45 : vector<288x128xf32>
    %c0_42 = arith.constant 0 : index
    %c38 = arith.constant 38 : index
    %c0_43 = arith.constant 0 : index
    %47 = vector.load %arg1[%c0_42, %c38, %c0_43] : memref<1x328x128xbf16, #tpu.memory_space<vmem>>, vector<1x288x128xbf16>
    %48 = vector.shape_cast %47 : vector<1x288x128xbf16> to vector<288x128xbf16>
    %c8 = arith.constant 8 : index
    %c0_44 = arith.constant 0 : index
    %c0_45 = arith.constant 0 : index
    %49 = vector.load %arg2[%c8, %c0_44, %c0_45] : memref<9x128x128xbf16, #tpu.memory_space<vmem>>, vector<1x128x128xbf16>
    %50 = vector.shape_cast %49 : vector<1x128x128xbf16> to vector<128x128xbf16>
    %cst_46 = arith.constant dense<0.000000e+00> : vector<288x128xf32>
    %51 = tpu.matmul %48, %50, %cst_46 {dimension_numbers = #tpu.dot_dimension_numbers<[1], [0], [0], [1], [0, 0, 1, 1], [], []>} : vector<288x128xbf16>, vector<128x128xbf16>, vector<288x128xf32> -> vector<288x128xf32>
    %52 = arith.addf %46, %51 : vector<288x128xf32>
    %53 = vector.extract_strided_slice %52 {offsets = [0, 0], sizes = [16, 128], strides = [1, 1]} : vector<288x128xf32> to vector<16x128xf32>
    %54 = vector.extract_strided_slice %52 {offsets = [18, 0], sizes = [16, 128], strides = [1, 1]} : vector<288x128xf32> to vector<16x128xf32>
    %55 = vector.extract_strided_slice %52 {offsets = [36, 0], sizes = [16, 128], strides = [1, 1]} : vector<288x128xf32> to vector<16x128xf32>
    %56 = vector.extract_strided_slice %52 {offsets = [54, 0], sizes = [16, 128], strides = [1, 1]} : vector<288x128xf32> to vector<16x128xf32>
    %57 = vector.extract_strided_slice %52 {offsets = [72, 0], sizes = [16, 128], strides = [1, 1]} : vector<288x128xf32> to vector<16x128xf32>
    %58 = vector.extract_strided_slice %52 {offsets = [90, 0], sizes = [16, 128], strides = [1, 1]} : vector<288x128xf32> to vector<16x128xf32>
    %59 = vector.extract_strided_slice %52 {offsets = [108, 0], sizes = [16, 128], strides = [1, 1]} : vector<288x128xf32> to vector<16x128xf32>
    %60 = vector.extract_strided_slice %52 {offsets = [126, 0], sizes = [16, 128], strides = [1, 1]} : vector<288x128xf32> to vector<16x128xf32>
    %61 = vector.extract_strided_slice %52 {offsets = [144, 0], sizes = [16, 128], strides = [1, 1]} : vector<288x128xf32> to vector<16x128xf32>
    %62 = vector.extract_strided_slice %52 {offsets = [162, 0], sizes = [16, 128], strides = [1, 1]} : vector<288x128xf32> to vector<16x128xf32>
    %63 = vector.extract_strided_slice %52 {offsets = [180, 0], sizes = [16, 128], strides = [1, 1]} : vector<288x128xf32> to vector<16x128xf32>
    %64 = vector.extract_strided_slice %52 {offsets = [198, 0], sizes = [16, 128], strides = [1, 1]} : vector<288x128xf32> to vector<16x128xf32>
    %65 = vector.extract_strided_slice %52 {offsets = [216, 0], sizes = [16, 128], strides = [1, 1]} : vector<288x128xf32> to vector<16x128xf32>
    %66 = vector.extract_strided_slice %52 {offsets = [234, 0], sizes = [16, 128], strides = [1, 1]} : vector<288x128xf32> to vector<16x128xf32>
    %67 = vector.extract_strided_slice %52 {offsets = [252, 0], sizes = [16, 128], strides = [1, 1]} : vector<288x128xf32> to vector<16x128xf32>
    %68 = vector.extract_strided_slice %52 {offsets = [270, 0], sizes = [16, 128], strides = [1, 1]} : vector<288x128xf32> to vector<16x128xf32>
    %69 = tpu.concatenate %53, %54, %55, %56, %57, %58, %59, %60, %61, %62, %63, %64, %65, %66, %67, %68 in 0 : vector<16x128xf32>, vector<16x128xf32>, vector<16x128xf32>, vector<16x128xf32>, vector<16x128xf32>, vector<16x128xf32>, vector<16x128xf32>, vector<16x128xf32>, vector<16x128xf32>, vector<16x128xf32>, vector<16x128xf32>, vector<16x128xf32>, vector<16x128xf32>, vector<16x128xf32>, vector<16x128xf32>, vector<16x128xf32> -> vector<256x128xf32>
    %c0_47 = arith.constant 0 : index
    %c0_48 = arith.constant 0 : index
    %70 = vector.load %arg3[%c0_47, %c0_48] : memref<1x128xf32, #tpu.memory_space<vmem>>, vector<1x128xf32>
    %71 = vector.broadcast %70 : vector<1x128xf32> to vector<256x128xf32>
    %72 = arith.addf %69, %71 : vector<256x128xf32>
    %cst_49 = arith.constant 0.000000e+00 : f32
    %73 = vector.broadcast %cst_49 : f32 to vector<256x128xf32>
    %74 = arith.maximumf %72, %73 : vector<256x128xf32>
    %75 = arith.truncf %74 : vector<256x128xf32> to vector<256x128xbf16>
    %c0_50 = arith.constant 0 : index
    %c0_51 = arith.constant 0 : index
    %c0_52 = arith.constant 0 : index
    %76 = vector.load %arg4[%c0_50, %c0_51, %c0_52] : memref<1x256x128xbf16, #tpu.memory_space<vmem>>, vector<1x256x128xbf16>
    %77 = vector.shape_cast %76 : vector<1x256x128xbf16> to vector<256x128xbf16>
    %78 = vector.shape_cast %75 : vector<256x128xbf16> to vector<1x256x128xbf16>
    tpu.vector_store %arg4[%c0_50, %c0_51, %c0_52], %78 {strides = array<i32>} : memref<1x256x128xbf16, #tpu.memory_space<vmem>>, vector<1x256x128xbf16>,
    return
  }
  func.func @transform_0(%arg0: i32) -> (i32, i32, i32) {
    %c0_i32 = arith.constant 0 : i32
    %c0_i32_0 = arith.constant 0 : i32
    %c0_i32_1 = arith.constant 0 : i32
    return %arg0, %c0_i32, %c0_i32_0 : i32, i32, i32
  }
  func.func @transform_1(%arg0: i32) -> (i32, i32, i32) {
    %c0_i32 = arith.constant 0 : i32
    %c0_i32_0 = arith.constant 0 : i32
    %c0_i32_1 = arith.constant 0 : i32
    %c0_i32_2 = arith.constant 0 : i32
    return %c0_i32, %c0_i32_0, %c0_i32_1 : i32, i32, i32
  }
  func.func @transform_2(%arg0: i32) -> (i32, i32) {
    %c0_i32 = arith.constant 0 : i32
    %c0_i32_0 = arith.constant 0 : i32
    %c0_i32_1 = arith.constant 0 : i32
    return %c0_i32, %c0_i32_0 : i32, i32
  }
  func.func @transform_3(%arg0: i32) -> (i32, i32, i32) {
    %c0_i32 = arith.constant 0 : i32
    %c0_i32_0 = arith.constant 0 : i32
    %c0_i32_1 = arith.constant 0 : i32
    return %arg0, %c0_i32, %c0_i32_0 : i32, i32, i32
  }
}

</mosaic_0001>

<llo_original>
// kernel: tpu_custom_call.1
$region0: #{tpu_custom_call.1}
  #allocation0 [shape = 'u32[]', space=smem, size = 0x4, offset = 0x4, fixed_abs, tag = 'smem constant byte address 0x4 - core index']
  #allocation1 [shape = 'u32[144,128]{1,0:T(1,128)}', space=vmem, size = 0x12000, scoped, tag = 'internal scratch']
  %s0 = inlined_call_operand.hbm [shape: bf16[2,328,128], index: 0, kind: input, shape index: {}]
  %s1 = inlined_call_operand.hbm [shape: bf16[9,128,128], index: 1, kind: input, shape index: {}]
  %s2 = inlined_call_operand.vmem [shape: f32[1,128], index: 2, kind: input, shape index: {}]
  %s3 = inlined_call_operand.hbm [shape: bf16[2,256,128], index: 3, kind: output, shape index: {}]
  %s4 = sld [smem:[#allocation0]]
  $region53: #{tpu_custom_call.1} parent=0
    _
  %s6 = ssub.s32 1, %s4
  %s7 = scalar_select 0, %s6, %s4
  $region1: #{tpu_custom_call.1} parent=0
    #allocation2 [shape = 'u8[167936]{0}', space=vmem, size = 0x29000, scoped, tag = 'input window, operand 0']
    #allocation3 [shape = 's32[2]{0}', space=sflag, size = 0x8, scoped, tag = 'scoped memory for tpu_custom_call.1']
    #allocation4 [shape = 's32[2]{0}', space=sflag, size = 0x8, scoped, tag = 'scoped memory for tpu_custom_call.1']
    #allocation5 [shape = 'u8[294912]{0}', space=vmem, size = 0x48000, scoped, tag = 'input window, operand 1, single buffered']
    #allocation6 [shape = 's32[1]{0}', space=sflag, size = 0x4, scoped, tag = 'scoped memory for tpu_custom_call.1']
    #allocation7 [shape = 'u8[131072]{0}', space=vmem, size = 0x20000, scoped, tag = 'output window, operand 0']
    %8 = vsyncpa [#allocation3], 0
    %s9 = scalar_lea.sflag [#allocation3], 1
    %10 = vsyncpa %s9, 0
    %11 = vsyncpa [#allocation6], 0
    %12 = vsyncpa [#allocation4], 0
    %s13 = scalar_lea.sflag [#allocation4], 1
    %14 = vsyncpa %s13, 0
    loop: start=0, step=1, limit=4
    $region2: #{tpu_custom_call.1} parent=1 // loop_pre_header
      _
    $region3: #{tpu_custom_call.1} parent=1 // loop_header
      %s16 = sphi 0, %s20
      %p17 = scmp.ge.s32.totalorder %s16, 4
      %s26 = sphi 0, %s28
      %s29 = sphi 0, %s26
      %s30 = sphi 0, %s29
      %s46 = sphi 0, %s30
      %s50 = sphi 0, %s50
      %s52 = sphi 0, %s50
      %s53 = sphi 0, %s52
      %s67 = sphi 0, %s53
      %s71 = sphi 0, %s71
      %s73 = sphi 0, %s71
      %s74 = sphi 0, %s73
      %s88 = sphi 0, %s74
      %s94 = sphi 0, %s96
      %s97 = sphi 0, %s94
      %s98 = sphi 0, %s97
      %s114 = sphi 0, %s98
    $region4: #{tpu_custom_call.1} parent=1 // loop_header_branch
      %19 = sbr.rel (%p17) target = $region8
    $region5: #{tpu_custom_call.1} parent=1 // loop_body
      %s21 = ssub.s32 %s16, 1
      %s22 = ssub.s32 %s16, 2
      %s23 = sadd.s32 %s16, 1
      %s24 = ssub.s32 %s16, %s23
      %p25 = scmp.eq.s32.totalorder %s24, 0
      %s27 = sadd.s32 %s26, 1
      %s28 = scalar_select %p25, %s26, %s27
      %p31 = pneg %p25
      %p32 = scmp.eq.s32.totalorder %s16, 1
      %p33 = por %p31, %p32
      %p34 = scmp.ne.s32.totalorder %s26, %s29
      %p35 = scmp.eq.s32.totalorder %s16, 0
      %p36 = por %p34, %p35
      %p37 = scmp.ne.s32.totalorder %s26, %s29
      %p38 = scmp.eq.s32.totalorder %s21, 1
      %p39 = por %p37, %p38
      %p40 = scmp.ne.s32.totalorder %s29, %s30
      %p41 = scmp.eq.s32.totalorder %s21, 0
      %p42 = por %p40, %p41
      %p43 = scmp.ne.s32.totalorder %s29, %s30
      %p44 = scmp.eq.s32.totalorder %s22, 1
      %p45 = por %p43, %p44
      %p47 = scmp.ne.s32.totalorder %s30, %s46
      %p48 = scmp.eq.s32.totalorder %s22, 0
      %p49 = por %p47, %p48
      %s51 = sadd.s32 %s50, 1
      %p54 = scmp.eq.s32.totalorder %s16, 1
      %p55 = scmp.ne.s32.totalorder %s50, %s52
      %p56 = scmp.eq.s32.totalorder %s16, 0
      %p57 = por %p55, %p56
      %p58 = scmp.ne.s32.totalorder %s50, %s52
      %p59 = scmp.eq.s32.totalorder %s21, 1
      %p60 = por %p58, %p59
      %p61 = scmp.ne.s32.totalorder %s52, %s53
      %p62 = scmp.eq.s32.totalorder %s21, 0
      %p63 = por %p61, %p62
      %p64 = scmp.ne.s32.totalorder %s52, %s53
      %p65 = scmp.eq.s32.totalorder %s22, 1
      %p66 = por %p64, %p65
      %p68 = scmp.ne.s32.totalorder %s53, %s67
      %p69 = scmp.eq.s32.totalorder %s22, 0
      %p70 = por %p68, %p69
      %s72 = sadd.s32 %s71, 1
      %p75 = scmp.eq.s32.totalorder %s16, 1
      %p76 = scmp.ne.s32.totalorder %s71, %s73
      %p77 = scmp.eq.s32.totalorder %s16, 0
      %p78 = por %p76, %p77
      %p79 = scmp.ne.s32.totalorder %s71, %s73
      %p80 = scmp.eq.s32.totalorder %s21, 1
      %p81 = por %p79, %p80
      %p82 = scmp.ne.s32.totalorder %s73, %s74
      %p83 = scmp.eq.s32.totalorder %s21, 0
      %p84 = por %p82, %p83
      %p85 = scmp.ne.s32.totalorder %s73, %s74
      %p86 = scmp.eq.s32.totalorder %s22, 1
      %p87 = por %p85, %p86
      %p89 = scmp.ne.s32.totalorder %s74, %s88
      %p90 = scmp.eq.s32.totalorder %s22, 0
      %p91 = por %p89, %p90
      %s92 = ssub.s32 %s16, %s23
      %p93 = scmp.eq.s32.totalorder %s92, 0
      %s95 = sadd.s32 %s94, 1
      %s96 = scalar_select %p93, %s94, %s95
      %p99 = pneg %p93
      %p100 = scmp.eq.s32.totalorder %s16, 1
      %p101 = por %p99, %p100
      %p102 = scmp.ne.s32.totalorder %s94, %s97
      %p103 = scmp.eq.s32.totalorder %s16, 0
      %p104 = por %p102, %p103
      %p105 = scmp.ne.s32.totalorder %s94, %s97
      %p106 = scmp.eq.s32.totalorder %s21, 1
      %p107 = por %p105, %p106
      %p108 = scmp.ne.s32.totalorder %s97, %s98
      %p109 = scmp.eq.s32.totalorder %s21, 0
      %p110 = por %p108, %p109
      %p111 = scmp.ne.s32.totalorder %s97, %s98
      %p112 = scmp.eq.s32.totalorder %s22, 1
      %p113 = por %p111, %p112
      %p115 = scmp.ne.s32.totalorder %s98, %s114
      %p116 = scmp.eq.s32.totalorder %s22, 0
      %p117 = por %p115, %p116
      %p118 = scmp.le.s32.totalorder 1, %s16
      %p119 = scmp.lt.s32.totalorder %s16, 3
      %p120 = pnand %p118, %p119
      %p121 = pneg %p120
      // Predicated region
      $region9: #{tpu_custom_call.1} parent=5 // pred_check
        _
      $region10: #{tpu_custom_call.1} parent=5 // pred_check_branch
        %123 = sbr.rel (%p120) target = $region12
      $region11: #{tpu_custom_call.1} parent=5 // pred_region
        %s124 = ssub.s32 %s16, 1
        // Predicated region
        $region13: #{tpu_custom_call.1} parent=11 // pred_check
          %p125 = pneg %p63
        $region14: #{tpu_custom_call.1} parent=11 // pred_check_branch
          %127 = sbr.rel (%p125) target = $region16
        $region15: #{tpu_custom_call.1} parent=11 // pred_region
          %s129 = ssub.s32 9216, 9216
          %130 = vsyncadd [#allocation6], %s129
          %s131 = sshll.u32 [#allocation5], 4
          %s132 = int_to_ptr.vmem [resolvable:$true] %s131
          %137 = dma.hbm_to_vmem [thread:$0]  %s1, 9216, %s132, [#allocation6], 64, 64, 4
        $region16: #{tpu_custom_call.1} parent=11 // pred_fallthru
          _
        // Predicated region
        $region17: #{tpu_custom_call.1} parent=11 // pred_check
          %p138 = pneg %p84
        $region18: #{tpu_custom_call.1} parent=11 // pred_check_branch
          %140 = sbr.rel (%p138) target = $region20
        $region19: #{tpu_custom_call.1} parent=11 // pred_region
          _
        $region20: #{tpu_custom_call.1} parent=11 // pred_fallthru
          _
      $region12: #{tpu_custom_call.1} parent=5 // pred_fallthru
        _
      %p141 = scmp.lt.s32.totalorder %s16, 2
      // Predicated region
      $region21: #{tpu_custom_call.1} parent=5 // pred_check
        %p142 = pneg %p141
      $region22: #{tpu_custom_call.1} parent=5 // pred_check_branch
        %144 = sbr.rel (%p142) target = $region24
      $region23: #{tpu_custom_call.1} parent=5 // pred_region
        // Predicated region
        $region25: #{tpu_custom_call.1} parent=23 // pred_check
          %p145 = pneg %p36
        $region26: #{tpu_custom_call.1} parent=23 // pred_check_branch
          %147 = sbr.rel (%p145) target = $region28
        $region27: #{tpu_custom_call.1} parent=23 // pred_region
          %s148 = sand.u32 %s26, 1
          %s149 = scalar_lea.sflag [#allocation3], %s148
          %s150 = sand.u32 %s26, 1
          %s151 = smul.addr %s150, 164
          %s152 = scalar_lea.vmem [#allocation2], %s151
          %s154 = ssub.s32 2624, 2624
          %155 = vsyncadd %s149, %s154
          %s156 = smul.addr %s16, 41
          %s157 = smul.addr %s156, 64
          %s158 = scalar_lea.hbm %s0, %s157
          %s159 = sshll.u32 %s152, 4
          %s160 = int_to_ptr.vmem [resolvable:$true] %s159
          %165 = dma.hbm_to_vmem [thread:$0]  %s158, 2624, %s160, %s149, 64, 64, 4
        $region28: #{tpu_custom_call.1} parent=23 // pred_fallthru
          _
      $region24: #{tpu_custom_call.1} parent=5 // pred_fallthru
        _
      %p166 = scmp.le.s32.totalorder 1, %s16
      %p167 = scmp.lt.s32.totalorder %s16, 3
      %p168 = pnand %p166, %p167
      %p169 = pneg %p168
      // Predicated region
      $region29: #{tpu_custom_call.1} parent=5 // pred_check
        _
      $region30: #{tpu_custom_call.1} parent=5 // pred_check_branch
        %171 = sbr.rel (%p168) target = $region32
      $region31: #{tpu_custom_call.1} parent=5 // pred_region
        %s172 = ssub.s32 %s16, 1
        %s173 = sand.u32 %s29, 1
        %s174 = scalar_lea.sflag [#allocation3], %s173
        %s175 = sand.u32 %s29, 1
        %s176 = smul.addr %s175, 164
        %s177 = scalar_lea.vmem [#allocation2], %s176
        // Predicated region
        $region33: #{tpu_custom_call.1} parent=31 // pred_check
          %p178 = pneg %p42
        $region34: #{tpu_custom_call.1} parent=31 // pred_check_branch
          %180 = sbr.rel (%p178) target = $region36
        $region35: #{tpu_custom_call.1} parent=31 // pred_region
          %181 = dma.done %s174, 2624
        $region36: #{tpu_custom_call.1} parent=31 // pred_fallthru
          _
        // Predicated region
        $region37: #{tpu_custom_call.1} parent=31 // pred_check
          %p182 = pneg %p63
        $region38: #{tpu_custom_call.1} parent=31 // pred_check_branch
          %184 = sbr.rel (%p182) target = $region40
        $region39: #{tpu_custom_call.1} parent=31 // pred_region
          %185 = dma.done [#allocation6], 9216
        $region40: #{tpu_custom_call.1} parent=31 // pred_fallthru
          _
        %s186 = sand.u32 %s29, 1
        %s187 = scalar_lea.sflag [#allocation3], %s186
        %s188 = sand.u32 %s29, 1
        %s189 = smul.addr %s188, 164
        %s190 = scalar_lea.vmem [#allocation2], %s189
        %p191 = pneg %p42
        %p192 = pneg %p39
        %p193 = pneg %p63
        %p194 = pneg %p60
        %p195 = pneg %p84
        %p196 = pneg %p81
        %p197 = pneg %p110
        %p198 = pneg %p107
        %s199 = sand.u32 %s97, 1
        %s200 = scalar_lea.sflag [#allocation4], %s199
        %s201 = sand.u32 %s97, 1
        %s202 = smul.addr %s201, 128
        %s203 = scalar_lea.vmem [#allocation7], %s202
        %v205 = vld [vmem:[%s177] sm:$0xf]
        %v206 = vld [vmem:[%s177 + $0x4] sm:$0xf]
        %v207 = vld [vmem:[%s177 + $0x8] sm:$0xf]
        %v208 = vld [vmem:[%s177 + $0xc] sm:$0xf]
        %v209 = vld [vmem:[%s177 + $0x10] sm:$0xf]
        %v210 = vld [vmem:[%s177 + $0x14] sm:$0xf]
        %v211 = vld [vmem:[%s177 + $0x18] sm:$0xf]
        %v212 = vld [vmem:[%s177 + $0x1c] sm:$0xf]
        %v213 = vld [vmem:[%s177 + $0x20] sm:$0xf]
        %v214 = vld [vmem:[%s177 + $0x24] sm:$0xf]
        %v215 = vld [vmem:[%s177 + $0x28] sm:$0xf]
        %v216 = vld [vmem:[%s177 + $0x2c] sm:$0xf]
        %v217 = vld [vmem:[%s177 + $0x30] sm:$0xf]
        %v218 = vld [vmem:[%s177 + $0x34] sm:$0xf]
        %v219 = vld [vmem:[%s177 + $0x38] sm:$0xf]
        %v220 = vld [vmem:[%s177 + $0x3c] sm:$0xf]
        %v221 = vld [vmem:[%s177 + $0x40] sm:$0xf]
        %v222 = vld [vmem:[%s177 + $0x44] sm:$0xf]
        %v223 = vld [vmem:[%s177 + $0x48] sm:$0xf]
        %v224 = vld [vmem:[%s177 + $0x4c] sm:$0xf]
        %v225 = vld [vmem:[%s177 + $0x50] sm:$0xf]
        %v226 = vld [vmem:[%s177 + $0x54] sm:$0xf]
        %v227 = vld [vmem:[%s177 + $0x58] sm:$0xf]
        %v228 = vld [vmem:[%s177 + $0x5c] sm:$0xf]
        %v229 = vld [vmem:[%s177 + $0x60] sm:$0xf]
        %v230 = vld [vmem:[%s177 + $0x64] sm:$0xf]
        %v231 = vld [vmem:[%s177 + $0x68] sm:$0xf]
        %v232 = vld [vmem:[%s177 + $0x6c] sm:$0xf]
        %v233 = vld [vmem:[%s177 + $0x70] sm:$0xf]
        %v234 = vld [vmem:[%s177 + $0x74] sm:$0xf]
        %v235 = vld [vmem:[%s177 + $0x78] sm:$0xf]
        %v236 = vld [vmem:[%s177 + $0x7c] sm:$0xf]
        %v237 = vld [vmem:[%s177 + $0x80] sm:$0xf]
        %v238 = vld [vmem:[%s177 + $0x84] sm:$0xf]
        %v239 = vld [vmem:[%s177 + $0x88] sm:$0xf]
        %v240 = vld [vmem:[%s177 + $0x8c] sm:$0xf]
        %v241 = vld [vmem:[#allocation5] sm:$0xf]
        %v242 = vld [vmem:[#allocation5 + $0x4] sm:$0xf]
        %v243 = vld [vmem:[#allocation5 + $0x8] sm:$0xf]
        %v244 = vld [vmem:[#allocation5 + $0xc] sm:$0xf]
        %v245 = vld [vmem:[#allocation5 + $0x10] sm:$0xf]
        %v246 = vld [vmem:[#allocation5 + $0x14] sm:$0xf]
        %v247 = vld [vmem:[#allocation5 + $0x18] sm:$0xf]
        %v248 = vld [vmem:[#allocation5 + $0x1c] sm:$0xf]
        %v249 = vld [vmem:[#allocation5 + $0x20] sm:$0xf]
        %v250 = vld [vmem:[#allocation5 + $0x24] sm:$0xf]
        %v251 = vld [vmem:[#allocation5 + $0x28] sm:$0xf]
        %v252 = vld [vmem:[#allocation5 + $0x2c] sm:$0xf]
        %v253 = vld [vmem:[#allocation5 + $0x30] sm:$0xf]
        %v254 = vld [vmem:[#allocation5 + $0x34] sm:$0xf]
        %v255 = vld [vmem:[#allocation5 + $0x38] sm:$0xf]
        %v256 = vld [vmem:[#allocation5 + $0x3c] sm:$0xf]
        %v257 = vld [vmem:[%s177 + $0x90] sm:$0x1]
        %s258 = scalar_lea.vmem [#allocation5], 64
        %v259 = vld [vmem:[%s258] sm:$0xf]
        %v260 = vld [vmem:[%s258 + $0x4] sm:$0xf]
        %v261 = vld [vmem:[%s258 + $0x8] sm:$0xf]
        %v262 = vld [vmem:[%s258 + $0xc] sm:$0xf]
        %v263 = vld [vmem:[%s258 + $0x10] sm:$0xf]
        %v264 = vld [vmem:[%s258 + $0x14] sm:$0xf]
        %v265 = vld [vmem:[%s258 + $0x18] sm:$0xf]
        %v266 = vld [vmem:[%s258 + $0x1c] sm:$0xf]
        %v267 = vld [vmem:[%s258 + $0x20] sm:$0xf]
        %v268 = vld [vmem:[%s258 + $0x24] sm:$0xf]
        %v269 = vld [vmem:[%s258 + $0x28] sm:$0xf]
        %v270 = vld [vmem:[%s258 + $0x2c] sm:$0xf]
        %v271 = vld [vmem:[%s258 + $0x30] sm:$0xf]
        %v272 = vld [vmem:[%s258 + $0x34] sm:$0xf]
        %v273 = vld [vmem:[%s258 + $0x38] sm:$0xf]
        %v274 = vld [vmem:[%s258 + $0x3c] sm:$0xf]
        %v312 = vunpack.c.l.b16 %v205
        %v313 = vunpack.c.l.b16 %v206
        %v314 = vunpack.c.l.b16 %v207
        %v315 = vunpack.c.l.b16 %v208
        %v316 = vunpack.c.l.b16 %v209
        %v317 = vunpack.c.l.b16 %v210
        %v318 = vunpack.c.l.b16 %v211
        %v319 = vunpack.c.l.b16 %v212
        %v320 = vunpack.c.l.b16 %v213
        %v321 = vunpack.c.l.b16 %v214
        %v322 = vunpack.c.l.b16 %v215
        %v323 = vunpack.c.l.b16 %v216
        %v324 = vunpack.c.l.b16 %v217
        %v325 = vunpack.c.l.b16 %v218
        %v326 = vunpack.c.l.b16 %v219
        %v327 = vunpack.c.l.b16 %v220
        %v328 = vunpack.c.l.b16 %v221
        %v329 = vunpack.c.l.b16 %v222
        %v330 = vunpack.c.l.b16 %v223
        %v331 = vunpack.c.l.b16 %v224
        %v332 = vunpack.c.l.b16 %v225
        %v333 = vunpack.c.l.b16 %v226
        %v334 = vunpack.c.l.b16 %v227
        %v335 = vunpack.c.l.b16 %v228
        %v336 = vunpack.c.l.b16 %v229
        %v337 = vunpack.c.l.b16 %v230
        %v338 = vunpack.c.l.b16 %v231
        %v339 = vunpack.c.l.b16 %v232
        %v340 = vunpack.c.l.b16 %v233
        %v341 = vunpack.c.l.b16 %v234
        %v342 = vunpack.c.l.b16 %v235
        %v343 = vunpack.c.l.b16 %v236
        %v344 = vunpack.c.l.b16 %v237
        %v345 = vunpack.c.l.b16 %v238
        %v346 = vunpack.c.l.b16 %v239
        %v347 = vunpack.c.l.b16 %v240
        %v348 = vunpack.c.l.b16 %v257
        %v349 = vpack.c.b16 %v313, %v312
        %v350 = vpack.c.b16 %v315, %v314
        %v351 = vpack.c.b16 %v317, %v316
        %v352 = vpack.c.b16 %v319, %v318
        %v353 = vpack.c.b16 %v321, %v320
        %v354 = vpack.c.b16 %v323, %v322
        %v355 = vpack.c.b16 %v325, %v324
        %v356 = vpack.c.b16 %v327, %v326
        %v357 = vpack.c.b16 %v329, %v328
        %v358 = vpack.c.b16 %v331, %v330
        %v359 = vpack.c.b16 %v333, %v332
        %v360 = vpack.c.b16 %v335, %v334
        %v361 = vpack.c.b16 %v337, %v336
        %v362 = vpack.c.b16 %v339, %v338
        %v363 = vpack.c.b16 %v341, %v340
        %v364 = vpack.c.b16 %v343, %v342
        %v365 = vpack.c.b16 %v345, %v344
        %v366 = vpack.c.b16 %v347, %v346
        %v367 = vpack.c.b16 %v348, %v348
        %vm368 = vsmask.f32 7424
        %v370 = vshrl.u32 %v349, 16
        %v372 = vshll.u32 %v349, 16
        %v374 = vrot.slane %v372, 1
        %v375 = vor.u32 %v370, %v374
        %v377 = vshll.u32 %v350, 16
        %v379 = vrot.slane %v377, 1
        %v380 = vsel %vm368, %v375, %v379
        %v381 = vshrl.u32 %v350, 16
        %v383 = vor.u32 %v381, %v379
        %v385 = vshll.u32 %v351, 16
        %v387 = vrot.slane %v385, 1
        %v388 = vsel %vm368, %v383, %v387
        %v389 = vshrl.u32 %v351, 16
        %v391 = vor.u32 %v389, %v387
        %v393 = vshll.u32 %v352, 16
        %v395 = vrot.slane %v393, 1
        %v396 = vsel %vm368, %v391, %v395
        %v397 = vshrl.u32 %v352, 16
        %v399 = vor.u32 %v397, %v395
        %v401 = vshll.u32 %v353, 16
        %v403 = vrot.slane %v401, 1
        %v404 = vsel %vm368, %v399, %v403
        %v405 = vshrl.u32 %v353, 16
        %v407 = vor.u32 %v405, %v403
        %v409 = vshll.u32 %v354, 16
        %v411 = vrot.slane %v409, 1
        %v412 = vsel %vm368, %v407, %v411
        %v413 = vshrl.u32 %v354, 16
        %v415 = vor.u32 %v413, %v411
        %v417 = vshll.u32 %v355, 16
        %v419 = vrot.slane %v417, 1
        %v420 = vsel %vm368, %v415, %v419
        %v421 = vshrl.u32 %v355, 16
        %v423 = vor.u32 %v421, %v419
        %v425 = vshll.u32 %v356, 16
        %v427 = vrot.slane %v425, 1
        %v428 = vsel %vm368, %v423, %v427
        %v429 = vshrl.u32 %v356, 16
        %v431 = vor.u32 %v429, %v427
        %v433 = vshll.u32 %v357, 16
        %v435 = vrot.slane %v433, 1
        %v436 = vsel %vm368, %v431, %v435
        %v437 = vshrl.u32 %v357, 16
        %v439 = vor.u32 %v437, %v435
        %v441 = vshll.u32 %v358, 16
        %v443 = vrot.slane %v441, 1
        %v444 = vsel %vm368, %v439, %v443
        %v445 = vshrl.u32 %v358, 16
        %v447 = vor.u32 %v445, %v443
        %v449 = vshll.u32 %v359, 16
        %v451 = vrot.slane %v449, 1
        %v452 = vsel %vm368, %v447, %v451
        %v453 = vshrl.u32 %v359, 16
        %v455 = vor.u32 %v453, %v451
        %v457 = vshll.u32 %v360, 16
        %v459 = vrot.slane %v457, 1
        %v460 = vsel %vm368, %v455, %v459
        %v461 = vshrl.u32 %v360, 16
        %v463 = vor.u32 %v461, %v459
        %v465 = vshll.u32 %v361, 16
        %v467 = vrot.slane %v465, 1
        %v468 = vsel %vm368, %v463, %v467
        %v469 = vshrl.u32 %v361, 16
        %v471 = vor.u32 %v469, %v467
        %v473 = vshll.u32 %v362, 16
        %v475 = vrot.slane %v473, 1
        %v476 = vsel %vm368, %v471, %v475
        %v477 = vshrl.u32 %v362, 16
        %v479 = vor.u32 %v477, %v475
        %v481 = vshll.u32 %v363, 16
        %v483 = vrot.slane %v481, 1
        %v484 = vsel %vm368, %v479, %v483
        %v485 = vshrl.u32 %v363, 16
        %v487 = vor.u32 %v485, %v483
        %v489 = vshll.u32 %v364, 16
        %v491 = vrot.slane %v489, 1
        %v492 = vsel %vm368, %v487, %v491
        %v493 = vshrl.u32 %v364, 16
        %v495 = vor.u32 %v493, %v491
        %v497 = vshll.u32 %v365, 16
        %v499 = vrot.slane %v497, 1
        %v500 = vsel %vm368, %v495, %v499
        %v501 = vshrl.u32 %v365, 16
        %v503 = vor.u32 %v501, %v499
        %v505 = vshll.u32 %v366, 16
        %v507 = vrot.slane %v505, 1
        %v508 = vsel %vm368, %v503, %v507
        %v509 = vshrl.u32 %v366, 16
        %v511 = vor.u32 %v509, %v507
        %v513 = vshll.u32 %v367, 16
        %v515 = vrot.slane %v513, 1
        %v516 = vsel %vm368, %v511, %v515
        %v551 = vunpack.c.l.b16 %v259
        %v552 = vunpack.c.l.b16 %v260
        %v553 = vunpack.c.l.b16 %v261
        %v554 = vunpack.c.l.b16 %v262
        %v555 = vunpack.c.l.b16 %v263
        %v556 = vunpack.c.l.b16 %v264
        %v557 = vunpack.c.l.b16 %v265
        %v558 = vunpack.c.l.b16 %v266
        %v559 = vunpack.c.l.b16 %v267
        %v560 = vunpack.c.l.b16 %v268
        %v561 = vunpack.c.l.b16 %v269
        %v562 = vunpack.c.l.b16 %v270
        %v563 = vunpack.c.l.b16 %v271
        %v564 = vunpack.c.l.b16 %v272
        %v565 = vunpack.c.l.b16 %v273
        %v566 = vunpack.c.l.b16 %v274
        %v567 = vpack.c.b16 %v552, %v551
        %v568 = vpack.c.b16 %v554, %v553
        %v569 = vpack.c.b16 %v556, %v555
        %v570 = vpack.c.b16 %v558, %v557
        %v571 = vpack.c.b16 %v560, %v559
        %v572 = vpack.c.b16 %v562, %v561
        %v573 = vpack.c.b16 %v564, %v563
        %v574 = vpack.c.b16 %v566, %v565
        %583 = vmatprep.subr.bf16.mxu0 0
        %584 = vmatpush1.bf16.msra.mxu0 %v567
        %585 = vmatprep.subr.bf16.mxu0 0
        %586 = vmatpush1.bf16.msra.mxu0 %v568
        %587 = vmatprep.subr.bf16.mxu0 0
        %588 = vmatpush1.bf16.msra.mxu0 %v569
        %589 = vmatprep.subr.bf16.mxu0 0
        %590 = vmatpush1.bf16.msra.mxu0 %v570
        %591 = vmatprep.subr.bf16.mxu0 0
        %592 = vmatpush1.bf16.msra.mxu0 %v571
        %593 = vmatprep.subr.bf16.mxu0 0
        %594 = vmatpush1.bf16.msra.mxu0 %v572
        %595 = vmatprep.subr.bf16.mxu0 0
        %596 = vmatpush1.bf16.msra.mxu0 %v573
        %597 = vmatprep.subr.bf16.mxu0 0
        %598 = vmatpush1.bf16.msra.mxu0 %v574
        %599 = vmatprep.subr.bf16.mxu0 0
        %600 = vmatpush1.bf16.msra.mxu0 0
        %601 = vmatprep.subr.bf16.mxu0 0
        %602 = vmatpush1.bf16.msra.mxu0 0
        %603 = vmatprep.subr.bf16.mxu0 0
        %604 = vmatpush1.bf16.msra.mxu0 0
        %605 = vmatprep.subr.bf16.mxu0 0
        %606 = vmatpush1.bf16.msra.mxu0 0
        %607 = vmatprep.subr.bf16.mxu0 0
        %608 = vmatpush1.bf16.msra.mxu0 0
        %609 = vmatprep.subr.bf16.mxu0 0
        %610 = vmatpush1.bf16.msra.mxu0 0
        %611 = vmatprep.subr.bf16.mxu0 0
        %612 = vmatpush1.bf16.msra.mxu0 0
        %613 = vmatprep.subr.bf16.mxu0 0
        %614 = vmatpush1.bf16.msra.mxu0 0
        %615 = vmatprep.mubr.bf16.mxu0 0
        %616 = vmatmul.mubr.bf16.gmra.mrb[0].mxu0 %v380
        %v617 = vpop.f32.mrb[0].mxu0
        %v618 = vadd.f32 0.0, %v617
        %v619 = vpop.f32.mrb[0].mxu0
        %v620 = vpop.f32.mrb[0].mxu0
        %v621 = vadd.f32 0.0, %v620
        %v622 = vpop.f32.mrb[0].mxu0
        %623 = vmatprep.mubr.bf16.mxu0 0
        %624 = vmatmul.mubr.bf16.gmra.mrb[0].mxu0 %v388
        %v625 = vpop.f32.mrb[0].mxu0
        %v626 = vadd.f32 0.0, %v625
        %v627 = vpop.f32.mrb[0].mxu0
        %v628 = vpop.f32.mrb[0].mxu0
        %v629 = vadd.f32 0.0, %v628
        %v630 = vpop.f32.mrb[0].mxu0
        %631 = vmatprep.mubr.bf16.mxu0 0
        %632 = vmatmul.mubr.bf16.gmra.mrb[0].mxu0 %v396
        %v633 = vpop.f32.mrb[0].mxu0
        %v634 = vadd.f32 0.0, %v633
        %v635 = vpop.f32.mrb[0].mxu0
        %v636 = vpop.f32.mrb[0].mxu0
        %v637 = vadd.f32 0.0, %v636
        %v638 = vpop.f32.mrb[0].mxu0
        %639 = vmatprep.mubr.bf16.mxu0 0
        %640 = vmatmul.mubr.bf16.gmra.mrb[0].mxu0 %v404
        %v641 = vpop.f32.mrb[0].mxu0
        %v642 = vadd.f32 0.0, %v641
        %v643 = vpop.f32.mrb[0].mxu0
        %v644 = vpop.f32.mrb[0].mxu0
        %v645 = vadd.f32 0.0, %v644
        %v646 = vpop.f32.mrb[0].mxu0
        %647 = vmatprep.mubr.bf16.mxu0 0
        %648 = vmatmul.mubr.bf16.gmra.mrb[0].mxu0 %v412
        %v649 = vpop.f32.mrb[0].mxu0
        %v650 = vadd.f32 0.0, %v649
        %v651 = vpop.f32.mrb[0].mxu0
        %v652 = vpop.f32.mrb[0].mxu0
        %v653 = vadd.f32 0.0, %v652
        %v654 = vpop.f32.mrb[0].mxu0
        %655 = vmatprep.mubr.bf16.mxu0 0
        %656 = vmatmul.mubr.bf16.gmra.mrb[0].mxu0 %v420
        %v657 = vpop.f32.mrb[0].mxu0
        %v658 = vadd.f32 0.0, %v657
        %v659 = vpop.f32.mrb[0].mxu0
        %v660 = vpop.f32.mrb[0].mxu0
        %v661 = vadd.f32 0.0, %v660
        %v662 = vpop.f32.mrb[0].mxu0
        %663 = vmatprep.mubr.bf16.mxu0 0
        %664 = vmatmul.mubr.bf16.gmra.mrb[0].mxu0 %v428
        %v665 = vpop.f32.mrb[0].mxu0
        %v666 = vadd.f32 0.0, %v665
        %v667 = vpop.f32.mrb[0].mxu0
        %v668 = vpop.f32.mrb[0].mxu0
        %v669 = vadd.f32 0.0, %v668
        %v670 = vpop.f32.mrb[0].mxu0
        %671 = vmatprep.mubr.bf16.mxu0 0
        %672 = vmatmul.mubr.bf16.gmra.mrb[0].mxu0 %v436
        %v673 = vpop.f32.mrb[0].mxu0
        %v674 = vadd.f32 0.0, %v673
        %v675 = vpop.f32.mrb[0].mxu0
        %v676 = vpop.f32.mrb[0].mxu0
        %v677 = vadd.f32 0.0, %v676
        %v678 = vpop.f32.mrb[0].mxu0
        %679 = vmatprep.mubr.bf16.mxu0 0
        %680 = vmatmul.mubr.bf16.gmra.mrb[0].mxu0 %v444
        %v681 = vpop.f32.mrb[0].mxu0
        %v682 = vadd.f32 0.0, %v681
        %v683 = vpop.f32.mrb[0].mxu0
        %v684 = vpop.f32.mrb[0].mxu0
        %v685 = vadd.f32 0.0, %v684
        %v686 = vpop.f32.mrb[0].mxu0
        %687 = vmatprep.mubr.bf16.mxu0 0
        %688 = vmatmul.mubr.bf16.gmra.mrb[0].mxu0 %v452
        %v689 = vpop.f32.mrb[0].mxu0
        %v690 = vadd.f32 0.0, %v689
        %v691 = vpop.f32.mrb[0].mxu0
        %v692 = vpop.f32.mrb[0].mxu0
        %v693 = vadd.f32 0.0, %v692
        %v694 = vpop.f32.mrb[0].mxu0
        %695 = vmatprep.mubr.bf16.mxu0 0
        %696 = vmatmul.mubr.bf16.gmra.mrb[0].mxu0 %v460
        %v697 = vpop.f32.mrb[0].mxu0
        %v698 = vadd.f32 0.0, %v697
        %v699 = vpop.f32.mrb[0].mxu0
        %v700 = vpop.f32.mrb[0].mxu0
        %v701 = vadd.f32 0.0, %v700
        %v702 = vpop.f32.mrb[0].mxu0
        %703 = vmatprep.mubr.bf16.mxu0 0
        %704 = vmatmul.mubr.bf16.gmra.mrb[0].mxu0 %v468
        %v705 = vpop.f32.mrb[0].mxu0
        %v706 = vadd.f32 0.0, %v705
        %v707 = vpop.f32.mrb[0].mxu0
        %v708 = vpop.f32.mrb[0].mxu0
        %v709 = vadd.f32 0.0, %v708
        %v710 = vpop.f32.mrb[0].mxu0
        %711 = vmatprep.mubr.bf16.mxu0 0
        %712 = vmatmul.mubr.bf16.gmra.mrb[0].mxu0 %v476
        %v713 = vpop.f32.mrb[0].mxu0
        %v714 = vadd.f32 0.0, %v713
        %v715 = vpop.f32.mrb[0].mxu0
        %v716 = vpop.f32.mrb[0].mxu0
        %v717 = vadd.f32 0.0, %v716
        %v718 = vpop.f32.mrb[0].mxu0
        %719 = vmatprep.mubr.bf16.mxu0 0
        %720 = vmatmul.mubr.bf16.gmra.mrb[0].mxu0 %v484
        %v721 = vpop.f32.mrb[0].mxu0
        %v722 = vadd.f32 0.0, %v721
        %v723 = vpop.f32.mrb[0].mxu0
        %v724 = vpop.f32.mrb[0].mxu0
        %v725 = vadd.f32 0.0, %v724
        %v726 = vpop.f32.mrb[0].mxu0
        %727 = vmatprep.mubr.bf16.mxu0 0
        %728 = vmatmul.mubr.bf16.gmra.mrb[0].mxu0 %v492
        %v729 = vpop.f32.mrb[0].mxu0
        %v730 = vadd.f32 0.0, %v729
        %v731 = vpop.f32.mrb[0].mxu0
        %v732 = vpop.f32.mrb[0].mxu0
        %v733 = vadd.f32 0.0, %v732
        %v734 = vpop.f32.mrb[0].mxu0
        %735 = vmatprep.mubr.bf16.mxu0 0
        %736 = vmatmul.mubr.bf16.gmra.mrb[0].mxu0 %v500
        %v737 = vpop.f32.mrb[0].mxu0
        %v738 = vadd.f32 0.0, %v737
        %v739 = vpop.f32.mrb[0].mxu0
        %v740 = vpop.f32.mrb[0].mxu0
        %v741 = vadd.f32 0.0, %v740
        %v742 = vpop.f32.mrb[0].mxu0
        %743 = vmatprep.mubr.bf16.mxu0 0
        %744 = vmatmul.mubr.bf16.gmra.mrb[0].mxu0 %v508
        %v745 = vpop.f32.mrb[0].mxu0
        %v746 = vadd.f32 0.0, %v745
        %v747 = vpop.f32.mrb[0].mxu0
        %v748 = vpop.f32.mrb[0].mxu0
        %v749 = vadd.f32 0.0, %v748
        %v750 = vpop.f32.mrb[0].mxu0
        %751 = vmatprep.mubr.bf16.mxu0 0
        %752 = vmatmul.mubr.bf16.gmra.mrb[0].mxu0 %v516
        %v753 = vpop.f32.mrb[0].mxu0
        %v754 = vadd.f32 0.0, %v753
        %v755 = vpop.f32.mrb[0].mxu0
        %v756 = vpop.f32.mrb[0].mxu0
        %v757 = vadd.f32 0.0, %v756
        %v758 = vpop.f32.mrb[0].mxu0
        %759 = vdwg.mxu0
        %v794 = vunpack.c.l.b16 %v241
        %v795 = vunpack.c.l.b16 %v242
        %v796 = vunpack.c.l.b16 %v243
        %v797 = vunpack.c.l.b16 %v244
        %v798 = vunpack.c.l.b16 %v245
        %v799 = vunpack.c.l.b16 %v246
        %v800 = vunpack.c.l.b16 %v247
        %v801 = vunpack.c.l.b16 %v248
        %v802 = vunpack.c.l.b16 %v249
        %v803 = vunpack.c.l.b16 %v250
        %v804 = vunpack.c.l.b16 %v251
        %v805 = vunpack.c.l.b16 %v252
        %v806 = vunpack.c.l.b16 %v253
        %v807 = vunpack.c.l.b16 %v254
        %v808 = vunpack.c.l.b16 %v255
        %v809 = vunpack.c.l.b16 %v256
        %v810 = vpack.c.b16 %v795, %v794
        %v811 = vpack.c.b16 %v797, %v796
        %v812 = vpack.c.b16 %v799, %v798
        %v813 = vpack.c.b16 %v801, %v800
        %v814 = vpack.c.b16 %v803, %v802
        %v815 = vpack.c.b16 %v805, %v804
        %v816 = vpack.c.b16 %v807, %v806
        %v817 = vpack.c.b16 %v809, %v808
        %826 = vmatprep.subr.bf16.mxu0 0
        %827 = vmatpush1.bf16.msra.mxu0 %v810
        %828 = vmatprep.subr.bf16.mxu0 0
        %829 = vmatpush1.bf16.msra.mxu0 %v811
        %830 = vmatprep.subr.bf16.mxu0 0
        %831 = vmatpush1.bf16.msra.mxu0 %v812
        %832 = vmatprep.subr.bf16.mxu0 0
        %833 = vmatpush1.bf16.msra.mxu0 %v813
        %834 = vmatprep.subr.bf16.mxu0 0
        %835 = vmatpush1.bf16.msra.mxu0 %v814
        %836 = vmatprep.subr.bf16.mxu0 0
        %837 = vmatpush1.bf16.msra.mxu0 %v815
        %838 = vmatprep.subr.bf16.mxu0 0
        %839 = vmatpush1.bf16.msra.mxu0 %v816
        %840 = vmatprep.subr.bf16.mxu0 0
        %841 = vmatpush1.bf16.msra.mxu0 %v817
        %842 = vmatprep.subr.bf16.mxu0 0
        %843 = vmatpush1.bf16.msra.mxu0 0
        %844 = vmatprep.subr.bf16.mxu0 0
        %845 = vmatpush1.bf16.msra.mxu0 0
        %846 = vmatprep.subr.bf16.mxu0 0
        %847 = vmatpush1.bf16.msra.mxu0 0
        %848 = vmatprep.subr.bf16.mxu0 0
        %849 = vmatpush1.bf16.msra.mxu0 0
        %850 = vmatprep.subr.bf16.mxu0 0
        %851 = vmatpush1.bf16.msra.mxu0 0
        %852 = vmatprep.subr.bf16.mxu0 0
        %853 = vmatpush1.bf16.msra.mxu0 0
        %854 = vmatprep.subr.bf16.mxu0 0
        %855 = vmatpush1.bf16.msra.mxu0 0
        %856 = vmatprep.subr.bf16.mxu0 0
        %857 = vmatpush1.bf16.msra.mxu0 0
        %858 = vmatprep.mubr.bf16.mxu0 0
        %859 = vmatmul.mubr.bf16.gmra.mrb[0].mxu0 %v349
        %v860 = vpop.f32.mrb[0].mxu0
        %v861 = vadd.f32 %v618, %v860
        %v862 = vpop.f32.mrb[0].mxu0
        %v863 = vpop.f32.mrb[0].mxu0
        %v864 = vadd.f32 %v621, %v863
        %v865 = vpop.f32.mrb[0].mxu0
        %866 = vmatprep.mubr.bf16.mxu0 0
        %867 = vmatmul.mubr.bf16.gmra.mrb[0].mxu0 %v350
        %v868 = vpop.f32.mrb[0].mxu0
        %v869 = vadd.f32 %v626, %v868
        %v870 = vpop.f32.mrb[0].mxu0
        %v871 = vpop.f32.mrb[0].mxu0
        %v872 = vadd.f32 %v629, %v871
        %v873 = vpop.f32.mrb[0].mxu0
        %874 = vmatprep.mubr.bf16.mxu0 0
        %875 = vmatmul.mubr.bf16.gmra.mrb[0].mxu0 %v351
        %v876 = vpop.f32.mrb[0].mxu0
        %v877 = vadd.f32 %v634, %v876
        %v878 = vpop.f32.mrb[0].mxu0
        %v879 = vpop.f32.mrb[0].mxu0
        %v880 = vadd.f32 %v637, %v879
        %v881 = vpop.f32.mrb[0].mxu0
        %882 = vmatprep.mubr.bf16.mxu0 0
        %883 = vmatmul.mubr.bf16.gmra.mrb[0].mxu0 %v352
        %v884 = vpop.f32.mrb[0].mxu0
        %v885 = vadd.f32 %v642, %v884
        %v886 = vpop.f32.mrb[0].mxu0
        %v887 = vpop.f32.mrb[0].mxu0
        %v888 = vadd.f32 %v645, %v887
        %v889 = vpop.f32.mrb[0].mxu0
        %890 = vmatprep.mubr.bf16.mxu0 0
        %891 = vmatmul.mubr.bf16.gmra.mrb[0].mxu0 %v353
        %v892 = vpop.f32.mrb[0].mxu0
        %v893 = vadd.f32 %v650, %v892
        %v894 = vpop.f32.mrb[0].mxu0
        %v895 = vpop.f32.mrb[0].mxu0
        %v896 = vadd.f32 %v653, %v895
        %v897 = vpop.f32.mrb[0].mxu0
        %898 = vmatprep.mubr.bf16.mxu0 0
        %899 = vmatmul.mubr.bf16.gmra.mrb[0].mxu0 %v354
        %v900 = vpop.f32.mrb[0].mxu0
        %v901 = vadd.f32 %v658, %v900
        %v902 = vpop.f32.mrb[0].mxu0
        %v903 = vpop.f32.mrb[0].mxu0
        %v904 = vadd.f32 %v661, %v903
        %v905 = vpop.f32.mrb[0].mxu0
        %906 = vmatprep.mubr.bf16.mxu0 0
        %907 = vmatmul.mubr.bf16.gmra.mrb[0].mxu0 %v355
        %v908 = vpop.f32.mrb[0].mxu0
        %v909 = vadd.f32 %v666, %v908
        %v910 = vpop.f32.mrb[0].mxu0
        %v911 = vpop.f32.mrb[0].mxu0
        %v912 = vadd.f32 %v669, %v911
        %v913 = vpop.f32.mrb[0].mxu0
        %914 = vmatprep.mubr.bf16.mxu0 0
        %915 = vmatmul.mubr.bf16.gmra.mrb[0].mxu0 %v356
        %v916 = vpop.f32.mrb[0].mxu0
        %v917 = vadd.f32 %v674, %v916
        %v918 = vpop.f32.mrb[0].mxu0
        %v919 = vpop.f32.mrb[0].mxu0
        %v920 = vadd.f32 %v677, %v919
        %v921 = vpop.f32.mrb[0].mxu0
        %922 = vmatprep.mubr.bf16.mxu0 0
        %923 = vmatmul.mubr.bf16.gmra.mrb[0].mxu0 %v357
        %v924 = vpop.f32.mrb[0].mxu0
        %v925 = vadd.f32 %v682, %v924
        %v926 = vpop.f32.mrb[0].mxu0
        %v927 = vpop.f32.mrb[0].mxu0
        %v928 = vadd.f32 %v685, %v927
        %v929 = vpop.f32.mrb[0].mxu0
        %930 = vmatprep.mubr.bf16.mxu0 0
        %931 = vmatmul.mubr.bf16.gmra.mrb[0].mxu0 %v358
        %v932 = vpop.f32.mrb[0].mxu0
        %v933 = vadd.f32 %v690, %v932
        %v934 = vpop.f32.mrb[0].mxu0
        %v935 = vpop.f32.mrb[0].mxu0
        %v936 = vadd.f32 %v693, %v935
        %v937 = vpop.f32.mrb[0].mxu0
        %938 = vmatprep.mubr.bf16.mxu0 0
        %939 = vmatmul.mubr.bf16.gmra.mrb[0].mxu0 %v359
        %v940 = vpop.f32.mrb[0].mxu0
        %v941 = vadd.f32 %v698, %v940
        %v942 = vpop.f32.mrb[0].mxu0
        %v943 = vpop.f32.mrb[0].mxu0
        %v944 = vadd.f32 %v701, %v943
        %v945 = vpop.f32.mrb[0].mxu0
        %946 = vmatprep.mubr.bf16.mxu0 0
        %947 = vmatmul.mubr.bf16.gmra.mrb[0].mxu0 %v360
        %v948 = vpop.f32.mrb[0].mxu0
        %v949 = vadd.f32 %v706, %v948
        %v950 = vpop.f32.mrb[0].mxu0
        %v951 = vpop.f32.mrb[0].mxu0
        %v952 = vadd.f32 %v709, %v951
        %v953 = vpop.f32.mrb[0].mxu0
        %954 = vmatprep.mubr.bf16.mxu0 0
        %955 = vmatmul.mubr.bf16.gmra.mrb[0].mxu0 %v361
        %v956 = vpop.f32.mrb[0].mxu0
        %v957 = vadd.f32 %v714, %v956
        %v958 = vpop.f32.mrb[0].mxu0
        %v959 = vpop.f32.mrb[0].mxu0
        %v960 = vadd.f32 %v717, %v959
        %v961 = vpop.f32.mrb[0].mxu0
        %962 = vmatprep.mubr.bf16.mxu0 0
        %963 = vmatmul.mubr.bf16.gmra.mrb[0].mxu0 %v362
        %v964 = vpop.f32.mrb[0].mxu0
        %v965 = vadd.f32 %v722, %v964
        %v966 = vpop.f32.mrb[0].mxu0
        %v967 = vpop.f32.mrb[0].mxu0
        %v968 = vadd.f32 %v725, %v967
        %v969 = vpop.f32.mrb[0].mxu0
        %970 = vmatprep.mubr.bf16.mxu0 0
        %971 = vmatmul.mubr.bf16.gmra.mrb[0].mxu0 %v363
        %v972 = vpop.f32.mrb[0].mxu0
        %v973 = vadd.f32 %v730, %v972
        %v974 = vpop.f32.mrb[0].mxu0
        %v975 = vpop.f32.mrb[0].mxu0
        %v976 = vadd.f32 %v733, %v975
        %v977 = vpop.f32.mrb[0].mxu0
        %978 = vmatprep.mubr.bf16.mxu0 0
        %979 = vmatmul.mubr.bf16.gmra.mrb[0].mxu0 %v364
        %v980 = vpop.f32.mrb[0].mxu0
        %v981 = vadd.f32 %v738, %v980
        %v982 = vpop.f32.mrb[0].mxu0
        %v983 = vpop.f32.mrb[0].mxu0
        %v984 = vadd.f32 %v741, %v983
        %v985 = vpop.f32.mrb[0].mxu0
        %986 = vmatprep.mubr.bf16.mxu0 0
        %987 = vmatmul.mubr.bf16.gmra.mrb[0].mxu0 %v365
        %v988 = vpop.f32.mrb[0].mxu0
        %v989 = vadd.f32 %v746, %v988
        %v990 = vpop.f32.mrb[0].mxu0
        %v991 = vpop.f32.mrb[0].mxu0
        %v992 = vadd.f32 %v749, %v991
        %v993 = vpop.f32.mrb[0].mxu0
        %994 = vmatprep.mubr.bf16.mxu0 0
        %995 = vmatmul.mubr.bf16.gmra.mrb[0].mxu0 %v366
        %v996 = vpop.f32.mrb[0].mxu0
        %v997 = vadd.f32 %v754, %v996
        %v998 = vpop.f32.mrb[0].mxu0
        %v999 = vpop.f32.mrb[0].mxu0
        %v1000 = vadd.f32 %v757, %v999
        %v1001 = vpop.f32.mrb[0].mxu0
        %1002 = vdwg.mxu0
        %v1003 = vld [vmem:[%s177] sm:$0xe]
        %s1004 = scalar_lea.vmem [#allocation5], 128
        %v1005 = vld [vmem:[%s1004] sm:$0xf]
        %v1006 = vld [vmem:[%s1004 + $0x4] sm:$0xf]
        %v1007 = vld [vmem:[%s1004 + $0x8] sm:$0xf]
        %v1008 = vld [vmem:[%s1004 + $0xc] sm:$0xf]
        %v1009 = vld [vmem:[%s1004 + $0x10] sm:$0xf]
        %v1010 = vld [vmem:[%s1004 + $0x14] sm:$0xf]
        %v1011 = vld [vmem:[%s1004 + $0x18] sm:$0xf]
        %v1012 = vld [vmem:[%s1004 + $0x1c] sm:$0xf]
        %v1013 = vld [vmem:[%s1004 + $0x20] sm:$0xf]
        %v1014 = vld [vmem:[%s1004 + $0x24] sm:$0xf]
        %v1015 = vld [vmem:[%s1004 + $0x28] sm:$0xf]
        %v1016 = vld [vmem:[%s1004 + $0x2c] sm:$0xf]
        %v1017 = vld [vmem:[%s1004 + $0x30] sm:$0xf]
        %v1018 = vld [vmem:[%s1004 + $0x34] sm:$0xf]
        %v1019 = vld [vmem:[%s1004 + $0x38] sm:$0xf]
        %v1020 = vld [vmem:[%s1004 + $0x3c] sm:$0xf]
        %v1022 = vunpack.c.l.b16 %v1003
        %v1023 = vpack.c.b16 %v313, %v1022
        %vm1024 = vcmask 1046528
        %v1025 = vrot.slane %v1023, 1
        %v1026 = vrot.slane %v350, 1
        %v1027 = vsel %vm1024, %v1025, %v1026
        %v1028 = vrot.slane %v351, 1
        %v1029 = vsel %vm1024, %v1026, %v1028
        %v1030 = vrot.slane %v352, 1
        %v1031 = vsel %vm1024, %v1028, %v1030
        %v1032 = vrot.slane %v353, 1
        %v1033 = vsel %vm1024, %v1030, %v1032
        %v1034 = vrot.slane %v354, 1
        %v1035 = vsel %vm1024, %v1032, %v1034
        %v1036 = vrot.slane %v355, 1
        %v1037 = vsel %vm1024, %v1034, %v1036
        %v1038 = vrot.slane %v356, 1
        %v1039 = vsel %vm1024, %v1036, %v1038
        %v1040 = vrot.slane %v357, 1
        %v1041 = vsel %vm1024, %v1038, %v1040
        %v1042 = vrot.slane %v358, 1
        %v1043 = vsel %vm1024, %v1040, %v1042
        %v1044 = vrot.slane %v359, 1
        %v1045 = vsel %vm1024, %v1042, %v1044
        %v1046 = vrot.slane %v360, 1
        %v1047 = vsel %vm1024, %v1044, %v1046
        %v1048 = vrot.slane %v361, 1
        %v1049 = vsel %vm1024, %v1046, %v1048
        %v1050 = vrot.slane %v362, 1
        %v1051 = vsel %vm1024, %v1048, %v1050
        %v1052 = vrot.slane %v363, 1
        %v1053 = vsel %vm1024, %v1050, %v1052
        %v1054 = vrot.slane %v364, 1
        %v1055 = vsel %vm1024, %v1052, %v1054
        %v1056 = vrot.slane %v365, 1
        %v1057 = vsel %vm1024, %v1054, %v1056
        %v1058 = vrot.slane %v366, 1
        %v1059 = vsel %vm1024, %v1056, %v1058
        %v1060 = vrot.slane %v367, 1
        %v1061 = vsel %vm1024, %v1058, %v1060
        %v1096 = vunpack.c.l.b16 %v1005
        %v1097 = vunpack.c.l.b16 %v1006
        %v1098 = vunpack.c.l.b16 %v1007
        %v1099 = vunpack.c.l.b16 %v1008
        %v1100 = vunpack.c.l.b16 %v1009
        %v1101 = vunpack.c.l.b16 %v1010
        %v1102 = vunpack.c.l.b16 %v1011
        %v1103 = vunpack.c.l.b16 %v1012
        %v1104 = vunpack.c.l.b16 %v1013
        %v1105 = vunpack.c.l.b16 %v1014
        %v1106 = vunpack.c.l.b16 %v1015
        %v1107 = vunpack.c.l.b16 %v1016
        %v1108 = vunpack.c.l.b16 %v1017
        %v1109 = vunpack.c.l.b16 %v1018
        %v1110 = vunpack.c.l.b16 %v1019
        %v1111 = vunpack.c.l.b16 %v1020
        %v1112 = vpack.c.b16 %v1097, %v1096
        %v1113 = vpack.c.b16 %v1099, %v1098
        %v1114 = vpack.c.b16 %v1101, %v1100
        %v1115 = vpack.c.b16 %v1103, %v1102
        %v1116 = vpack.c.b16 %v1105, %v1104
        %v1117 = vpack.c.b16 %v1107, %v1106
        %v1118 = vpack.c.b16 %v1109, %v1108
        %v1119 = vpack.c.b16 %v1111, %v1110
        %1128 = vmatprep.subr.bf16.mxu0 0
        %1129 = vmatpush1.bf16.msra.mxu0 %v1112
        %1130 = vmatprep.subr.bf16.mxu0 0
        %1131 = vmatpush1.bf16.msra.mxu0 %v1113
        %1132 = vmatprep.subr.bf16.mxu0 0
        %1133 = vmatpush1.bf16.msra.mxu0 %v1114
        %1134 = vmatprep.subr.bf16.mxu0 0
        %1135 = vmatpush1.bf16.msra.mxu0 %v1115
        %1136 = vmatprep.subr.bf16.mxu0 0
        %1137 = vmatpush1.bf16.msra.mxu0 %v1116
        %1138 = vmatprep.subr.bf16.mxu0 0
        %1139 = vmatpush1.bf16.msra.mxu0 %v1117
        %1140 = vmatprep.subr.bf16.mxu0 0
        %1141 = vmatpush1.bf16.msra.mxu0 %v1118
        %1142 = vmatprep.subr.bf16.mxu0 0
        %1143 = vmatpush1.bf16.msra.mxu0 %v1119
        %1144 = vmatprep.subr.bf16.mxu0 0
        %1145 = vmatpush1.bf16.msra.mxu0 0
        %1146 = vmatprep.subr.bf16.mxu0 0
        %1147 = vmatpush1.bf16.msra.mxu0 0
        %1148 = vmatprep.subr.bf16.mxu0 0
        %1149 = vmatpush1.bf16.msra.mxu0 0
        %1150 = vmatprep.subr.bf16.mxu0 0
        %1151 = vmatpush1.bf16.msra.mxu0 0
        %1152 = vmatprep.subr.bf16.mxu0 0
        %1153 = vmatpush1.bf16.msra.mxu0 0
        %1154 = vmatprep.subr.bf16.mxu0 0
        %1155 = vmatpush1.bf16.msra.mxu0 0
        %1156 = vmatprep.subr.bf16.mxu0 0
        %1157 = vmatpush1.bf16.msra.mxu0 0
        %1158 = vmatprep.subr.bf16.mxu0 0
        %1159 = vmatpush1.bf16.msra.mxu0 0
        %1160 = vmatprep.mubr.bf16.mxu0 0
        %1161 = vmatmul.mubr.bf16.gmra.mrb[0].mxu0 %v1027
        %v1162 = vpop.f32.mrb[0].mxu0
        %v1163 = vadd.f32 0.0, %v1162
        %v1164 = vpop.f32.mrb[0].mxu0
        %v1165 = vpop.f32.mrb[0].mxu0
        %v1166 = vadd.f32 0.0, %v1165
        %v1167 = vpop.f32.mrb[0].mxu0
        %1168 = vmatprep.mubr.bf16.mxu0 0
        %1169 = vmatmul.mubr.bf16.gmra.mrb[0].mxu0 %v1029
        %v1170 = vpop.f32.mrb[0].mxu0
        %v1171 = vadd.f32 0.0, %v1170
        %v1172 = vpop.f32.mrb[0].mxu0
        %v1173 = vpop.f32.mrb[0].mxu0
        %v1174 = vadd.f32 0.0, %v1173
        %v1175 = vpop.f32.mrb[0].mxu0
        %1176 = vmatprep.mubr.bf16.mxu0 0
        %1177 = vmatmul.mubr.bf16.gmra.mrb[0].mxu0 %v1031
        %v1178 = vpop.f32.mrb[0].mxu0
        %v1179 = vadd.f32 0.0, %v1178
        %v1180 = vpop.f32.mrb[0].mxu0
        %v1181 = vpop.f32.mrb[0].mxu0
        %v1182 = vadd.f32 0.0, %v1181
        %v1183 = vpop.f32.mrb[0].mxu0
        %1184 = vmatprep.mubr.bf16.mxu0 0
        %1185 = vmatmul.mubr.bf16.gmra.mrb[0].mxu0 %v1033
        %v1186 = vpop.f32.mrb[0].mxu0
        %v1187 = vadd.f32 0.0, %v1186
        %v1188 = vpop.f32.mrb[0].mxu0
        %v1189 = vpop.f32.mrb[0].mxu0
        %v1190 = vadd.f32 0.0, %v1189
        %v1191 = vpop.f32.mrb[0].mxu0
        %1192 = vmatprep.mubr.bf16.mxu0 0
        %1193 = vmatmul.mubr.bf16.gmra.mrb[0].mxu0 %v1035
        %v1194 = vpop.f32.mrb[0].mxu0
        %v1195 = vadd.f32 0.0, %v1194
        %v1196 = vpop.f32.mrb[0].mxu0
        %v1197 = vpop.f32.mrb[0].mxu0
        %v1198 = vadd.f32 0.0, %v1197
        %v1199 = vpop.f32.mrb[0].mxu0
        %1200 = vmatprep.mubr.bf16.mxu0 0
        %1201 = vmatmul.mubr.bf16.gmra.mrb[0].mxu0 %v1037
        %v1202 = vpop.f32.mrb[0].mxu0
        %v1203 = vadd.f32 0.0, %v1202
        %v1204 = vpop.f32.mrb[0].mxu0
        %v1205 = vpop.f32.mrb[0].mxu0
        %v1206 = vadd.f32 0.0, %v1205
        %v1207 = vpop.f32.mrb[0].mxu0
        %1208 = vmatprep.mubr.bf16.mxu0 0
        %1209 = vmatmul.mubr.bf16.gmra.mrb[0].mxu0 %v1039
        %v1210 = vpop.f32.mrb[0].mxu0
        %v1211 = vadd.f32 0.0, %v1210
        %v1212 = vpop.f32.mrb[0].mxu0
        %v1213 = vpop.f32.mrb[0].mxu0
        %v1214 = vadd.f32 0.0, %v1213
        %v1215 = vpop.f32.mrb[0].mxu0
        %1216 = vmatprep.mubr.bf16.mxu0 0
        %1217 = vmatmul.mubr.bf16.gmra.mrb[0].mxu0 %v1041
        %v1218 = vpop.f32.mrb[0].mxu0
        %v1219 = vadd.f32 0.0, %v1218
        %v1220 = vpop.f32.mrb[0].mxu0
        %v1221 = vpop.f32.mrb[0].mxu0
        %v1222 = vadd.f32 0.0, %v1221
        %v1223 = vpop.f32.mrb[0].mxu0
        %1224 = vmatprep.mubr.bf16.mxu0 0
        %1225 = vmatmul.mubr.bf16.gmra.mrb[0].mxu0 %v1043
        %v1226 = vpop.f32.mrb[0].mxu0
        %v1227 = vadd.f32 0.0, %v1226
        %v1228 = vpop.f32.mrb[0].mxu0
        %v1229 = vpop.f32.mrb[0].mxu0
        %v1230 = vadd.f32 0.0, %v1229
        %v1231 = vpop.f32.mrb[0].mxu0
        %1232 = vmatprep.mubr.bf16.mxu0 0
        %1233 = vmatmul.mubr.bf16.gmra.mrb[0].mxu0 %v1045
        %v1234 = vpop.f32.mrb[0].mxu0
        %v1235 = vadd.f32 0.0, %v1234
        %v1236 = vpop.f32.mrb[0].mxu0
        %v1237 = vpop.f32.mrb[0].mxu0
        %v1238 = vadd.f32 0.0, %v1237
        %v1239 = vpop.f32.mrb[0].mxu0
        %1240 = vmatprep.mubr.bf16.mxu0 0
        %1241 = vmatmul.mubr.bf16.gmra.mrb[0].mxu0 %v1047
        %v1242 = vpop.f32.mrb[0].mxu0
        %v1243 = vadd.f32 0.0, %v1242
        %v1244 = vpop.f32.mrb[0].mxu0
        %v1245 = vpop.f32.mrb[0].mxu0
        %v1246 = vadd.f32 0.0, %v1245
        %v1247 = vpop.f32.mrb[0].mxu0
        %1248 = vmatprep.mubr.bf16.mxu0 0
        %1249 = vmatmul.mubr.bf16.gmra.mrb[0].mxu0 %v1049
        %v1250 = vpop.f32.mrb[0].mxu0
        %v1251 = vadd.f32 0.0, %v1250
        %v1252 = vpop.f32.mrb[0].mxu0
        %v1253 = vpop.f32.mrb[0].mxu0
        %v1254 = vadd.f32 0.0, %v1253
        %v1255 = vpop.f32.mrb[0].mxu0
        %1256 = vmatprep.mubr.bf16.mxu0 0
        %1257 = vmatmul.mubr.bf16.gmra.mrb[0].mxu0 %v1051
        %v1258 = vpop.f32.mrb[0].mxu0
        %v1259 = vadd.f32 0.0, %v1258
        %v1260 = vpop.f32.mrb[0].mxu0
        %v1261 = vpop.f32.mrb[0].mxu0
        %v1262 = vadd.f32 0.0, %v1261
        %v1263 = vpop.f32.mrb[0].mxu0
        %1264 = vmatprep.mubr.bf16.mxu0 0
        %1265 = vmatmul.mubr.bf16.gmra.mrb[0].mxu0 %v1053
        %v1266 = vpop.f32.mrb[0].mxu0
        %v1267 = vadd.f32 0.0, %v1266
        %v1268 = vpop.f32.mrb[0].mxu0
        %v1269 = vpop.f32.mrb[0].mxu0
        %v1270 = vadd.f32 0.0, %v1269
        %v1271 = vpop.f32.mrb[0].mxu0
        %1272 = vmatprep.mubr.bf16.mxu0 0
        %1273 = vmatmul.mubr.bf16.gmra.mrb[0].mxu0 %v1055
        %v1274 = vpop.f32.mrb[0].mxu0
        %v1275 = vadd.f32 0.0, %v1274
        %v1276 = vpop.f32.mrb[0].mxu0
        %v1277 = vpop.f32.mrb[0].mxu0
        %v1278 = vadd.f32 0.0, %v1277
        %v1279 = vpop.f32.mrb[0].mxu0
        %1280 = vmatprep.mubr.bf16.mxu0 0
        %1281 = vmatmul.mubr.bf16.gmra.mrb[0].mxu0 %v1057
        %v1282 = vpop.f32.mrb[0].mxu0
        %v1283 = vadd.f32 0.0, %v1282
        %v1284 = vpop.f32.mrb[0].mxu0
        %v1285 = vpop.f32.mrb[0].mxu0
        %v1286 = vadd.f32 0.0, %v1285
        %v1287 = vpop.f32.mrb[0].mxu0
        %1288 = vmatprep.mubr.bf16.mxu0 0
        %1289 = vmatmul.mubr.bf16.gmra.mrb[0].mxu0 %v1059
        %v1290 = vpop.f32.mrb[0].mxu0
        %v1291 = vadd.f32 0.0, %v1290
        %v1292 = vpop.f32.mrb[0].mxu0
        %v1293 = vpop.f32.mrb[0].mxu0
        %v1294 = vadd.f32 0.0, %v1293
        %v1295 = vpop.f32.mrb[0].mxu0
        %1296 = vmatprep.mubr.bf16.mxu0 0
        %1297 = vmatmul.mubr.bf16.gmra.mrb[0].mxu0 %v1061
        %v1298 = vpop.f32.mrb[0].mxu0
        %v1299 = vadd.f32 0.0, %v1298
        %v1300 = vpop.f32.mrb[0].mxu0
        %v1301 = vpop.f32.mrb[0].mxu0
        %v1302 = vadd.f32 0.0, %v1301
        %v1303 = vpop.f32.mrb[0].mxu0
        %1304 = vdwg.mxu0
        %v1305 = vadd.f32 %v861, %v1163
        %v1306 = vadd.f32 %v864, %v1166
        %v1307 = vadd.f32 %v869, %v1171
        %v1308 = vadd.f32 %v872, %v1174
        %v1309 = vadd.f32 %v877, %v1179
        %v1310 = vadd.f32 %v880, %v1182
        %v1311 = vadd.f32 %v885, %v1187
        %v1312 = vadd.f32 %v888, %v1190
        %v1313 = vadd.f32 %v893, %v1195
        %v1314 = vadd.f32 %v896, %v1198
        %v1315 = vadd.f32 %v901, %v1203
        %v1316 = vadd.f32 %v904, %v1206
        %v1317 = vadd.f32 %v909, %v1211
        %v1318 = vadd.f32 %v912, %v1214
        %v1319 = vadd.f32 %v917, %v1219
        %v1320 = vadd.f32 %v920, %v1222
        %v1321 = vadd.f32 %v925, %v1227
        %v1322 = vadd.f32 %v928, %v1230
        %v1323 = vadd.f32 %v933, %v1235
        %v1324 = vadd.f32 %v936, %v1238
        %v1325 = vadd.f32 %v941, %v1243
        %v1326 = vadd.f32 %v944, %v1246
        %v1327 = vadd.f32 %v949, %v1251
        %v1328 = vadd.f32 %v952, %v1254
        %v1329 = vadd.f32 %v957, %v1259
        %v1330 = vadd.f32 %v960, %v1262
        %v1331 = vadd.f32 %v965, %v1267
        %v1332 = vadd.f32 %v968, %v1270
        %v1333 = vadd.f32 %v973, %v1275
        %v1334 = vadd.f32 %v976, %v1278
        %v1335 = vadd.f32 %v981, %v1283
        %v1336 = vadd.f32 %v984, %v1286
        %v1337 = vadd.f32 %v989, %v1291
        %v1338 = vadd.f32 %v992, %v1294
        %v1339 = vadd.f32 %v997, %v1299
        %v1340 = vadd.f32 %v1000, %v1302
        %v1341 = vld [vmem:[%s177 + $0x8] sm:$0xe]
        %v1342 = vld [vmem:[%s177 + $0xc] sm:$0xf]
        %v1343 = vld [vmem:[%s177 + $0x10] sm:$0xf]
        %v1344 = vld [vmem:[%s177 + $0x14] sm:$0xf]
        %v1345 = vld [vmem:[%s177 + $0x18] sm:$0xf]
        %v1346 = vld [vmem:[%s177 + $0x1c] sm:$0xf]
        %v1347 = vld [vmem:[%s177 + $0x20] sm:$0xf]
        %v1348 = vld [vmem:[%s177 + $0x24] sm:$0xf]
        %v1349 = vld [vmem:[%s177 + $0x28] sm:$0xf]
        %v1350 = vld [vmem:[%s177 + $0x2c] sm:$0xf]
        %v1351 = vld [vmem:[%s177 + $0x30] sm:$0xf]
        %v1352 = vld [vmem:[%s177 + $0x34] sm:$0xf]
        %v1353 = vld [vmem:[%s177 + $0x38] sm:$0xf]
        %v1354 = vld [vmem:[%s177 + $0x3c] sm:$0xf]
        %v1355 = vld [vmem:[%s177 + $0x40] sm:$0xf]
        %v1356 = vld [vmem:[%s177 + $0x44] sm:$0xf]
        %v1357 = vld [vmem:[%s177 + $0x48] sm:$0xf]
        %v1358 = vld [vmem:[%s177 + $0x4c] sm:$0xf]
        %v1359 = vld [vmem:[%s177 + $0x50] sm:$0xf]
        %v1360 = vld [vmem:[%s177 + $0x54] sm:$0xf]
        %v1361 = vld [vmem:[%s177 + $0x58] sm:$0xf]
        %v1362 = vld [vmem:[%s177 + $0x5c] sm:$0xf]
        %v1363 = vld [vmem:[%s177 + $0x60] sm:$0xf]
        %v1364 = vld [vmem:[%s177 + $0x64] sm:$0xf]
        %v1365 = vld [vmem:[%s177 + $0x68] sm:$0xf]
        %v1366 = vld [vmem:[%s177 + $0x6c] sm:$0xf]
        %v1367 = vld [vmem:[%s177 + $0x70] sm:$0xf]
        %v1368 = vld [vmem:[%s177 + $0x74] sm:$0xf]
        %v1369 = vld [vmem:[%s177 + $0x78] sm:$0xf]
        %v1370 = vld [vmem:[%s177 + $0x7c] sm:$0xf]
        %v1371 = vld [vmem:[%s177 + $0x80] sm:$0xf]
        %v1372 = vld [vmem:[%s177 + $0x84] sm:$0xf]
        %v1373 = vld [vmem:[%s177 + $0x88] sm:$0xf]
        %v1374 = vld [vmem:[%s177 + $0x8c] sm:$0xf]
        %v1375 = vld [vmem:[%s177 + $0x90] sm:$0xf]
        %v1376 = vld [vmem:[%s177 + $0x94] sm:$0xf]
        %v1377 = vld [vmem:[%s177 + $0x98] sm:$0x1]
        %s1378 = scalar_lea.vmem [#allocation5], 192
        %v1379 = vld [vmem:[%s1378] sm:$0xf]
        %v1380 = vld [vmem:[%s1378 + $0x4] sm:$0xf]
        %v1381 = vld [vmem:[%s1378 + $0x8] sm:$0xf]
        %v1382 = vld [vmem:[%s1378 + $0xc] sm:$0xf]
        %v1383 = vld [vmem:[%s1378 + $0x10] sm:$0xf]
        %v1384 = vld [vmem:[%s1378 + $0x14] sm:$0xf]
        %v1385 = vld [vmem:[%s1378 + $0x18] sm:$0xf]
        %v1386 = vld [vmem:[%s1378 + $0x1c] sm:$0xf]
        %v1387 = vld [vmem:[%s1378 + $0x20] sm:$0xf]
        %v1388 = vld [vmem:[%s1378 + $0x24] sm:$0xf]
        %v1389 = vld [vmem:[%s1378 + $0x28] sm:$0xf]
        %v1390 = vld [vmem:[%s1378 + $0x2c] sm:$0xf]
        %v1391 = vld [vmem:[%s1378 + $0x30] sm:$0xf]
        %v1392 = vld [vmem:[%s1378 + $0x34] sm:$0xf]
        %v1393 = vld [vmem:[%s1378 + $0x38] sm:$0xf]
        %v1394 = vld [vmem:[%s1378 + $0x3c] sm:$0xf]
        %v1432 = vunpack.c.l.b16 %v1341
        %v1433 = vunpack.c.l.b16 %v1342
        %v1434 = vunpack.c.l.b16 %v1343
        %v1435 = vunpack.c.l.b16 %v1344
        %v1436 = vunpack.c.l.b16 %v1345
        %v1437 = vunpack.c.l.b16 %v1346
        %v1438 = vunpack.c.l.b16 %v1347
        %v1439 = vunpack.c.l.b16 %v1348
        %v1440 = vunpack.c.l.b16 %v1349
        %v1441 = vunpack.c.l.b16 %v1350
        %v1442 = vunpack.c.l.b16 %v1351
        %v1443 = vunpack.c.l.b16 %v1352
        %v1444 = vunpack.c.l.b16 %v1353
        %v1445 = vunpack.c.l.b16 %v1354
        %v1446 = vunpack.c.l.b16 %v1355
        %v1447 = vunpack.c.l.b16 %v1356
        %v1448 = vunpack.c.l.b16 %v1357
        %v1449 = vunpack.c.l.b16 %v1358
        %v1450 = vunpack.c.l.b16 %v1359
        %v1451 = vunpack.c.l.b16 %v1360
        %v1452 = vunpack.c.l.b16 %v1361
        %v1453 = vunpack.c.l.b16 %v1362
        %v1454 = vunpack.c.l.b16 %v1363
        %v1455 = vunpack.c.l.b16 %v1364
        %v1456 = vunpack.c.l.b16 %v1365
        %v1457 = vunpack.c.l.b16 %v1366
        %v1458 = vunpack.c.l.b16 %v1367
        %v1459 = vunpack.c.l.b16 %v1368
        %v1460 = vunpack.c.l.b16 %v1369
        %v1461 = vunpack.c.l.b16 %v1370
        %v1462 = vunpack.c.l.b16 %v1371
        %v1463 = vunpack.c.l.b16 %v1372
        %v1464 = vunpack.c.l.b16 %v1373
        %v1465 = vunpack.c.l.b16 %v1374
        %v1466 = vunpack.c.l.b16 %v1375
        %v1467 = vunpack.c.l.b16 %v1376
        %v1468 = vunpack.c.l.b16 %v1377
        %v1469 = vpack.c.b16 %v1433, %v1432
        %v1470 = vpack.c.b16 %v1435, %v1434
        %v1471 = vpack.c.b16 %v1437, %v1436
        %v1472 = vpack.c.b16 %v1439, %v1438
        %v1473 = vpack.c.b16 %v1441, %v1440
        %v1474 = vpack.c.b16 %v1443, %v1442
        %v1475 = vpack.c.b16 %v1445, %v1444
        %v1476 = vpack.c.b16 %v1447, %v1446
        %v1477 = vpack.c.b16 %v1449, %v1448
        %v1478 = vpack.c.b16 %v1451, %v1450
        %v1479 = vpack.c.b16 %v1453, %v1452
        %v1480 = vpack.c.b16 %v1455, %v1454
        %v1481 = vpack.c.b16 %v1457, %v1456
        %v1482 = vpack.c.b16 %v1459, %v1458
        %v1483 = vpack.c.b16 %v1461, %v1460
        %v1484 = vpack.c.b16 %v1463, %v1462
        %v1485 = vpack.c.b16 %v1465, %v1464
        %v1486 = vpack.c.b16 %v1467, %v1466
        %v1487 = vpack.c.b16 %v1468, %v1468
        %v1488 = vrot.slane %v1469, 1
        %v1489 = vrot.slane %v1470, 1
        %v1490 = vsel %vm1024, %v1488, %v1489
        %v1491 = vrot.slane %v1471, 1
        %v1492 = vsel %vm1024, %v1489, %v1491
        %v1493 = vrot.slane %v1472, 1
        %v1494 = vsel %vm1024, %v1491, %v1493
        %v1495 = vrot.slane %v1473, 1
        %v1496 = vsel %vm1024, %v1493, %v1495
        %v1497 = vrot.slane %v1474, 1
        %v1498 = vsel %vm1024, %v1495, %v1497
        %v1499 = vrot.slane %v1475, 1
        %v1500 = vsel %vm1024, %v1497, %v1499
        %v1501 = vrot.slane %v1476, 1
        %v1502 = vsel %vm1024, %v1499, %v1501
        %v1503 = vrot.slane %v1477, 1
        %v1504 = vsel %vm1024, %v1501, %v1503
        %v1505 = vrot.slane %v1478, 1
        %v1506 = vsel %vm1024, %v1503, %v1505
        %v1507 = vrot.slane %v1479, 1
        %v1508 = vsel %vm1024, %v1505, %v1507
        %v1509 = vrot.slane %v1480, 1
        %v1510 = vsel %vm1024, %v1507, %v1509
        %v1511 = vrot.slane %v1481, 1
        %v1512 = vsel %vm1024, %v1509, %v1511
        %v1513 = vrot.slane %v1482, 1
        %v1514 = vsel %vm1024, %v1511, %v1513
        %v1515 = vrot.slane %v1483, 1
        %v1516 = vsel %vm1024, %v1513, %v1515
        %v1517 = vrot.slane %v1484, 1
        %v1518 = vsel %vm1024, %v1515, %v1517
        %v1519 = vrot.slane %v1485, 1
        %v1520 = vsel %vm1024, %v1517, %v1519
        %v1521 = vrot.slane %v1486, 1
        %v1522 = vsel %vm1024, %v1519, %v1521
        %v1523 = vrot.slane %v1487, 1
        %v1524 = vsel %vm1024, %v1521, %v1523
        %v1559 = vunpack.c.l.b16 %v1379
        %v1560 = vunpack.c.l.b16 %v1380
        %v1561 = vunpack.c.l.b16 %v1381
        %v1562 = vunpack.c.l.b16 %v1382
        %v1563 = vunpack.c.l.b16 %v1383
        %v1564 = vunpack.c.l.b16 %v1384
        %v1565 = vunpack.c.l.b16 %v1385
        %v1566 = vunpack.c.l.b16 %v1386
        %v1567 = vunpack.c.l.b16 %v1387
        %v1568 = vunpack.c.l.b16 %v1388
        %v1569 = vunpack.c.l.b16 %v1389
        %v1570 = vunpack.c.l.b16 %v1390
        %v1571 = vunpack.c.l.b16 %v1391
        %v1572 = vunpack.c.l.b16 %v1392
        %v1573 = vunpack.c.l.b16 %v1393
        %v1574 = vunpack.c.l.b16 %v1394
        %v1575 = vpack.c.b16 %v1560, %v1559
        %v1576 = vpack.c.b16 %v1562, %v1561
        %v1577 = vpack.c.b16 %v1564, %v1563
        %v1578 = vpack.c.b16 %v1566, %v1565
        %v1579 = vpack.c.b16 %v1568, %v1567
        %v1580 = vpack.c.b16 %v1570, %v1569
        %v1581 = vpack.c.b16 %v1572, %v1571
        %v1582 = vpack.c.b16 %v1574, %v1573
        %1591 = vmatprep.subr.bf16.mxu0 0
        %1592 = vmatpush1.bf16.msra.mxu0 %v1575
        %1593 = vmatprep.subr.bf16.mxu0 0
        %1594 = vmatpush1.bf16.msra.mxu0 %v1576
        %1595 = vmatprep.subr.bf16.mxu0 0
        %1596 = vmatpush1.bf16.msra.mxu0 %v1577
        %1597 = vmatprep.subr.bf16.mxu0 0
        %1598 = vmatpush1.bf16.msra.mxu0 %v1578
        %1599 = vmatprep.subr.bf16.mxu0 0
        %1600 = vmatpush1.bf16.msra.mxu0 %v1579
        %1601 = vmatprep.subr.bf16.mxu0 0
        %1602 = vmatpush1.bf16.msra.mxu0 %v1580
        %1603 = vmatprep.subr.bf16.mxu0 0
        %1604 = vmatpush1.bf16.msra.mxu0 %v1581
        %1605 = vmatprep.subr.bf16.mxu0 0
        %1606 = vmatpush1.bf16.msra.mxu0 %v1582
        %1607 = vmatprep.subr.bf16.mxu0 0
        %1608 = vmatpush1.bf16.msra.mxu0 0
        %1609 = vmatprep.subr.bf16.mxu0 0
        %1610 = vmatpush1.bf16.msra.mxu0 0
        %1611 = vmatprep.subr.bf16.mxu0 0
        %1612 = vmatpush1.bf16.msra.mxu0 0
        %1613 = vmatprep.subr.bf16.mxu0 0
        %1614 = vmatpush1.bf16.msra.mxu0 0
        %1615 = vmatprep.subr.bf16.mxu0 0
        %1616 = vmatpush1.bf16.msra.mxu0 0
        %1617 = vmatprep.subr.bf16.mxu0 0
        %1618 = vmatpush1.bf16.msra.mxu0 0
        %1619 = vmatprep.subr.bf16.mxu0 0
        %1620 = vmatpush1.bf16.msra.mxu0 0
        %1621 = vmatprep.subr.bf16.mxu0 0
        %1622 = vmatpush1.bf16.msra.mxu0 0
        %1623 = vmatprep.mubr.bf16.mxu0 0
        %1624 = vmatmul.mubr.bf16.gmra.mrb[0].mxu0 %v1490
        %v1625 = vpop.f32.mrb[0].mxu0
        %v1626 = vadd.f32 0.0, %v1625
        %v1627 = vpop.f32.mrb[0].mxu0
        %v1628 = vpop.f32.mrb[0].mxu0
        %v1629 = vadd.f32 0.0, %v1628
        %v1630 = vpop.f32.mrb[0].mxu0
        %1631 = vmatprep.mubr.bf16.mxu0 0
        %1632 = vmatmul.mubr.bf16.gmra.mrb[0].mxu0 %v1492
        %v1633 = vpop.f32.mrb[0].mxu0
        %v1634 = vadd.f32 0.0, %v1633
        %v1635 = vpop.f32.mrb[0].mxu0
        %v1636 = vpop.f32.mrb[0].mxu0
        %v1637 = vadd.f32 0.0, %v1636
        %v1638 = vpop.f32.mrb[0].mxu0
        %1639 = vmatprep.mubr.bf16.mxu0 0
        %1640 = vmatmul.mubr.bf16.gmra.mrb[0].mxu0 %v1494
        %v1641 = vpop.f32.mrb[0].mxu0
        %v1642 = vadd.f32 0.0, %v1641
        %v1643 = vpop.f32.mrb[0].mxu0
        %v1644 = vpop.f32.mrb[0].mxu0
        %v1645 = vadd.f32 0.0, %v1644
        %v1646 = vpop.f32.mrb[0].mxu0
        %1647 = vmatprep.mubr.bf16.mxu0 0
        %1648 = vmatmul.mubr.bf16.gmra.mrb[0].mxu0 %v1496
        %v1649 = vpop.f32.mrb[0].mxu0
        %v1650 = vadd.f32 0.0, %v1649
        %v1651 = vpop.f32.mrb[0].mxu0
        %v1652 = vpop.f32.mrb[0].mxu0
        %v1653 = vadd.f32 0.0, %v1652
        %v1654 = vpop.f32.mrb[0].mxu0
        %1655 = vmatprep.mubr.bf16.mxu0 0
        %1656 = vmatmul.mubr.bf16.gmra.mrb[0].mxu0 %v1498
        %v1657 = vpop.f32.mrb[0].mxu0
        %v1658 = vadd.f32 0.0, %v1657
        %v1659 = vpop.f32.mrb[0].mxu0
        %v1660 = vpop.f32.mrb[0].mxu0
        %v1661 = vadd.f32 0.0, %v1660
        %v1662 = vpop.f32.mrb[0].mxu0
        %1663 = vmatprep.mubr.bf16.mxu0 0
        %1664 = vmatmul.mubr.bf16.gmra.mrb[0].mxu0 %v1500
        %v1665 = vpop.f32.mrb[0].mxu0
        %v1666 = vadd.f32 0.0, %v1665
        %v1667 = vpop.f32.mrb[0].mxu0
        %v1668 = vpop.f32.mrb[0].mxu0
        %v1669 = vadd.f32 0.0, %v1668
        %v1670 = vpop.f32.mrb[0].mxu0
        %1671 = vmatprep.mubr.bf16.mxu0 0
        %1672 = vmatmul.mubr.bf16.gmra.mrb[0].mxu0 %v1502
        %v1673 = vpop.f32.mrb[0].mxu0
        %v1674 = vadd.f32 0.0, %v1673
        %v1675 = vpop.f32.mrb[0].mxu0
        %v1676 = vpop.f32.mrb[0].mxu0
        %v1677 = vadd.f32 0.0, %v1676
        %v1678 = vpop.f32.mrb[0].mxu0
        %1679 = vmatprep.mubr.bf16.mxu0 0
        %1680 = vmatmul.mubr.bf16.gmra.mrb[0].mxu0 %v1504
        %v1681 = vpop.f32.mrb[0].mxu0
        %v1682 = vadd.f32 0.0, %v1681
        %v1683 = vpop.f32.mrb[0].mxu0
        %v1684 = vpop.f32.mrb[0].mxu0
        %v1685 = vadd.f32 0.0, %v1684
        %v1686 = vpop.f32.mrb[0].mxu0
        %1687 = vmatprep.mubr.bf16.mxu0 0
        %1688 = vmatmul.mubr.bf16.gmra.mrb[0].mxu0 %v1506
        %v1689 = vpop.f32.mrb[0].mxu0
        %v1690 = vadd.f32 0.0, %v1689
        %v1691 = vpop.f32.mrb[0].mxu0
        %v1692 = vpop.f32.mrb[0].mxu0
        %v1693 = vadd.f32 0.0, %v1692
        %v1694 = vpop.f32.mrb[0].mxu0
        %1695 = vmatprep.mubr.bf16.mxu0 0
        %1696 = vmatmul.mubr.bf16.gmra.mrb[0].mxu0 %v1508
        %v1697 = vpop.f32.mrb[0].mxu0
        %v1698 = vadd.f32 0.0, %v1697
        %v1699 = vpop.f32.mrb[0].mxu0
        %v1700 = vpop.f32.mrb[0].mxu0
        %v1701 = vadd.f32 0.0, %v1700
        %v1702 = vpop.f32.mrb[0].mxu0
        %1703 = vmatprep.mubr.bf16.mxu0 0
        %1704 = vmatmul.mubr.bf16.gmra.mrb[0].mxu0 %v1510
        %v1705 = vpop.f32.mrb[0].mxu0
        %v1706 = vadd.f32 0.0, %v1705
        %v1707 = vpop.f32.mrb[0].mxu0
        %v1708 = vpop.f32.mrb[0].mxu0
        %v1709 = vadd.f32 0.0, %v1708
        %v1710 = vpop.f32.mrb[0].mxu0
        %1711 = vmatprep.mubr.bf16.mxu0 0
        %1712 = vmatmul.mubr.bf16.gmra.mrb[0].mxu0 %v1512
        %v1713 = vpop.f32.mrb[0].mxu0
        %v1714 = vadd.f32 0.0, %v1713
        %v1715 = vpop.f32.mrb[0].mxu0
        %v1716 = vpop.f32.mrb[0].mxu0
        %v1717 = vadd.f32 0.0, %v1716
        %v1718 = vpop.f32.mrb[0].mxu0
        %1719 = vmatprep.mubr.bf16.mxu0 0
        %1720 = vmatmul.mubr.bf16.gmra.mrb[0].mxu0 %v1514
        %v1721 = vpop.f32.mrb[0].mxu0
        %v1722 = vadd.f32 0.0, %v1721
        %v1723 = vpop.f32.mrb[0].mxu0
        %v1724 = vpop.f32.mrb[0].mxu0
        %v1725 = vadd.f32 0.0, %v1724
        %v1726 = vpop.f32.mrb[0].mxu0
        %1727 = vmatprep.mubr.bf16.mxu0 0
        %1728 = vmatmul.mubr.bf16.gmra.mrb[0].mxu0 %v1516
        %v1729 = vpop.f32.mrb[0].mxu0
        %v1730 = vadd.f32 0.0, %v1729
        %v1731 = vpop.f32.mrb[0].mxu0
        %v1732 = vpop.f32.mrb[0].mxu0
        %v1733 = vadd.f32 0.0, %v1732
        %v1734 = vpop.f32.mrb[0].mxu0
        %1735 = vmatprep.mubr.bf16.mxu0 0
        %1736 = vmatmul.mubr.bf16.gmra.mrb[0].mxu0 %v1518
        %v1737 = vpop.f32.mrb[0].mxu0
        %v1738 = vadd.f32 0.0, %v1737
        %v1739 = vpop.f32.mrb[0].mxu0
        %v1740 = vpop.f32.mrb[0].mxu0
        %v1741 = vadd.f32 0.0, %v1740
        %v1742 = vpop.f32.mrb[0].mxu0
        %1743 = vmatprep.mubr.bf16.mxu0 0
        %1744 = vmatmul.mubr.bf16.gmra.mrb[0].mxu0 %v1520
        %v1745 = vpop.f32.mrb[0].mxu0
        %v1746 = vadd.f32 0.0, %v1745
        %v1747 = vpop.f32.mrb[0].mxu0
        %v1748 = vpop.f32.mrb[0].mxu0
        %v1749 = vadd.f32 0.0, %v1748
        %v1750 = vpop.f32.mrb[0].mxu0
        %1751 = vmatprep.mubr.bf16.mxu0 0
        %1752 = vmatmul.mubr.bf16.gmra.mrb[0].mxu0 %v1522
        %v1753 = vpop.f32.mrb[0].mxu0
        %v1754 = vadd.f32 0.0, %v1753
        %v1755 = vpop.f32.mrb[0].mxu0
        %v1756 = vpop.f32.mrb[0].mxu0
        %v1757 = vadd.f32 0.0, %v1756
        %v1758 = vpop.f32.mrb[0].mxu0
        %1759 = vmatprep.mubr.bf16.mxu0 0
        %1760 = vmatmul.mubr.bf16.gmra.mrb[0].mxu0 %v1524
        %v1761 = vpop.f32.mrb[0].mxu0
        %v1762 = vadd.f32 0.0, %v1761
        %v1763 = vpop.f32.mrb[0].mxu0
        %v1764 = vpop.f32.mrb[0].mxu0
        %v1765 = vadd.f32 0.0, %v1764
        %v1766 = vpop.f32.mrb[0].mxu0
        %1767 = vdwg.mxu0
        %v1768 = vadd.f32 %v1305, %v1626
        %v1769 = vadd.f32 %v1306, %v1629
        %v1770 = vadd.f32 %v1307, %v1634
        %v1771 = vadd.f32 %v1308, %v1637
        %v1772 = vadd.f32 %v1309, %v1642
        %v1773 = vadd.f32 %v1310, %v1645
        %v1774 = vadd.f32 %v1311, %v1650
        %v1775 = vadd.f32 %v1312, %v1653
        %v1776 = vadd.f32 %v1313, %v1658
        %v1777 = vadd.f32 %v1314, %v1661
        %v1778 = vadd.f32 %v1315, %v1666
        %v1779 = vadd.f32 %v1316, %v1669
        %v1780 = vadd.f32 %v1317, %v1674
        %v1781 = vadd.f32 %v1318, %v1677
        %v1782 = vadd.f32 %v1319, %v1682
        %v1783 = vadd.f32 %v1320, %v1685
        %v1784 = vadd.f32 %v1321, %v1690
        %v1785 = vadd.f32 %v1322, %v1693
        %v1786 = vadd.f32 %v1323, %v1698
        %v1787 = vadd.f32 %v1324, %v1701
        %v1788 = vadd.f32 %v1325, %v1706
        %v1789 = vadd.f32 %v1326, %v1709
        %v1790 = vadd.f32 %v1327, %v1714
        %v1791 = vadd.f32 %v1328, %v1717
        %v1792 = vadd.f32 %v1329, %v1722
        %v1793 = vadd.f32 %v1330, %v1725
        %v1794 = vadd.f32 %v1331, %v1730
        %v1795 = vadd.f32 %v1332, %v1733
        %v1796 = vadd.f32 %v1333, %v1738
        %v1797 = vadd.f32 %v1334, %v1741
        %v1798 = vadd.f32 %v1335, %v1746
        %v1799 = vadd.f32 %v1336, %v1749
        %v1800 = vadd.f32 %v1337, %v1754
        %v1801 = vadd.f32 %v1338, %v1757
        %v1802 = vadd.f32 %v1339, %v1762
        %v1803 = vadd.f32 %v1340, %v1765
        %v1804 = vld [vmem:[%s177 + $0x98] sm:$0x3]
        %s1805 = scalar_lea.vmem [#allocation5], 256
        %v1806 = vld [vmem:[%s1805] sm:$0xf]
        %v1807 = vld [vmem:[%s1805 + $0x4] sm:$0xf]
        %v1808 = vld [vmem:[%s1805 + $0x8] sm:$0xf]
        %v1809 = vld [vmem:[%s1805 + $0xc] sm:$0xf]
        %v1810 = vld [vmem:[%s1805 + $0x10] sm:$0xf]
        %v1811 = vld [vmem:[%s1805 + $0x14] sm:$0xf]
        %v1812 = vld [vmem:[%s1805 + $0x18] sm:$0xf]
        %v1813 = vld [vmem:[%s1805 + $0x1c] sm:$0xf]
        %v1814 = vld [vmem:[%s1805 + $0x20] sm:$0xf]
        %v1815 = vld [vmem:[%s1805 + $0x24] sm:$0xf]
        %v1816 = vld [vmem:[%s1805 + $0x28] sm:$0xf]
        %v1817 = vld [vmem:[%s1805 + $0x2c] sm:$0xf]
        %v1818 = vld [vmem:[%s1805 + $0x30] sm:$0xf]
        %v1819 = vld [vmem:[%s1805 + $0x34] sm:$0xf]
        %v1820 = vld [vmem:[%s1805 + $0x38] sm:$0xf]
        %v1821 = vld [vmem:[%s1805 + $0x3c] sm:$0xf]
        %v1823 = vunpack.c.l.b16 %v1804
        %v1824 = vpack.c.b16 %v1823, %v1823
        %vm1825 = vsmask.f32 6400
        %v1827 = vshrl.u32 %v1469, 16
        %v1829 = vrot.slane %v1827, 1
        %v1830 = vshll.u32 %v1469, 16
        %v1832 = vrot.slane %v1830, 2
        %v1833 = vor.u32 %v1829, %v1832
        %v1835 = vshrl.u32 %v1470, 16
        %v1837 = vrot.slane %v1835, 1
        %v1838 = vshll.u32 %v1470, 16
        %v1840 = vrot.slane %v1838, 2
        %v1841 = vor.u32 %v1837, %v1840
        %v1842 = vsel %vm1825, %v1833, %v1841
        %v1844 = vshrl.u32 %v1471, 16
        %v1846 = vrot.slane %v1844, 1
        %v1847 = vshll.u32 %v1471, 16
        %v1849 = vrot.slane %v1847, 2
        %v1850 = vor.u32 %v1846, %v1849
        %v1851 = vsel %vm1825, %v1841, %v1850
        %v1853 = vshrl.u32 %v1472, 16
        %v1855 = vrot.slane %v1853, 1
        %v1856 = vshll.u32 %v1472, 16
        %v1858 = vrot.slane %v1856, 2
        %v1859 = vor.u32 %v1855, %v1858
        %v1860 = vsel %vm1825, %v1850, %v1859
        %v1862 = vshrl.u32 %v1473, 16
        %v1864 = vrot.slane %v1862, 1
        %v1865 = vshll.u32 %v1473, 16
        %v1867 = vrot.slane %v1865, 2
        %v1868 = vor.u32 %v1864, %v1867
        %v1869 = vsel %vm1825, %v1859, %v1868
        %v1871 = vshrl.u32 %v1474, 16
        %v1873 = vrot.slane %v1871, 1
        %v1874 = vshll.u32 %v1474, 16
        %v1876 = vrot.slane %v1874, 2
        %v1877 = vor.u32 %v1873, %v1876
        %v1878 = vsel %vm1825, %v1868, %v1877
        %v1880 = vshrl.u32 %v1475, 16
        %v1882 = vrot.slane %v1880, 1
        %v1883 = vshll.u32 %v1475, 16
        %v1885 = vrot.slane %v1883, 2
        %v1886 = vor.u32 %v1882, %v1885
        %v1887 = vsel %vm1825, %v1877, %v1886
        %v1889 = vshrl.u32 %v1476, 16
        %v1891 = vrot.slane %v1889, 1
        %v1892 = vshll.u32 %v1476, 16
        %v1894 = vrot.slane %v1892, 2
        %v1895 = vor.u32 %v1891, %v1894
        %v1896 = vsel %vm1825, %v1886, %v1895
        %v1898 = vshrl.u32 %v1477, 16
        %v1900 = vrot.slane %v1898, 1
        %v1901 = vshll.u32 %v1477, 16
        %v1903 = vrot.slane %v1901, 2
        %v1904 = vor.u32 %v1900, %v1903
        %v1905 = vsel %vm1825, %v1895, %v1904
        %v1907 = vshrl.u32 %v1478, 16
        %v1909 = vrot.slane %v1907, 1
        %v1910 = vshll.u32 %v1478, 16
        %v1912 = vrot.slane %v1910, 2
        %v1913 = vor.u32 %v1909, %v1912
        %v1914 = vsel %vm1825, %v1904, %v1913
        %v1916 = vshrl.u32 %v1479, 16
        %v1918 = vrot.slane %v1916, 1
        %v1919 = vshll.u32 %v1479, 16
        %v1921 = vrot.slane %v1919, 2
        %v1922 = vor.u32 %v1918, %v1921
        %v1923 = vsel %vm1825, %v1913, %v1922
        %v1925 = vshrl.u32 %v1480, 16
        %v1927 = vrot.slane %v1925, 1
        %v1928 = vshll.u32 %v1480, 16
        %v1930 = vrot.slane %v1928, 2
        %v1931 = vor.u32 %v1927, %v1930
        %v1932 = vsel %vm1825, %v1922, %v1931
        %v1934 = vshrl.u32 %v1481, 16
        %v1936 = vrot.slane %v1934, 1
        %v1937 = vshll.u32 %v1481, 16
        %v1939 = vrot.slane %v1937, 2
        %v1940 = vor.u32 %v1936, %v1939
        %v1941 = vsel %vm1825, %v1931, %v1940
        %v1943 = vshrl.u32 %v1482, 16
        %v1945 = vrot.slane %v1943, 1
        %v1946 = vshll.u32 %v1482, 16
        %v1948 = vrot.slane %v1946, 2
        %v1949 = vor.u32 %v1945, %v1948
        %v1950 = vsel %vm1825, %v1940, %v1949
        %v1952 = vshrl.u32 %v1483, 16
        %v1954 = vrot.slane %v1952, 1
        %v1955 = vshll.u32 %v1483, 16
        %v1957 = vrot.slane %v1955, 2
        %v1958 = vor.u32 %v1954, %v1957
        %v1959 = vsel %vm1825, %v1949, %v1958
        %v1961 = vshrl.u32 %v1484, 16
        %v1963 = vrot.slane %v1961, 1
        %v1964 = vshll.u32 %v1484, 16
        %v1966 = vrot.slane %v1964, 2
        %v1967 = vor.u32 %v1963, %v1966
        %v1968 = vsel %vm1825, %v1958, %v1967
        %v1970 = vshrl.u32 %v1485, 16
        %v1972 = vrot.slane %v1970, 1
        %v1973 = vshll.u32 %v1485, 16
        %v1975 = vrot.slane %v1973, 2
        %v1976 = vor.u32 %v1972, %v1975
        %v1977 = vsel %vm1825, %v1967, %v1976
        %v1979 = vshrl.u32 %v1486, 16
        %v1981 = vrot.slane %v1979, 1
        %v1982 = vshll.u32 %v1486, 16
        %v1984 = vrot.slane %v1982, 2
        %v1985 = vor.u32 %v1981, %v1984
        %v1986 = vsel %vm1825, %v1976, %v1985
        %v1988 = vshrl.u32 %v1824, 16
        %v1990 = vrot.slane %v1988, 1
        %v1991 = vshll.u32 %v1824, 16
        %v1993 = vrot.slane %v1991, 2
        %v1994 = vor.u32 %v1990, %v1993
        %v1995 = vsel %vm1825, %v1985, %v1994
        %v2030 = vunpack.c.l.b16 %v1806
        %v2031 = vunpack.c.l.b16 %v1807
        %v2032 = vunpack.c.l.b16 %v1808
        %v2033 = vunpack.c.l.b16 %v1809
        %v2034 = vunpack.c.l.b16 %v1810
        %v2035 = vunpack.c.l.b16 %v1811
        %v2036 = vunpack.c.l.b16 %v1812
        %v2037 = vunpack.c.l.b16 %v1813
        %v2038 = vunpack.c.l.b16 %v1814
        %v2039 = vunpack.c.l.b16 %v1815
        %v2040 = vunpack.c.l.b16 %v1816
        %v2041 = vunpack.c.l.b16 %v1817
        %v2042 = vunpack.c.l.b16 %v1818
        %v2043 = vunpack.c.l.b16 %v1819
        %v2044 = vunpack.c.l.b16 %v1820
        %v2045 = vunpack.c.l.b16 %v1821
        %v2046 = vpack.c.b16 %v2031, %v2030
        %v2047 = vpack.c.b16 %v2033, %v2032
        %v2048 = vpack.c.b16 %v2035, %v2034
        %v2049 = vpack.c.b16 %v2037, %v2036
        %v2050 = vpack.c.b16 %v2039, %v2038
        %v2051 = vpack.c.b16 %v2041, %v2040
        %v2052 = vpack.c.b16 %v2043, %v2042
        %v2053 = vpack.c.b16 %v2045, %v2044
        %2062 = vmatprep.subr.bf16.mxu0 0
        %2063 = vmatpush1.bf16.msra.mxu0 %v2046
        %2064 = vmatprep.subr.bf16.mxu0 0
        %2065 = vmatpush1.bf16.msra.mxu0 %v2047
        %2066 = vmatprep.subr.bf16.mxu0 0
        %2067 = vmatpush1.bf16.msra.mxu0 %v2048
        %2068 = vmatprep.subr.bf16.mxu0 0
        %2069 = vmatpush1.bf16.msra.mxu0 %v2049
        %2070 = vmatprep.subr.bf16.mxu0 0
        %2071 = vmatpush1.bf16.msra.mxu0 %v2050
        %2072 = vmatprep.subr.bf16.mxu0 0
        %2073 = vmatpush1.bf16.msra.mxu0 %v2051
        %2074 = vmatprep.subr.bf16.mxu0 0
        %2075 = vmatpush1.bf16.msra.mxu0 %v2052
        %2076 = vmatprep.subr.bf16.mxu0 0
        %2077 = vmatpush1.bf16.msra.mxu0 %v2053
        %2078 = vmatprep.subr.bf16.mxu0 0
        %2079 = vmatpush1.bf16.msra.mxu0 0
        %2080 = vmatprep.subr.bf16.mxu0 0
        %2081 = vmatpush1.bf16.msra.mxu0 0
        %2082 = vmatprep.subr.bf16.mxu0 0
        %2083 = vmatpush1.bf16.msra.mxu0 0
        %2084 = vmatprep.subr.bf16.mxu0 0
        %2085 = vmatpush1.bf16.msra.mxu0 0
        %2086 = vmatprep.subr.bf16.mxu0 0
        %2087 = vmatpush1.bf16.msra.mxu0 0
        %2088 = vmatprep.subr.bf16.mxu0 0
        %2089 = vmatpush1.bf16.msra.mxu0 0
        %2090 = vmatprep.subr.bf16.mxu0 0
        %2091 = vmatpush1.bf16.msra.mxu0 0
        %2092 = vmatprep.subr.bf16.mxu0 0
        %2093 = vmatpush1.bf16.msra.mxu0 0
        %2094 = vmatprep.mubr.bf16.mxu0 0
        %2095 = vmatmul.mubr.bf16.gmra.mrb[0].mxu0 %v1842
        %v2096 = vpop.f32.mrb[0].mxu0
        %v2097 = vadd.f32 0.0, %v2096
        %v2098 = vpop.f32.mrb[0].mxu0
        %v2099 = vpop.f32.mrb[0].mxu0
        %v2100 = vadd.f32 0.0, %v2099
        %v2101 = vpop.f32.mrb[0].mxu0
        %2102 = vmatprep.mubr.bf16.mxu0 0
        %2103 = vmatmul.mubr.bf16.gmra.mrb[0].mxu0 %v1851
        %v2104 = vpop.f32.mrb[0].mxu0
        %v2105 = vadd.f32 0.0, %v2104
        %v2106 = vpop.f32.mrb[0].mxu0
        %v2107 = vpop.f32.mrb[0].mxu0
        %v2108 = vadd.f32 0.0, %v2107
        %v2109 = vpop.f32.mrb[0].mxu0
        %2110 = vmatprep.mubr.bf16.mxu0 0
        %2111 = vmatmul.mubr.bf16.gmra.mrb[0].mxu0 %v1860
        %v2112 = vpop.f32.mrb[0].mxu0
        %v2113 = vadd.f32 0.0, %v2112
        %v2114 = vpop.f32.mrb[0].mxu0
        %v2115 = vpop.f32.mrb[0].mxu0
        %v2116 = vadd.f32 0.0, %v2115
        %v2117 = vpop.f32.mrb[0].mxu0
        %2118 = vmatprep.mubr.bf16.mxu0 0
        %2119 = vmatmul.mubr.bf16.gmra.mrb[0].mxu0 %v1869
        %v2120 = vpop.f32.mrb[0].mxu0
        %v2121 = vadd.f32 0.0, %v2120
        %v2122 = vpop.f32.mrb[0].mxu0
        %v2123 = vpop.f32.mrb[0].mxu0
        %v2124 = vadd.f32 0.0, %v2123
        %v2125 = vpop.f32.mrb[0].mxu0
        %2126 = vmatprep.mubr.bf16.mxu0 0
        %2127 = vmatmul.mubr.bf16.gmra.mrb[0].mxu0 %v1878
        %v2128 = vpop.f32.mrb[0].mxu0
        %v2129 = vadd.f32 0.0, %v2128
        %v2130 = vpop.f32.mrb[0].mxu0
        %v2131 = vpop.f32.mrb[0].mxu0
        %v2132 = vadd.f32 0.0, %v2131
        %v2133 = vpop.f32.mrb[0].mxu0
        %2134 = vmatprep.mubr.bf16.mxu0 0
        %2135 = vmatmul.mubr.bf16.gmra.mrb[0].mxu0 %v1887
        %v2136 = vpop.f32.mrb[0].mxu0
        %v2137 = vadd.f32 0.0, %v2136
        %v2138 = vpop.f32.mrb[0].mxu0
        %v2139 = vpop.f32.mrb[0].mxu0
        %v2140 = vadd.f32 0.0, %v2139
        %v2141 = vpop.f32.mrb[0].mxu0
        %2142 = vmatprep.mubr.bf16.mxu0 0
        %2143 = vmatmul.mubr.bf16.gmra.mrb[0].mxu0 %v1896
        %v2144 = vpop.f32.mrb[0].mxu0
        %v2145 = vadd.f32 0.0, %v2144
        %v2146 = vpop.f32.mrb[0].mxu0
        %v2147 = vpop.f32.mrb[0].mxu0
        %v2148 = vadd.f32 0.0, %v2147
        %v2149 = vpop.f32.mrb[0].mxu0
        %2150 = vmatprep.mubr.bf16.mxu0 0
        %2151 = vmatmul.mubr.bf16.gmra.mrb[0].mxu0 %v1905
        %v2152 = vpop.f32.mrb[0].mxu0
        %v2153 = vadd.f32 0.0, %v2152
        %v2154 = vpop.f32.mrb[0].mxu0
        %v2155 = vpop.f32.mrb[0].mxu0
        %v2156 = vadd.f32 0.0, %v2155
        %v2157 = vpop.f32.mrb[0].mxu0
        %2158 = vmatprep.mubr.bf16.mxu0 0
        %2159 = vmatmul.mubr.bf16.gmra.mrb[0].mxu0 %v1914
        %v2160 = vpop.f32.mrb[0].mxu0
        %v2161 = vadd.f32 0.0, %v2160
        %v2162 = vpop.f32.mrb[0].mxu0
        %v2163 = vpop.f32.mrb[0].mxu0
        %v2164 = vadd.f32 0.0, %v2163
        %v2165 = vpop.f32.mrb[0].mxu0
        %2166 = vmatprep.mubr.bf16.mxu0 0
        %2167 = vmatmul.mubr.bf16.gmra.mrb[0].mxu0 %v1923
        %v2168 = vpop.f32.mrb[0].mxu0
        %v2169 = vadd.f32 0.0, %v2168
        %v2170 = vpop.f32.mrb[0].mxu0
        %v2171 = vpop.f32.mrb[0].mxu0
        %v2172 = vadd.f32 0.0, %v2171
        %v2173 = vpop.f32.mrb[0].mxu0
        %2174 = vmatprep.mubr.bf16.mxu0 0
        %2175 = vmatmul.mubr.bf16.gmra.mrb[0].mxu0 %v1932
        %v2176 = vpop.f32.mrb[0].mxu0
        %v2177 = vadd.f32 0.0, %v2176
        %v2178 = vpop.f32.mrb[0].mxu0
        %v2179 = vpop.f32.mrb[0].mxu0
        %v2180 = vadd.f32 0.0, %v2179
        %v2181 = vpop.f32.mrb[0].mxu0
        %2182 = vmatprep.mubr.bf16.mxu0 0
        %2183 = vmatmul.mubr.bf16.gmra.mrb[0].mxu0 %v1941
        %v2184 = vpop.f32.mrb[0].mxu0
        %v2185 = vadd.f32 0.0, %v2184
        %v2186 = vpop.f32.mrb[0].mxu0
        %v2187 = vpop.f32.mrb[0].mxu0
        %v2188 = vadd.f32 0.0, %v2187
        %v2189 = vpop.f32.mrb[0].mxu0
        %2190 = vmatprep.mubr.bf16.mxu0 0
        %2191 = vmatmul.mubr.bf16.gmra.mrb[0].mxu0 %v1950
        %v2192 = vpop.f32.mrb[0].mxu0
        %v2193 = vadd.f32 0.0, %v2192
        %v2194 = vpop.f32.mrb[0].mxu0
        %v2195 = vpop.f32.mrb[0].mxu0
        %v2196 = vadd.f32 0.0, %v2195
        %v2197 = vpop.f32.mrb[0].mxu0
        %2198 = vmatprep.mubr.bf16.mxu0 0
        %2199 = vmatmul.mubr.bf16.gmra.mrb[0].mxu0 %v1959
        %v2200 = vpop.f32.mrb[0].mxu0
        %v2201 = vadd.f32 0.0, %v2200
        %v2202 = vpop.f32.mrb[0].mxu0
        %v2203 = vpop.f32.mrb[0].mxu0
        %v2204 = vadd.f32 0.0, %v2203
        %v2205 = vpop.f32.mrb[0].mxu0
        %2206 = vmatprep.mubr.bf16.mxu0 0
        %2207 = vmatmul.mubr.bf16.gmra.mrb[0].mxu0 %v1968
        %v2208 = vpop.f32.mrb[0].mxu0
        %v2209 = vadd.f32 0.0, %v2208
        %v2210 = vpop.f32.mrb[0].mxu0
        %v2211 = vpop.f32.mrb[0].mxu0
        %v2212 = vadd.f32 0.0, %v2211
        %v2213 = vpop.f32.mrb[0].mxu0
        %2214 = vmatprep.mubr.bf16.mxu0 0
        %2215 = vmatmul.mubr.bf16.gmra.mrb[0].mxu0 %v1977
        %v2216 = vpop.f32.mrb[0].mxu0
        %v2217 = vadd.f32 0.0, %v2216
        %v2218 = vpop.f32.mrb[0].mxu0
        %v2219 = vpop.f32.mrb[0].mxu0
        %v2220 = vadd.f32 0.0, %v2219
        %v2221 = vpop.f32.mrb[0].mxu0
        %2222 = vmatprep.mubr.bf16.mxu0 0
        %2223 = vmatmul.mubr.bf16.gmra.mrb[0].mxu0 %v1986
        %v2224 = vpop.f32.mrb[0].mxu0
        %v2225 = vadd.f32 0.0, %v2224
        %v2226 = vpop.f32.mrb[0].mxu0
        %v2227 = vpop.f32.mrb[0].mxu0
        %v2228 = vadd.f32 0.0, %v2227
        %v2229 = vpop.f32.mrb[0].mxu0
        %2230 = vmatprep.mubr.bf16.mxu0 0
        %2231 = vmatmul.mubr.bf16.gmra.mrb[0].mxu0 %v1995
        %v2232 = vpop.f32.mrb[0].mxu0
        %v2233 = vadd.f32 0.0, %v2232
        %v2234 = vpop.f32.mrb[0].mxu0
        %v2235 = vpop.f32.mrb[0].mxu0
        %v2236 = vadd.f32 0.0, %v2235
        %v2237 = vpop.f32.mrb[0].mxu0
        %2238 = vdwg.mxu0
        %v2239 = vadd.f32 %v1768, %v2097
        %v2240 = vadd.f32 %v1769, %v2100
        %v2241 = vadd.f32 %v1770, %v2105
        %v2242 = vadd.f32 %v1771, %v2108
        %v2243 = vadd.f32 %v1772, %v2113
        %v2244 = vadd.f32 %v1773, %v2116
        %v2245 = vadd.f32 %v1774, %v2121
        %v2246 = vadd.f32 %v1775, %v2124
        %v2247 = vadd.f32 %v1776, %v2129
        %v2248 = vadd.f32 %v1777, %v2132
        %v2249 = vadd.f32 %v1778, %v2137
        %v2250 = vadd.f32 %v1779, %v2140
        %v2251 = vadd.f32 %v1780, %v2145
        %v2252 = vadd.f32 %v1781, %v2148
        %v2253 = vadd.f32 %v1782, %v2153
        %v2254 = vadd.f32 %v1783, %v2156
        %v2255 = vadd.f32 %v1784, %v2161
        %v2256 = vadd.f32 %v1785, %v2164
        %v2257 = vadd.f32 %v1786, %v2169
        %v2258 = vadd.f32 %v1787, %v2172
        %v2259 = vadd.f32 %v1788, %v2177
        %v2260 = vadd.f32 %v1789, %v2180
        %v2261 = vadd.f32 %v1790, %v2185
        %v2262 = vadd.f32 %v1791, %v2188
        %v2263 = vadd.f32 %v1792, %v2193
        %v2264 = vadd.f32 %v1793, %v2196
        %v2265 = vadd.f32 %v1794, %v2201
        %v2266 = vadd.f32 %v1795, %v2204
        %v2267 = vadd.f32 %v1796, %v2209
        %v2268 = vadd.f32 %v1797, %v2212
        %v2269 = vadd.f32 %v1798, %v2217
        %v2270 = vadd.f32 %v1799, %v2220
        %v2271 = vadd.f32 %v1800, %v2225
        %v2272 = vadd.f32 %v1801, %v2228
        %v2273 = vadd.f32 %v1802, %v2233
        %v2274 = vadd.f32 %v1803, %v2236
        %v2275 = vld [vmem:[%s177 + $0x8] sm:$0xc]
        %s2276 = scalar_lea.vmem [#allocation5], 320
        %v2277 = vld [vmem:[%s2276] sm:$0xf]
        %v2278 = vld [vmem:[%s2276 + $0x4] sm:$0xf]
        %v2279 = vld [vmem:[%s2276 + $0x8] sm:$0xf]
        %v2280 = vld [vmem:[%s2276 + $0xc] sm:$0xf]
        %v2281 = vld [vmem:[%s2276 + $0x10] sm:$0xf]
        %v2282 = vld [vmem:[%s2276 + $0x14] sm:$0xf]
        %v2283 = vld [vmem:[%s2276 + $0x18] sm:$0xf]
        %v2284 = vld [vmem:[%s2276 + $0x1c] sm:$0xf]
        %v2285 = vld [vmem:[%s2276 + $0x20] sm:$0xf]
        %v2286 = vld [vmem:[%s2276 + $0x24] sm:$0xf]
        %v2287 = vld [vmem:[%s2276 + $0x28] sm:$0xf]
        %v2288 = vld [vmem:[%s2276 + $0x2c] sm:$0xf]
        %v2289 = vld [vmem:[%s2276 + $0x30] sm:$0xf]
        %v2290 = vld [vmem:[%s2276 + $0x34] sm:$0xf]
        %v2291 = vld [vmem:[%s2276 + $0x38] sm:$0xf]
        %v2292 = vld [vmem:[%s2276 + $0x3c] sm:$0xf]
        %v2294 = vunpack.c.l.b16 %v2275
        %v2295 = vpack.c.b16 %v1433, %v2294
        %vm2296 = vcmask 1045504
        %v2297 = vrot.slane %v2295, 2
        %v2298 = vrot.slane %v1470, 2
        %v2299 = vsel %vm2296, %v2297, %v2298
        %v2300 = vrot.slane %v1471, 2
        %v2301 = vsel %vm2296, %v2298, %v2300
        %v2302 = vrot.slane %v1472, 2
        %v2303 = vsel %vm2296, %v2300, %v2302
        %v2304 = vrot.slane %v1473, 2
        %v2305 = vsel %vm2296, %v2302, %v2304
        %v2306 = vrot.slane %v1474, 2
        %v2307 = vsel %vm2296, %v2304, %v2306
        %v2308 = vrot.slane %v1475, 2
        %v2309 = vsel %vm2296, %v2306, %v2308
        %v2310 = vrot.slane %v1476, 2
        %v2311 = vsel %vm2296, %v2308, %v2310
        %v2312 = vrot.slane %v1477, 2
        %v2313 = vsel %vm2296, %v2310, %v2312
        %v2314 = vrot.slane %v1478, 2
        %v2315 = vsel %vm2296, %v2312, %v2314
        %v2316 = vrot.slane %v1479, 2
        %v2317 = vsel %vm2296, %v2314, %v2316
        %v2318 = vrot.slane %v1480, 2
        %v2319 = vsel %vm2296, %v2316, %v2318
        %v2320 = vrot.slane %v1481, 2
        %v2321 = vsel %vm2296, %v2318, %v2320
        %v2322 = vrot.slane %v1482, 2
        %v2323 = vsel %vm2296, %v2320, %v2322
        %v2324 = vrot.slane %v1483, 2
        %v2325 = vsel %vm2296, %v2322, %v2324
        %v2326 = vrot.slane %v1484, 2
        %v2327 = vsel %vm2296, %v2324, %v2326
        %v2328 = vrot.slane %v1485, 2
        %v2329 = vsel %vm2296, %v2326, %v2328
        %v2330 = vrot.slane %v1486, 2
        %v2331 = vsel %vm2296, %v2328, %v2330
        %v2332 = vrot.slane %v1824, 2
        %v2333 = vsel %vm2296, %v2330, %v2332
        %v2368 = vunpack.c.l.b16 %v2277
        %v2369 = vunpack.c.l.b16 %v2278
        %v2370 = vunpack.c.l.b16 %v2279
        %v2371 = vunpack.c.l.b16 %v2280
        %v2372 = vunpack.c.l.b16 %v2281
        %v2373 = vunpack.c.l.b16 %v2282
        %v2374 = vunpack.c.l.b16 %v2283
        %v2375 = vunpack.c.l.b16 %v2284
        %v2376 = vunpack.c.l.b16 %v2285
        %v2377 = vunpack.c.l.b16 %v2286
        %v2378 = vunpack.c.l.b16 %v2287
        %v2379 = vunpack.c.l.b16 %v2288
        %v2380 = vunpack.c.l.b16 %v2289
        %v2381 = vunpack.c.l.b16 %v2290
        %v2382 = vunpack.c.l.b16 %v2291
        %v2383 = vunpack.c.l.b16 %v2292
        %v2384 = vpack.c.b16 %v2369, %v2368
        %v2385 = vpack.c.b16 %v2371, %v2370
        %v2386 = vpack.c.b16 %v2373, %v2372
        %v2387 = vpack.c.b16 %v2375, %v2374
        %v2388 = vpack.c.b16 %v2377, %v2376
        %v2389 = vpack.c.b16 %v2379, %v2378
        %v2390 = vpack.c.b16 %v2381, %v2380
        %v2391 = vpack.c.b16 %v2383, %v2382
        %2400 = vmatprep.subr.bf16.mxu0 0
        %2401 = vmatpush1.bf16.msra.mxu0 %v2384
        %2402 = vmatprep.subr.bf16.mxu0 0
        %2403 = vmatpush1.bf16.msra.mxu0 %v2385
        %2404 = vmatprep.subr.bf16.mxu0 0
        %2405 = vmatpush1.bf16.msra.mxu0 %v2386
        %2406 = vmatprep.subr.bf16.mxu0 0
        %2407 = vmatpush1.bf16.msra.mxu0 %v2387
        %2408 = vmatprep.subr.bf16.mxu0 0
        %2409 = vmatpush1.bf16.msra.mxu0 %v2388
        %2410 = vmatprep.subr.bf16.mxu0 0
        %2411 = vmatpush1.bf16.msra.mxu0 %v2389
        %2412 = vmatprep.subr.bf16.mxu0 0
        %2413 = vmatpush1.bf16.msra.mxu0 %v2390
        %2414 = vmatprep.subr.bf16.mxu0 0
        %2415 = vmatpush1.bf16.msra.mxu0 %v2391
        %2416 = vmatprep.subr.bf16.mxu0 0
        %2417 = vmatpush1.bf16.msra.mxu0 0
        %2418 = vmatprep.subr.bf16.mxu0 0
        %2419 = vmatpush1.bf16.msra.mxu0 0
        %2420 = vmatprep.subr.bf16.mxu0 0
        %2421 = vmatpush1.bf16.msra.mxu0 0
        %2422 = vmatprep.subr.bf16.mxu0 0
        %2423 = vmatpush1.bf16.msra.mxu0 0
        %2424 = vmatprep.subr.bf16.mxu0 0
        %2425 = vmatpush1.bf16.msra.mxu0 0
        %2426 = vmatprep.subr.bf16.mxu0 0
        %2427 = vmatpush1.bf16.msra.mxu0 0
        %2428 = vmatprep.subr.bf16.mxu0 0
        %2429 = vmatpush1.bf16.msra.mxu0 0
        %2430 = vmatprep.subr.bf16.mxu0 0
        %2431 = vmatpush1.bf16.msra.mxu0 0
        %2432 = vmatprep.mubr.bf16.mxu0 0
        %2433 = vmatmul.mubr.bf16.gmra.mrb[0].mxu0 %v2299
        %v2434 = vpop.f32.mrb[0].mxu0
        %v2435 = vadd.f32 0.0, %v2434
        %v2436 = vpop.f32.mrb[0].mxu0
        %v2437 = vpop.f32.mrb[0].mxu0
        %v2438 = vadd.f32 0.0, %v2437
        %v2439 = vpop.f32.mrb[0].mxu0
        %2440 = vmatprep.mubr.bf16.mxu0 0
        %2441 = vmatmul.mubr.bf16.gmra.mrb[0].mxu0 %v2301
        %v2442 = vpop.f32.mrb[0].mxu0
        %v2443 = vadd.f32 0.0, %v2442
        %v2444 = vpop.f32.mrb[0].mxu0
        %v2445 = vpop.f32.mrb[0].mxu0
        %v2446 = vadd.f32 0.0, %v2445
        %v2447 = vpop.f32.mrb[0].mxu0
        %2448 = vmatprep.mubr.bf16.mxu0 0
        %2449 = vmatmul.mubr.bf16.gmra.mrb[0].mxu0 %v2303
        %v2450 = vpop.f32.mrb[0].mxu0
        %v2451 = vadd.f32 0.0, %v2450
        %v2452 = vpop.f32.mrb[0].mxu0
        %v2453 = vpop.f32.mrb[0].mxu0
        %v2454 = vadd.f32 0.0, %v2453
        %v2455 = vpop.f32.mrb[0].mxu0
        %2456 = vmatprep.mubr.bf16.mxu0 0
        %2457 = vmatmul.mubr.bf16.gmra.mrb[0].mxu0 %v2305
        %v2458 = vpop.f32.mrb[0].mxu0
        %v2459 = vadd.f32 0.0, %v2458
        %v2460 = vpop.f32.mrb[0].mxu0
        %v2461 = vpop.f32.mrb[0].mxu0
        %v2462 = vadd.f32 0.0, %v2461
        %v2463 = vpop.f32.mrb[0].mxu0
        %2464 = vmatprep.mubr.bf16.mxu0 0
        %2465 = vmatmul.mubr.bf16.gmra.mrb[0].mxu0 %v2307
        %v2466 = vpop.f32.mrb[0].mxu0
        %v2467 = vadd.f32 0.0, %v2466
        %v2468 = vpop.f32.mrb[0].mxu0
        %v2469 = vpop.f32.mrb[0].mxu0
        %v2470 = vadd.f32 0.0, %v2469
        %v2471 = vpop.f32.mrb[0].mxu0
        %2472 = vmatprep.mubr.bf16.mxu0 0
        %2473 = vmatmul.mubr.bf16.gmra.mrb[0].mxu0 %v2309
        %v2474 = vpop.f32.mrb[0].mxu0
        %v2475 = vadd.f32 0.0, %v2474
        %v2476 = vpop.f32.mrb[0].mxu0
        %v2477 = vpop.f32.mrb[0].mxu0
        %v2478 = vadd.f32 0.0, %v2477
        %v2479 = vpop.f32.mrb[0].mxu0
        %2480 = vmatprep.mubr.bf16.mxu0 0
        %2481 = vmatmul.mubr.bf16.gmra.mrb[0].mxu0 %v2311
        %v2482 = vpop.f32.mrb[0].mxu0
        %v2483 = vadd.f32 0.0, %v2482
        %v2484 = vpop.f32.mrb[0].mxu0
        %v2485 = vpop.f32.mrb[0].mxu0
        %v2486 = vadd.f32 0.0, %v2485
        %v2487 = vpop.f32.mrb[0].mxu0
        %2488 = vmatprep.mubr.bf16.mxu0 0
        %2489 = vmatmul.mubr.bf16.gmra.mrb[0].mxu0 %v2313
        %v2490 = vpop.f32.mrb[0].mxu0
        %v2491 = vadd.f32 0.0, %v2490
        %v2492 = vpop.f32.mrb[0].mxu0
        %v2493 = vpop.f32.mrb[0].mxu0
        %v2494 = vadd.f32 0.0, %v2493
        %v2495 = vpop.f32.mrb[0].mxu0
        %2496 = vmatprep.mubr.bf16.mxu0 0
        %2497 = vmatmul.mubr.bf16.gmra.mrb[0].mxu0 %v2315
        %v2498 = vpop.f32.mrb[0].mxu0
        %v2499 = vadd.f32 0.0, %v2498
        %v2500 = vpop.f32.mrb[0].mxu0
        %v2501 = vpop.f32.mrb[0].mxu0
        %v2502 = vadd.f32 0.0, %v2501
        %v2503 = vpop.f32.mrb[0].mxu0
        %2504 = vmatprep.mubr.bf16.mxu0 0
        %2505 = vmatmul.mubr.bf16.gmra.mrb[0].mxu0 %v2317
        %v2506 = vpop.f32.mrb[0].mxu0
        %v2507 = vadd.f32 0.0, %v2506
        %v2508 = vpop.f32.mrb[0].mxu0
        %v2509 = vpop.f32.mrb[0].mxu0
        %v2510 = vadd.f32 0.0, %v2509
        %v2511 = vpop.f32.mrb[0].mxu0
        %2512 = vmatprep.mubr.bf16.mxu0 0
        %2513 = vmatmul.mubr.bf16.gmra.mrb[0].mxu0 %v2319
        %v2514 = vpop.f32.mrb[0].mxu0
        %v2515 = vadd.f32 0.0, %v2514
        %v2516 = vpop.f32.mrb[0].mxu0
        %v2517 = vpop.f32.mrb[0].mxu0
        %v2518 = vadd.f32 0.0, %v2517
        %v2519 = vpop.f32.mrb[0].mxu0
        %2520 = vmatprep.mubr.bf16.mxu0 0
        %2521 = vmatmul.mubr.bf16.gmra.mrb[0].mxu0 %v2321
        %v2522 = vpop.f32.mrb[0].mxu0
        %v2523 = vadd.f32 0.0, %v2522
        %v2524 = vpop.f32.mrb[0].mxu0
        %v2525 = vpop.f32.mrb[0].mxu0
        %v2526 = vadd.f32 0.0, %v2525
        %v2527 = vpop.f32.mrb[0].mxu0
        %2528 = vmatprep.mubr.bf16.mxu0 0
        %2529 = vmatmul.mubr.bf16.gmra.mrb[0].mxu0 %v2323
        %v2530 = vpop.f32.mrb[0].mxu0
        %v2531 = vadd.f32 0.0, %v2530
        %v2532 = vpop.f32.mrb[0].mxu0
        %v2533 = vpop.f32.mrb[0].mxu0
        %v2534 = vadd.f32 0.0, %v2533
        %v2535 = vpop.f32.mrb[0].mxu0
        %2536 = vmatprep.mubr.bf16.mxu0 0
        %2537 = vmatmul.mubr.bf16.gmra.mrb[0].mxu0 %v2325
        %v2538 = vpop.f32.mrb[0].mxu0
        %v2539 = vadd.f32 0.0, %v2538
        %v2540 = vpop.f32.mrb[0].mxu0
        %v2541 = vpop.f32.mrb[0].mxu0
        %v2542 = vadd.f32 0.0, %v2541
        %v2543 = vpop.f32.mrb[0].mxu0
        %2544 = vmatprep.mubr.bf16.mxu0 0
        %2545 = vmatmul.mubr.bf16.gmra.mrb[0].mxu0 %v2327
        %v2546 = vpop.f32.mrb[0].mxu0
        %v2547 = vadd.f32 0.0, %v2546
        %v2548 = vpop.f32.mrb[0].mxu0
        %v2549 = vpop.f32.mrb[0].mxu0
        %v2550 = vadd.f32 0.0, %v2549
        %v2551 = vpop.f32.mrb[0].mxu0
        %2552 = vmatprep.mubr.bf16.mxu0 0
        %2553 = vmatmul.mubr.bf16.gmra.mrb[0].mxu0 %v2329
        %v2554 = vpop.f32.mrb[0].mxu0
        %v2555 = vadd.f32 0.0, %v2554
        %v2556 = vpop.f32.mrb[0].mxu0
        %v2557 = vpop.f32.mrb[0].mxu0
        %v2558 = vadd.f32 0.0, %v2557
        %v2559 = vpop.f32.mrb[0].mxu0
        %2560 = vmatprep.mubr.bf16.mxu0 0
        %2561 = vmatmul.mubr.bf16.gmra.mrb[0].mxu0 %v2331
        %v2562 = vpop.f32.mrb[0].mxu0
        %v2563 = vadd.f32 0.0, %v2562
        %v2564 = vpop.f32.mrb[0].mxu0
        %v2565 = vpop.f32.mrb[0].mxu0
        %v2566 = vadd.f32 0.0, %v2565
        %v2567 = vpop.f32.mrb[0].mxu0
        %2568 = vmatprep.mubr.bf16.mxu0 0
        %2569 = vmatmul.mubr.bf16.gmra.mrb[0].mxu0 %v2333
        %v2570 = vpop.f32.mrb[0].mxu0
        %v2571 = vadd.f32 0.0, %v2570
        %v2572 = vpop.f32.mrb[0].mxu0
        %v2573 = vpop.f32.mrb[0].mxu0
        %v2574 = vadd.f32 0.0, %v2573
        %v2575 = vpop.f32.mrb[0].mxu0
        %2576 = vdwg.mxu0
        %v2577 = vadd.f32 %v2239, %v2435
        %v2578 = vadd.f32 %v2240, %v2438
        %v2579 = vadd.f32 %v2241, %v2443
        %v2580 = vadd.f32 %v2242, %v2446
        %v2581 = vadd.f32 %v2243, %v2451
        %v2582 = vadd.f32 %v2244, %v2454
        %v2583 = vadd.f32 %v2245, %v2459
        %v2584 = vadd.f32 %v2246, %v2462
        %v2585 = vadd.f32 %v2247, %v2467
        %v2586 = vadd.f32 %v2248, %v2470
        %v2587 = vadd.f32 %v2249, %v2475
        %v2588 = vadd.f32 %v2250, %v2478
        %v2589 = vadd.f32 %v2251, %v2483
        %v2590 = vadd.f32 %v2252, %v2486
        %v2591 = vadd.f32 %v2253, %v2491
        %v2592 = vadd.f32 %v2254, %v2494
        %v2593 = vadd.f32 %v2255, %v2499
        %v2594 = vadd.f32 %v2256, %v2502
        %v2595 = vadd.f32 %v2257, %v2507
        %v2596 = vadd.f32 %v2258, %v2510
        %v2597 = vadd.f32 %v2259, %v2515
        %v2598 = vadd.f32 %v2260, %v2518
        %v2599 = vadd.f32 %v2261, %v2523
        %v2600 = vadd.f32 %v2262, %v2526
        %v2601 = vadd.f32 %v2263, %v2531
        %v2602 = vadd.f32 %v2264, %v2534
        %v2603 = vadd.f32 %v2265, %v2539
        %v2604 = vadd.f32 %v2266, %v2542
        %v2605 = vadd.f32 %v2267, %v2547
        %v2606 = vadd.f32 %v2268, %v2550
        %v2607 = vadd.f32 %v2269, %v2555
        %v2608 = vadd.f32 %v2270, %v2558
        %v2609 = vadd.f32 %v2271, %v2563
        %v2610 = vadd.f32 %v2272, %v2566
        %v2611 = vadd.f32 %v2273, %v2571
        %v2612 = vadd.f32 %v2274, %v2574
        %v2613 = vld [vmem:[%s177 + $0x10] sm:$0xc]
        %v2614 = vld [vmem:[%s177 + $0x14] sm:$0xf]
        %v2615 = vld [vmem:[%s177 + $0x18] sm:$0xf]
        %v2616 = vld [vmem:[%s177 + $0x1c] sm:$0xf]
        %v2617 = vld [vmem:[%s177 + $0x20] sm:$0xf]
        %v2618 = vld [vmem:[%s177 + $0x24] sm:$0xf]
        %v2619 = vld [vmem:[%s177 + $0x28] sm:$0xf]
        %v2620 = vld [vmem:[%s177 + $0x2c] sm:$0xf]
        %v2621 = vld [vmem:[%s177 + $0x30] sm:$0xf]
        %v2622 = vld [vmem:[%s177 + $0x34] sm:$0xf]
        %v2623 = vld [vmem:[%s177 + $0x38] sm:$0xf]
        %v2624 = vld [vmem:[%s177 + $0x3c] sm:$0xf]
        %v2625 = vld [vmem:[%s177 + $0x40] sm:$0xf]
        %v2626 = vld [vmem:[%s177 + $0x44] sm:$0xf]
        %v2627 = vld [vmem:[%s177 + $0x48] sm:$0xf]
        %v2628 = vld [vmem:[%s177 + $0x4c] sm:$0xf]
        %v2629 = vld [vmem:[%s177 + $0x50] sm:$0xf]
        %v2630 = vld [vmem:[%s177 + $0x54] sm:$0xf]
        %v2631 = vld [vmem:[%s177 + $0x58] sm:$0xf]
        %v2632 = vld [vmem:[%s177 + $0x5c] sm:$0xf]
        %v2633 = vld [vmem:[%s177 + $0x60] sm:$0xf]
        %v2634 = vld [vmem:[%s177 + $0x64] sm:$0xf]
        %v2635 = vld [vmem:[%s177 + $0x68] sm:$0xf]
        %v2636 = vld [vmem:[%s177 + $0x6c] sm:$0xf]
        %v2637 = vld [vmem:[%s177 + $0x70] sm:$0xf]
        %v2638 = vld [vmem:[%s177 + $0x74] sm:$0xf]
        %v2639 = vld [vmem:[%s177 + $0x78] sm:$0xf]
        %v2640 = vld [vmem:[%s177 + $0x7c] sm:$0xf]
        %v2641 = vld [vmem:[%s177 + $0x80] sm:$0xf]
        %v2642 = vld [vmem:[%s177 + $0x84] sm:$0xf]
        %v2643 = vld [vmem:[%s177 + $0x88] sm:$0xf]
        %v2644 = vld [vmem:[%s177 + $0x8c] sm:$0xf]
        %v2645 = vld [vmem:[%s177 + $0x90] sm:$0xf]
        %v2646 = vld [vmem:[%s177 + $0x94] sm:$0xf]
        %v2647 = vld [vmem:[%s177 + $0x98] sm:$0xf]
        %v2648 = vld [vmem:[%s177 + $0x9c] sm:$0xf]
        %v2649 = vld [vmem:[%s177 + $0xa0] sm:$0x3]
        %s2650 = scalar_lea.vmem [#allocation5], 384
        %v2651 = vld [vmem:[%s2650] sm:$0xf]
        %v2652 = vld [vmem:[%s2650 + $0x4] sm:$0xf]
        %v2653 = vld [vmem:[%s2650 + $0x8] sm:$0xf]
        %v2654 = vld [vmem:[%s2650 + $0xc] sm:$0xf]
        %v2655 = vld [vmem:[%s2650 + $0x10] sm:$0xf]
        %v2656 = vld [vmem:[%s2650 + $0x14] sm:$0xf]
        %v2657 = vld [vmem:[%s2650 + $0x18] sm:$0xf]
        %v2658 = vld [vmem:[%s2650 + $0x1c] sm:$0xf]
        %v2659 = vld [vmem:[%s2650 + $0x20] sm:$0xf]
        %v2660 = vld [vmem:[%s2650 + $0x24] sm:$0xf]
        %v2661 = vld [vmem:[%s2650 + $0x28] sm:$0xf]
        %v2662 = vld [vmem:[%s2650 + $0x2c] sm:$0xf]
        %v2663 = vld [vmem:[%s2650 + $0x30] sm:$0xf]
        %v2664 = vld [vmem:[%s2650 + $0x34] sm:$0xf]
        %v2665 = vld [vmem:[%s2650 + $0x38] sm:$0xf]
        %v2666 = vld [vmem:[%s2650 + $0x3c] sm:$0xf]
        %v2704 = vunpack.c.l.b16 %v2613
        %v2705 = vunpack.c.l.b16 %v2614
        %v2706 = vunpack.c.l.b16 %v2615
        %v2707 = vunpack.c.l.b16 %v2616
        %v2708 = vunpack.c.l.b16 %v2617
        %v2709 = vunpack.c.l.b16 %v2618
        %v2710 = vunpack.c.l.b16 %v2619
        %v2711 = vunpack.c.l.b16 %v2620
        %v2712 = vunpack.c.l.b16 %v2621
        %v2713 = vunpack.c.l.b16 %v2622
        %v2714 = vunpack.c.l.b16 %v2623
        %v2715 = vunpack.c.l.b16 %v2624
        %v2716 = vunpack.c.l.b16 %v2625
        %v2717 = vunpack.c.l.b16 %v2626
        %v2718 = vunpack.c.l.b16 %v2627
        %v2719 = vunpack.c.l.b16 %v2628
        %v2720 = vunpack.c.l.b16 %v2629
        %v2721 = vunpack.c.l.b16 %v2630
        %v2722 = vunpack.c.l.b16 %v2631
        %v2723 = vunpack.c.l.b16 %v2632
        %v2724 = vunpack.c.l.b16 %v2633
        %v2725 = vunpack.c.l.b16 %v2634
        %v2726 = vunpack.c.l.b16 %v2635
        %v2727 = vunpack.c.l.b16 %v2636
        %v2728 = vunpack.c.l.b16 %v2637
        %v2729 = vunpack.c.l.b16 %v2638
        %v2730 = vunpack.c.l.b16 %v2639
        %v2731 = vunpack.c.l.b16 %v2640
        %v2732 = vunpack.c.l.b16 %v2641
        %v2733 = vunpack.c.l.b16 %v2642
        %v2734 = vunpack.c.l.b16 %v2643
        %v2735 = vunpack.c.l.b16 %v2644
        %v2736 = vunpack.c.l.b16 %v2645
        %v2737 = vunpack.c.l.b16 %v2646
        %v2738 = vunpack.c.l.b16 %v2647
        %v2739 = vunpack.c.l.b16 %v2648
        %v2740 = vunpack.c.l.b16 %v2649
        %v2741 = vpack.c.b16 %v2705, %v2704
        %v2742 = vpack.c.b16 %v2707, %v2706
        %v2743 = vpack.c.b16 %v2709, %v2708
        %v2744 = vpack.c.b16 %v2711, %v2710
        %v2745 = vpack.c.b16 %v2713, %v2712
        %v2746 = vpack.c.b16 %v2715, %v2714
        %v2747 = vpack.c.b16 %v2717, %v2716
        %v2748 = vpack.c.b16 %v2719, %v2718
        %v2749 = vpack.c.b16 %v2721, %v2720
        %v2750 = vpack.c.b16 %v2723, %v2722
        %v2751 = vpack.c.b16 %v2725, %v2724
        %v2752 = vpack.c.b16 %v2727, %v2726
        %v2753 = vpack.c.b16 %v2729, %v2728
        %v2754 = vpack.c.b16 %v2731, %v2730
        %v2755 = vpack.c.b16 %v2733, %v2732
        %v2756 = vpack.c.b16 %v2735, %v2734
        %v2757 = vpack.c.b16 %v2737, %v2736
        %v2758 = vpack.c.b16 %v2739, %v2738
        %v2759 = vpack.c.b16 %v2740, %v2740
        %v2760 = vrot.slane %v2741, 2
        %v2761 = vrot.slane %v2742, 2
        %v2762 = vsel %vm2296, %v2760, %v2761
        %v2763 = vrot.slane %v2743, 2
        %v2764 = vsel %vm2296, %v2761, %v2763
        %v2765 = vrot.slane %v2744, 2
        %v2766 = vsel %vm2296, %v2763, %v2765
        %v2767 = vrot.slane %v2745, 2
        %v2768 = vsel %vm2296, %v2765, %v2767
        %v2769 = vrot.slane %v2746, 2
        %v2770 = vsel %vm2296, %v2767, %v2769
        %v2771 = vrot.slane %v2747, 2
        %v2772 = vsel %vm2296, %v2769, %v2771
        %v2773 = vrot.slane %v2748, 2
        %v2774 = vsel %vm2296, %v2771, %v2773
        %v2775 = vrot.slane %v2749, 2
        %v2776 = vsel %vm2296, %v2773, %v2775
        %v2777 = vrot.slane %v2750, 2
        %v2778 = vsel %vm2296, %v2775, %v2777
        %v2779 = vrot.slane %v2751, 2
        %v2780 = vsel %vm2296, %v2777, %v2779
        %v2781 = vrot.slane %v2752, 2
        %v2782 = vsel %vm2296, %v2779, %v2781
        %v2783 = vrot.slane %v2753, 2
        %v2784 = vsel %vm2296, %v2781, %v2783
        %v2785 = vrot.slane %v2754, 2
        %v2786 = vsel %vm2296, %v2783, %v2785
        %v2787 = vrot.slane %v2755, 2
        %v2788 = vsel %vm2296, %v2785, %v2787
        %v2789 = vrot.slane %v2756, 2
        %v2790 = vsel %vm2296, %v2787, %v2789
        %v2791 = vrot.slane %v2757, 2
        %v2792 = vsel %vm2296, %v2789, %v2791
        %v2793 = vrot.slane %v2758, 2
        %v2794 = vsel %vm2296, %v2791, %v2793
        %v2795 = vrot.slane %v2759, 2
        %v2796 = vsel %vm2296, %v2793, %v2795
        %v2831 = vunpack.c.l.b16 %v2651
        %v2832 = vunpack.c.l.b16 %v2652
        %v2833 = vunpack.c.l.b16 %v2653
        %v2834 = vunpack.c.l.b16 %v2654
        %v2835 = vunpack.c.l.b16 %v2655
        %v2836 = vunpack.c.l.b16 %v2656
        %v2837 = vunpack.c.l.b16 %v2657
        %v2838 = vunpack.c.l.b16 %v2658
        %v2839 = vunpack.c.l.b16 %v2659
        %v2840 = vunpack.c.l.b16 %v2660
        %v2841 = vunpack.c.l.b16 %v2661
        %v2842 = vunpack.c.l.b16 %v2662
        %v2843 = vunpack.c.l.b16 %v2663
        %v2844 = vunpack.c.l.b16 %v2664
        %v2845 = vunpack.c.l.b16 %v2665
        %v2846 = vunpack.c.l.b16 %v2666
        %v2847 = vpack.c.b16 %v2832, %v2831
        %v2848 = vpack.c.b16 %v2834, %v2833
        %v2849 = vpack.c.b16 %v2836, %v2835
        %v2850 = vpack.c.b16 %v2838, %v2837
        %v2851 = vpack.c.b16 %v2840, %v2839
        %v2852 = vpack.c.b16 %v2842, %v2841
        %v2853 = vpack.c.b16 %v2844, %v2843
        %v2854 = vpack.c.b16 %v2846, %v2845
        %2863 = vmatprep.subr.bf16.mxu0 0
        %2864 = vmatpush1.bf16.msra.mxu0 %v2847
        %2865 = vmatprep.subr.bf16.mxu0 0
        %2866 = vmatpush1.bf16.msra.mxu0 %v2848
        %2867 = vmatprep.subr.bf16.mxu0 0
        %2868 = vmatpush1.bf16.msra.mxu0 %v2849
        %2869 = vmatprep.subr.bf16.mxu0 0
        %2870 = vmatpush1.bf16.msra.mxu0 %v2850
        %2871 = vmatprep.subr.bf16.mxu0 0
        %2872 = vmatpush1.bf16.msra.mxu0 %v2851
        %2873 = vmatprep.subr.bf16.mxu0 0
        %2874 = vmatpush1.bf16.msra.mxu0 %v2852
        %2875 = vmatprep.subr.bf16.mxu0 0
        %2876 = vmatpush1.bf16.msra.mxu0 %v2853
        %2877 = vmatprep.subr.bf16.mxu0 0
        %2878 = vmatpush1.bf16.msra.mxu0 %v2854
        %2879 = vmatprep.subr.bf16.mxu0 0
        %2880 = vmatpush1.bf16.msra.mxu0 0
        %2881 = vmatprep.subr.bf16.mxu0 0
        %2882 = vmatpush1.bf16.msra.mxu0 0
        %2883 = vmatprep.subr.bf16.mxu0 0
        %2884 = vmatpush1.bf16.msra.mxu0 0
        %2885 = vmatprep.subr.bf16.mxu0 0
        %2886 = vmatpush1.bf16.msra.mxu0 0
        %2887 = vmatprep.subr.bf16.mxu0 0
        %2888 = vmatpush1.bf16.msra.mxu0 0
        %2889 = vmatprep.subr.bf16.mxu0 0
        %2890 = vmatpush1.bf16.msra.mxu0 0
        %2891 = vmatprep.subr.bf16.mxu0 0
        %2892 = vmatpush1.bf16.msra.mxu0 0
        %2893 = vmatprep.subr.bf16.mxu0 0
        %2894 = vmatpush1.bf16.msra.mxu0 0
        %2895 = vmatprep.mubr.bf16.mxu0 0
        %2896 = vmatmul.mubr.bf16.gmra.mrb[0].mxu0 %v2762
        %v2897 = vpop.f32.mrb[0].mxu0
        %v2898 = vadd.f32 0.0, %v2897
        %v2899 = vpop.f32.mrb[0].mxu0
        %v2900 = vpop.f32.mrb[0].mxu0
        %v2901 = vadd.f32 0.0, %v2900
        %v2902 = vpop.f32.mrb[0].mxu0
        %2903 = vmatprep.mubr.bf16.mxu0 0
        %2904 = vmatmul.mubr.bf16.gmra.mrb[0].mxu0 %v2764
        %v2905 = vpop.f32.mrb[0].mxu0
        %v2906 = vadd.f32 0.0, %v2905
        %v2907 = vpop.f32.mrb[0].mxu0
        %v2908 = vpop.f32.mrb[0].mxu0
        %v2909 = vadd.f32 0.0, %v2908
        %v2910 = vpop.f32.mrb[0].mxu0
        %2911 = vmatprep.mubr.bf16.mxu0 0
        %2912 = vmatmul.mubr.bf16.gmra.mrb[0].mxu0 %v2766
        %v2913 = vpop.f32.mrb[0].mxu0
        %v2914 = vadd.f32 0.0, %v2913
        %v2915 = vpop.f32.mrb[0].mxu0
        %v2916 = vpop.f32.mrb[0].mxu0
        %v2917 = vadd.f32 0.0, %v2916
        %v2918 = vpop.f32.mrb[0].mxu0
        %2919 = vmatprep.mubr.bf16.mxu0 0
        %2920 = vmatmul.mubr.bf16.gmra.mrb[0].mxu0 %v2768
        %v2921 = vpop.f32.mrb[0].mxu0
        %v2922 = vadd.f32 0.0, %v2921
        %v2923 = vpop.f32.mrb[0].mxu0
        %v2924 = vpop.f32.mrb[0].mxu0
        %v2925 = vadd.f32 0.0, %v2924
        %v2926 = vpop.f32.mrb[0].mxu0
        %2927 = vmatprep.mubr.bf16.mxu0 0
        %2928 = vmatmul.mubr.bf16.gmra.mrb[0].mxu0 %v2770
        %v2929 = vpop.f32.mrb[0].mxu0
        %v2930 = vadd.f32 0.0, %v2929
        %v2931 = vpop.f32.mrb[0].mxu0
        %v2932 = vpop.f32.mrb[0].mxu0
        %v2933 = vadd.f32 0.0, %v2932
        %v2934 = vpop.f32.mrb[0].mxu0
        %2935 = vmatprep.mubr.bf16.mxu0 0
        %2936 = vmatmul.mubr.bf16.gmra.mrb[0].mxu0 %v2772
        %v2937 = vpop.f32.mrb[0].mxu0
        %v2938 = vadd.f32 0.0, %v2937
        %v2939 = vpop.f32.mrb[0].mxu0
        %v2940 = vpop.f32.mrb[0].mxu0
        %v2941 = vadd.f32 0.0, %v2940
        %v2942 = vpop.f32.mrb[0].mxu0
        %2943 = vmatprep.mubr.bf16.mxu0 0
        %2944 = vmatmul.mubr.bf16.gmra.mrb[0].mxu0 %v2774
        %v2945 = vpop.f32.mrb[0].mxu0
        %v2946 = vadd.f32 0.0, %v2945
        %v2947 = vpop.f32.mrb[0].mxu0
        %v2948 = vpop.f32.mrb[0].mxu0
        %v2949 = vadd.f32 0.0, %v2948
        %v2950 = vpop.f32.mrb[0].mxu0
        %2951 = vmatprep.mubr.bf16.mxu0 0
        %2952 = vmatmul.mubr.bf16.gmra.mrb[0].mxu0 %v2776
        %v2953 = vpop.f32.mrb[0].mxu0
        %v2954 = vadd.f32 0.0, %v2953
        %v2955 = vpop.f32.mrb[0].mxu0
        %v2956 = vpop.f32.mrb[0].mxu0
        %v2957 = vadd.f32 0.0, %v2956
        %v2958 = vpop.f32.mrb[0].mxu0
        %2959 = vmatprep.mubr.bf16.mxu0 0
        %2960 = vmatmul.mubr.bf16.gmra.mrb[0].mxu0 %v2778
        %v2961 = vpop.f32.mrb[0].mxu0
        %v2962 = vadd.f32 0.0, %v2961
        %v2963 = vpop.f32.mrb[0].mxu0
        %v2964 = vpop.f32.mrb[0].mxu0
        %v2965 = vadd.f32 0.0, %v2964
        %v2966 = vpop.f32.mrb[0].mxu0
        %2967 = vmatprep.mubr.bf16.mxu0 0
        %2968 = vmatmul.mubr.bf16.gmra.mrb[0].mxu0 %v2780
        %v2969 = vpop.f32.mrb[0].mxu0
        %v2970 = vadd.f32 0.0, %v2969
        %v2971 = vpop.f32.mrb[0].mxu0
        %v2972 = vpop.f32.mrb[0].mxu0
        %v2973 = vadd.f32 0.0, %v2972
        %v2974 = vpop.f32.mrb[0].mxu0
        %2975 = vmatprep.mubr.bf16.mxu0 0
        %2976 = vmatmul.mubr.bf16.gmra.mrb[0].mxu0 %v2782
        %v2977 = vpop.f32.mrb[0].mxu0
        %v2978 = vadd.f32 0.0, %v2977
        %v2979 = vpop.f32.mrb[0].mxu0
        %v2980 = vpop.f32.mrb[0].mxu0
        %v2981 = vadd.f32 0.0, %v2980
        %v2982 = vpop.f32.mrb[0].mxu0
        %2983 = vmatprep.mubr.bf16.mxu0 0
        %2984 = vmatmul.mubr.bf16.gmra.mrb[0].mxu0 %v2784
        %v2985 = vpop.f32.mrb[0].mxu0
        %v2986 = vadd.f32 0.0, %v2985
        %v2987 = vpop.f32.mrb[0].mxu0
        %v2988 = vpop.f32.mrb[0].mxu0
        %v2989 = vadd.f32 0.0, %v2988
        %v2990 = vpop.f32.mrb[0].mxu0
        %2991 = vmatprep.mubr.bf16.mxu0 0
        %2992 = vmatmul.mubr.bf16.gmra.mrb[0].mxu0 %v2786
        %v2993 = vpop.f32.mrb[0].mxu0
        %v2994 = vadd.f32 0.0, %v2993
        %v2995 = vpop.f32.mrb[0].mxu0
        %v2996 = vpop.f32.mrb[0].mxu0
        %v2997 = vadd.f32 0.0, %v2996
        %v2998 = vpop.f32.mrb[0].mxu0
        %2999 = vmatprep.mubr.bf16.mxu0 0
        %3000 = vmatmul.mubr.bf16.gmra.mrb[0].mxu0 %v2788
        %v3001 = vpop.f32.mrb[0].mxu0
        %v3002 = vadd.f32 0.0, %v3001
        %v3003 = vpop.f32.mrb[0].mxu0
        %v3004 = vpop.f32.mrb[0].mxu0
        %v3005 = vadd.f32 0.0, %v3004
        %v3006 = vpop.f32.mrb[0].mxu0
        %3007 = vmatprep.mubr.bf16.mxu0 0
        %3008 = vmatmul.mubr.bf16.gmra.mrb[0].mxu0 %v2790
        %v3009 = vpop.f32.mrb[0].mxu0
        %v3010 = vadd.f32 0.0, %v3009
        %v3011 = vpop.f32.mrb[0].mxu0
        %v3012 = vpop.f32.mrb[0].mxu0
        %v3013 = vadd.f32 0.0, %v3012
        %v3014 = vpop.f32.mrb[0].mxu0
        %3015 = vmatprep.mubr.bf16.mxu0 0
        %3016 = vmatmul.mubr.bf16.gmra.mrb[0].mxu0 %v2792
        %v3017 = vpop.f32.mrb[0].mxu0
        %v3018 = vadd.f32 0.0, %v3017
        %v3019 = vpop.f32.mrb[0].mxu0
        %v3020 = vpop.f32.mrb[0].mxu0
        %v3021 = vadd.f32 0.0, %v3020
        %v3022 = vpop.f32.mrb[0].mxu0
        %3023 = vmatprep.mubr.bf16.mxu0 0
        %3024 = vmatmul.mubr.bf16.gmra.mrb[0].mxu0 %v2794
        %v3025 = vpop.f32.mrb[0].mxu0
        %v3026 = vadd.f32 0.0, %v3025
        %v3027 = vpop.f32.mrb[0].mxu0
        %v3028 = vpop.f32.mrb[0].mxu0
        %v3029 = vadd.f32 0.0, %v3028
        %v3030 = vpop.f32.mrb[0].mxu0
        %3031 = vmatprep.mubr.bf16.mxu0 0
        %3032 = vmatmul.mubr.bf16.gmra.mrb[0].mxu0 %v2796
        %v3033 = vpop.f32.mrb[0].mxu0
        %v3034 = vadd.f32 0.0, %v3033
        %v3035 = vpop.f32.mrb[0].mxu0
        %v3036 = vpop.f32.mrb[0].mxu0
        %v3037 = vadd.f32 0.0, %v3036
        %v3038 = vpop.f32.mrb[0].mxu0
        %3039 = vdwg.mxu0
        %v3040 = vadd.f32 %v2577, %v2898
        %v3041 = vadd.f32 %v2578, %v2901
        %v3042 = vadd.f32 %v2579, %v2906
        %v3043 = vadd.f32 %v2580, %v2909
        %v3044 = vadd.f32 %v2581, %v2914
        %v3045 = vadd.f32 %v2582, %v2917
        %v3046 = vadd.f32 %v2583, %v2922
        %v3047 = vadd.f32 %v2584, %v2925
        %v3048 = vadd.f32 %v2585, %v2930
        %v3049 = vadd.f32 %v2586, %v2933
        %v3050 = vadd.f32 %v2587, %v2938
        %v3051 = vadd.f32 %v2588, %v2941
        %v3052 = vadd.f32 %v2589, %v2946
        %v3053 = vadd.f32 %v2590, %v2949
        %v3054 = vadd.f32 %v2591, %v2954
        %v3055 = vadd.f32 %v2592, %v2957
        %v3056 = vadd.f32 %v2593, %v2962
        %v3057 = vadd.f32 %v2594, %v2965
        %v3058 = vadd.f32 %v2595, %v2970
        %v3059 = vadd.f32 %v2596, %v2973
        %v3060 = vadd.f32 %v2597, %v2978
        %v3061 = vadd.f32 %v2598, %v2981
        %v3062 = vadd.f32 %v2599, %v2986
        %v3063 = vadd.f32 %v2600, %v2989
        %v3064 = vadd.f32 %v2601, %v2994
        %v3065 = vadd.f32 %v2602, %v2997
        %v3066 = vadd.f32 %v2603, %v3002
        %v3067 = vadd.f32 %v2604, %v3005
        %v3068 = vadd.f32 %v2605, %v3010
        %v3069 = vadd.f32 %v2606, %v3013
        %v3070 = vadd.f32 %v2607, %v3018
        %v3071 = vadd.f32 %v2608, %v3021
        %v3072 = vadd.f32 %v2609, %v3026
        %v3073 = vadd.f32 %v2610, %v3029
        %v3074 = vadd.f32 %v2611, %v3034
        %v3075 = vadd.f32 %v2612, %v3037
        %v3076 = vld [vmem:[%s177 + $0xa0] sm:$0x7]
        %s3077 = scalar_lea.vmem [#allocation5], 448
        %v3078 = vld [vmem:[%s3077] sm:$0xf]
        %v3079 = vld [vmem:[%s3077 + $0x4] sm:$0xf]
        %v3080 = vld [vmem:[%s3077 + $0x8] sm:$0xf]
        %v3081 = vld [vmem:[%s3077 + $0xc] sm:$0xf]
        %v3082 = vld [vmem:[%s3077 + $0x10] sm:$0xf]
        %v3083 = vld [vmem:[%s3077 + $0x14] sm:$0xf]
        %v3084 = vld [vmem:[%s3077 + $0x18] sm:$0xf]
        %v3085 = vld [vmem:[%s3077 + $0x1c] sm:$0xf]
        %v3086 = vld [vmem:[%s3077 + $0x20] sm:$0xf]
        %v3087 = vld [vmem:[%s3077 + $0x24] sm:$0xf]
        %v3088 = vld [vmem:[%s3077 + $0x28] sm:$0xf]
        %v3089 = vld [vmem:[%s3077 + $0x2c] sm:$0xf]
        %v3090 = vld [vmem:[%s3077 + $0x30] sm:$0xf]
        %v3091 = vld [vmem:[%s3077 + $0x34] sm:$0xf]
        %v3092 = vld [vmem:[%s3077 + $0x38] sm:$0xf]
        %v3093 = vld [vmem:[%s3077 + $0x3c] sm:$0xf]
        %v3095 = vunpack.c.l.b16 %v3076
        %v3096 = vpack.c.b16 %v3095, %v3095
        %vm3097 = vsmask.f32 5376
        %v3099 = vshrl.u32 %v2741, 16
        %v3101 = vrot.slane %v3099, 2
        %v3102 = vshll.u32 %v2741, 16
        %v3104 = vrot.slane %v3102, 3
        %v3105 = vor.u32 %v3101, %v3104
        %v3107 = vshrl.u32 %v2742, 16
        %v3109 = vrot.slane %v3107, 2
        %v3110 = vshll.u32 %v2742, 16
        %v3112 = vrot.slane %v3110, 3
        %v3113 = vor.u32 %v3109, %v3112
        %v3114 = vsel %vm3097, %v3105, %v3113
        %v3116 = vshrl.u32 %v2743, 16
        %v3118 = vrot.slane %v3116, 2
        %v3119 = vshll.u32 %v2743, 16
        %v3121 = vrot.slane %v3119, 3
        %v3122 = vor.u32 %v3118, %v3121
        %v3123 = vsel %vm3097, %v3113, %v3122
        %v3125 = vshrl.u32 %v2744, 16
        %v3127 = vrot.slane %v3125, 2
        %v3128 = vshll.u32 %v2744, 16
        %v3130 = vrot.slane %v3128, 3
        %v3131 = vor.u32 %v3127, %v3130
        %v3132 = vsel %vm3097, %v3122, %v3131
        %v3134 = vshrl.u32 %v2745, 16
        %v3136 = vrot.slane %v3134, 2
        %v3137 = vshll.u32 %v2745, 16
        %v3139 = vrot.slane %v3137, 3
        %v3140 = vor.u32 %v3136, %v3139
        %v3141 = vsel %vm3097, %v3131, %v3140
        %v3143 = vshrl.u32 %v2746, 16
        %v3145 = vrot.slane %v3143, 2
        %v3146 = vshll.u32 %v2746, 16
        %v3148 = vrot.slane %v3146, 3
        %v3149 = vor.u32 %v3145, %v3148
        %v3150 = vsel %vm3097, %v3140, %v3149
        %v3152 = vshrl.u32 %v2747, 16
        %v3154 = vrot.slane %v3152, 2
        %v3155 = vshll.u32 %v2747, 16
        %v3157 = vrot.slane %v3155, 3
        %v3158 = vor.u32 %v3154, %v3157
        %v3159 = vsel %vm3097, %v3149, %v3158
        %v3161 = vshrl.u32 %v2748, 16
        %v3163 = vrot.slane %v3161, 2
        %v3164 = vshll.u32 %v2748, 16
        %v3166 = vrot.slane %v3164, 3
        %v3167 = vor.u32 %v3163, %v3166
        %v3168 = vsel %vm3097, %v3158, %v3167
        %v3170 = vshrl.u32 %v2749, 16
        %v3172 = vrot.slane %v3170, 2
        %v3173 = vshll.u32 %v2749, 16
        %v3175 = vrot.slane %v3173, 3
        %v3176 = vor.u32 %v3172, %v3175
        %v3177 = vsel %vm3097, %v3167, %v3176
        %v3179 = vshrl.u32 %v2750, 16
        %v3181 = vrot.slane %v3179, 2
        %v3182 = vshll.u32 %v2750, 16
        %v3184 = vrot.slane %v3182, 3
        %v3185 = vor.u32 %v3181, %v3184
        %v3186 = vsel %vm3097, %v3176, %v3185
        %v3188 = vshrl.u32 %v2751, 16
        %v3190 = vrot.slane %v3188, 2
        %v3191 = vshll.u32 %v2751, 16
        %v3193 = vrot.slane %v3191, 3
        %v3194 = vor.u32 %v3190, %v3193
        %v3195 = vsel %vm3097, %v3185, %v3194
        %v3197 = vshrl.u32 %v2752, 16
        %v3199 = vrot.slane %v3197, 2
        %v3200 = vshll.u32 %v2752, 16
        %v3202 = vrot.slane %v3200, 3
        %v3203 = vor.u32 %v3199, %v3202
        %v3204 = vsel %vm3097, %v3194, %v3203
        %v3206 = vshrl.u32 %v2753, 16
        %v3208 = vrot.slane %v3206, 2
        %v3209 = vshll.u32 %v2753, 16
        %v3211 = vrot.slane %v3209, 3
        %v3212 = vor.u32 %v3208, %v3211
        %v3213 = vsel %vm3097, %v3203, %v3212
        %v3215 = vshrl.u32 %v2754, 16
        %v3217 = vrot.slane %v3215, 2
        %v3218 = vshll.u32 %v2754, 16
        %v3220 = vrot.slane %v3218, 3
        %v3221 = vor.u32 %v3217, %v3220
        %v3222 = vsel %vm3097, %v3212, %v3221
        %v3224 = vshrl.u32 %v2755, 16
        %v3226 = vrot.slane %v3224, 2
        %v3227 = vshll.u32 %v2755, 16
        %v3229 = vrot.slane %v3227, 3
        %v3230 = vor.u32 %v3226, %v3229
        %v3231 = vsel %vm3097, %v3221, %v3230
        %v3233 = vshrl.u32 %v2756, 16
        %v3235 = vrot.slane %v3233, 2
        %v3236 = vshll.u32 %v2756, 16
        %v3238 = vrot.slane %v3236, 3
        %v3239 = vor.u32 %v3235, %v3238
        %v3240 = vsel %vm3097, %v3230, %v3239
        %v3242 = vshrl.u32 %v2757, 16
        %v3244 = vrot.slane %v3242, 2
        %v3245 = vshll.u32 %v2757, 16
        %v3247 = vrot.slane %v3245, 3
        %v3248 = vor.u32 %v3244, %v3247
        %v3249 = vsel %vm3097, %v3239, %v3248
        %v3251 = vshrl.u32 %v2758, 16
        %v3253 = vrot.slane %v3251, 2
        %v3254 = vshll.u32 %v2758, 16
        %v3256 = vrot.slane %v3254, 3
        %v3257 = vor.u32 %v3253, %v3256
        %v3258 = vsel %vm3097, %v3248, %v3257
        %v3260 = vshrl.u32 %v3096, 16
        %v3262 = vrot.slane %v3260, 2
        %v3263 = vshll.u32 %v3096, 16
        %v3265 = vrot.slane %v3263, 3
        %v3266 = vor.u32 %v3262, %v3265
        %v3267 = vsel %vm3097, %v3257, %v3266
        %v3302 = vunpack.c.l.b16 %v3078
        %v3303 = vunpack.c.l.b16 %v3079
        %v3304 = vunpack.c.l.b16 %v3080
        %v3305 = vunpack.c.l.b16 %v3081
        %v3306 = vunpack.c.l.b16 %v3082
        %v3307 = vunpack.c.l.b16 %v3083
        %v3308 = vunpack.c.l.b16 %v3084
        %v3309 = vunpack.c.l.b16 %v3085
        %v3310 = vunpack.c.l.b16 %v3086
        %v3311 = vunpack.c.l.b16 %v3087
        %v3312 = vunpack.c.l.b16 %v3088
        %v3313 = vunpack.c.l.b16 %v3089
        %v3314 = vunpack.c.l.b16 %v3090
        %v3315 = vunpack.c.l.b16 %v3091
        %v3316 = vunpack.c.l.b16 %v3092
        %v3317 = vunpack.c.l.b16 %v3093
        %v3318 = vpack.c.b16 %v3303, %v3302
        %v3319 = vpack.c.b16 %v3305, %v3304
        %v3320 = vpack.c.b16 %v3307, %v3306
        %v3321 = vpack.c.b16 %v3309, %v3308
        %v3322 = vpack.c.b16 %v3311, %v3310
        %v3323 = vpack.c.b16 %v3313, %v3312
        %v3324 = vpack.c.b16 %v3315, %v3314
        %v3325 = vpack.c.b16 %v3317, %v3316
        %3334 = vmatprep.subr.bf16.mxu0 0
        %3335 = vmatpush1.bf16.msra.mxu0 %v3318
        %3336 = vmatprep.subr.bf16.mxu0 0
        %3337 = vmatpush1.bf16.msra.mxu0 %v3319
        %3338 = vmatprep.subr.bf16.mxu0 0
        %3339 = vmatpush1.bf16.msra.mxu0 %v3320
        %3340 = vmatprep.subr.bf16.mxu0 0
        %3341 = vmatpush1.bf16.msra.mxu0 %v3321
        %3342 = vmatprep.subr.bf16.mxu0 0
        %3343 = vmatpush1.bf16.msra.mxu0 %v3322
        %3344 = vmatprep.subr.bf16.mxu0 0
        %3345 = vmatpush1.bf16.msra.mxu0 %v3323
        %3346 = vmatprep.subr.bf16.mxu0 0
        %3347 = vmatpush1.bf16.msra.mxu0 %v3324
        %3348 = vmatprep.subr.bf16.mxu0 0
        %3349 = vmatpush1.bf16.msra.mxu0 %v3325
        %3350 = vmatprep.subr.bf16.mxu0 0
        %3351 = vmatpush1.bf16.msra.mxu0 0
        %3352 = vmatprep.subr.bf16.mxu0 0
        %3353 = vmatpush1.bf16.msra.mxu0 0
        %3354 = vmatprep.subr.bf16.mxu0 0
        %3355 = vmatpush1.bf16.msra.mxu0 0
        %3356 = vmatprep.subr.bf16.mxu0 0
        %3357 = vmatpush1.bf16.msra.mxu0 0
        %3358 = vmatprep.subr.bf16.mxu0 0
        %3359 = vmatpush1.bf16.msra.mxu0 0
        %3360 = vmatprep.subr.bf16.mxu0 0
        %3361 = vmatpush1.bf16.msra.mxu0 0
        %3362 = vmatprep.subr.bf16.mxu0 0
        %3363 = vmatpush1.bf16.msra.mxu0 0
        %3364 = vmatprep.subr.bf16.mxu0 0
        %3365 = vmatpush1.bf16.msra.mxu0 0
        %3366 = vmatprep.mubr.bf16.mxu0 0
        %3367 = vmatmul.mubr.bf16.gmra.mrb[0].mxu0 %v3114
        %v3368 = vpop.f32.mrb[0].mxu0
        %v3369 = vadd.f32 0.0, %v3368
        %v3370 = vpop.f32.mrb[0].mxu0
        %v3371 = vpop.f32.mrb[0].mxu0
        %v3372 = vadd.f32 0.0, %v3371
        %v3373 = vpop.f32.mrb[0].mxu0
        %3374 = vmatprep.mubr.bf16.mxu0 0
        %3375 = vmatmul.mubr.bf16.gmra.mrb[0].mxu0 %v3123
        %v3376 = vpop.f32.mrb[0].mxu0
        %v3377 = vadd.f32 0.0, %v3376
        %v3378 = vpop.f32.mrb[0].mxu0
        %v3379 = vpop.f32.mrb[0].mxu0
        %v3380 = vadd.f32 0.0, %v3379
        %v3381 = vpop.f32.mrb[0].mxu0
        %3382 = vmatprep.mubr.bf16.mxu0 0
        %3383 = vmatmul.mubr.bf16.gmra.mrb[0].mxu0 %v3132
        %v3384 = vpop.f32.mrb[0].mxu0
        %v3385 = vadd.f32 0.0, %v3384
        %v3386 = vpop.f32.mrb[0].mxu0
        %v3387 = vpop.f32.mrb[0].mxu0
        %v3388 = vadd.f32 0.0, %v3387
        %v3389 = vpop.f32.mrb[0].mxu0
        %3390 = vmatprep.mubr.bf16.mxu0 0
        %3391 = vmatmul.mubr.bf16.gmra.mrb[0].mxu0 %v3141
        %v3392 = vpop.f32.mrb[0].mxu0
        %v3393 = vadd.f32 0.0, %v3392
        %v3394 = vpop.f32.mrb[0].mxu0
        %v3395 = vpop.f32.mrb[0].mxu0
        %v3396 = vadd.f32 0.0, %v3395
        %v3397 = vpop.f32.mrb[0].mxu0
        %3398 = vmatprep.mubr.bf16.mxu0 0
        %3399 = vmatmul.mubr.bf16.gmra.mrb[0].mxu0 %v3150
        %v3400 = vpop.f32.mrb[0].mxu0
        %v3401 = vadd.f32 0.0, %v3400
        %v3402 = vpop.f32.mrb[0].mxu0
        %v3403 = vpop.f32.mrb[0].mxu0
        %v3404 = vadd.f32 0.0, %v3403
        %v3405 = vpop.f32.mrb[0].mxu0
        %3406 = vmatprep.mubr.bf16.mxu0 0
        %3407 = vmatmul.mubr.bf16.gmra.mrb[0].mxu0 %v3159
        %v3408 = vpop.f32.mrb[0].mxu0
        %v3409 = vadd.f32 0.0, %v3408
        %v3410 = vpop.f32.mrb[0].mxu0
        %v3411 = vpop.f32.mrb[0].mxu0
        %v3412 = vadd.f32 0.0, %v3411
        %v3413 = vpop.f32.mrb[0].mxu0
        %3414 = vmatprep.mubr.bf16.mxu0 0
        %3415 = vmatmul.mubr.bf16.gmra.mrb[0].mxu0 %v3168
        %v3416 = vpop.f32.mrb[0].mxu0
        %v3417 = vadd.f32 0.0, %v3416
        %v3418 = vpop.f32.mrb[0].mxu0
        %v3419 = vpop.f32.mrb[0].mxu0
        %v3420 = vadd.f32 0.0, %v3419
        %v3421 = vpop.f32.mrb[0].mxu0
        %3422 = vmatprep.mubr.bf16.mxu0 0
        %3423 = vmatmul.mubr.bf16.gmra.mrb[0].mxu0 %v3177
        %v3424 = vpop.f32.mrb[0].mxu0
        %v3425 = vadd.f32 0.0, %v3424
        %v3426 = vpop.f32.mrb[0].mxu0
        %v3427 = vpop.f32.mrb[0].mxu0
        %v3428 = vadd.f32 0.0, %v3427
        %v3429 = vpop.f32.mrb[0].mxu0
        %3430 = vmatprep.mubr.bf16.mxu0 0
        %3431 = vmatmul.mubr.bf16.gmra.mrb[0].mxu0 %v3186
        %v3432 = vpop.f32.mrb[0].mxu0
        %v3433 = vadd.f32 0.0, %v3432
        %v3434 = vpop.f32.mrb[0].mxu0
        %v3435 = vpop.f32.mrb[0].mxu0
        %v3436 = vadd.f32 0.0, %v3435
        %v3437 = vpop.f32.mrb[0].mxu0
        %3438 = vmatprep.mubr.bf16.mxu0 0
        %3439 = vmatmul.mubr.bf16.gmra.mrb[0].mxu0 %v3195
        %v3440 = vpop.f32.mrb[0].mxu0
        %v3441 = vadd.f32 0.0, %v3440
        %v3442 = vpop.f32.mrb[0].mxu0
        %v3443 = vpop.f32.mrb[0].mxu0
        %v3444 = vadd.f32 0.0, %v3443
        %v3445 = vpop.f32.mrb[0].mxu0
        %3446 = vmatprep.mubr.bf16.mxu0 0
        %3447 = vmatmul.mubr.bf16.gmra.mrb[0].mxu0 %v3204
        %v3448 = vpop.f32.mrb[0].mxu0
        %v3449 = vadd.f32 0.0, %v3448
        %v3450 = vpop.f32.mrb[0].mxu0
        %v3451 = vpop.f32.mrb[0].mxu0
        %v3452 = vadd.f32 0.0, %v3451
        %v3453 = vpop.f32.mrb[0].mxu0
        %3454 = vmatprep.mubr.bf16.mxu0 0
        %3455 = vmatmul.mubr.bf16.gmra.mrb[0].mxu0 %v3213
        %v3456 = vpop.f32.mrb[0].mxu0
        %v3457 = vadd.f32 0.0, %v3456
        %v3458 = vpop.f32.mrb[0].mxu0
        %v3459 = vpop.f32.mrb[0].mxu0
        %v3460 = vadd.f32 0.0, %v3459
        %v3461 = vpop.f32.mrb[0].mxu0
        %3462 = vmatprep.mubr.bf16.mxu0 0
        %3463 = vmatmul.mubr.bf16.gmra.mrb[0].mxu0 %v3222
        %v3464 = vpop.f32.mrb[0].mxu0
        %v3465 = vadd.f32 0.0, %v3464
        %v3466 = vpop.f32.mrb[0].mxu0
        %v3467 = vpop.f32.mrb[0].mxu0
        %v3468 = vadd.f32 0.0, %v3467
        %v3469 = vpop.f32.mrb[0].mxu0
        %3470 = vmatprep.mubr.bf16.mxu0 0
        %3471 = vmatmul.mubr.bf16.gmra.mrb[0].mxu0 %v3231
        %v3472 = vpop.f32.mrb[0].mxu0
        %v3473 = vadd.f32 0.0, %v3472
        %v3474 = vpop.f32.mrb[0].mxu0
        %v3475 = vpop.f32.mrb[0].mxu0
        %v3476 = vadd.f32 0.0, %v3475
        %v3477 = vpop.f32.mrb[0].mxu0
        %3478 = vmatprep.mubr.bf16.mxu0 0
        %3479 = vmatmul.mubr.bf16.gmra.mrb[0].mxu0 %v3240
        %v3480 = vpop.f32.mrb[0].mxu0
        %v3481 = vadd.f32 0.0, %v3480
        %v3482 = vpop.f32.mrb[0].mxu0
        %v3483 = vpop.f32.mrb[0].mxu0
        %v3484 = vadd.f32 0.0, %v3483
        %v3485 = vpop.f32.mrb[0].mxu0
        %3486 = vmatprep.mubr.bf16.mxu0 0
        %3487 = vmatmul.mubr.bf16.gmra.mrb[0].mxu0 %v3249
        %v3488 = vpop.f32.mrb[0].mxu0
        %v3489 = vadd.f32 0.0, %v3488
        %v3490 = vpop.f32.mrb[0].mxu0
        %v3491 = vpop.f32.mrb[0].mxu0
        %v3492 = vadd.f32 0.0, %v3491
        %v3493 = vpop.f32.mrb[0].mxu0
        %3494 = vmatprep.mubr.bf16.mxu0 0
        %3495 = vmatmul.mubr.bf16.gmra.mrb[0].mxu0 %v3258
        %v3496 = vpop.f32.mrb[0].mxu0
        %v3497 = vadd.f32 0.0, %v3496
        %v3498 = vpop.f32.mrb[0].mxu0
        %v3499 = vpop.f32.mrb[0].mxu0
        %v3500 = vadd.f32 0.0, %v3499
        %v3501 = vpop.f32.mrb[0].mxu0
        %3502 = vmatprep.mubr.bf16.mxu0 0
        %3503 = vmatmul.mubr.bf16.gmra.mrb[0].mxu0 %v3267
        %v3504 = vpop.f32.mrb[0].mxu0
        %v3505 = vadd.f32 0.0, %v3504
        %v3506 = vpop.f32.mrb[0].mxu0
        %v3507 = vpop.f32.mrb[0].mxu0
        %v3508 = vadd.f32 0.0, %v3507
        %v3509 = vpop.f32.mrb[0].mxu0
        %3510 = vdwg.mxu0
        %v3511 = vadd.f32 %v3040, %v3369
        %v3512 = vadd.f32 %v3041, %v3372
        %v3513 = vadd.f32 %v3042, %v3377
        %v3514 = vadd.f32 %v3043, %v3380
        %v3515 = vadd.f32 %v3044, %v3385
        %v3516 = vadd.f32 %v3045, %v3388
        %v3517 = vadd.f32 %v3046, %v3393
        %v3518 = vadd.f32 %v3047, %v3396
        %v3519 = vadd.f32 %v3048, %v3401
        %v3520 = vadd.f32 %v3049, %v3404
        %v3521 = vadd.f32 %v3050, %v3409
        %v3522 = vadd.f32 %v3051, %v3412
        %v3523 = vadd.f32 %v3052, %v3417
        %v3524 = vadd.f32 %v3053, %v3420
        %v3525 = vadd.f32 %v3054, %v3425
        %v3526 = vadd.f32 %v3055, %v3428
        %v3527 = vadd.f32 %v3056, %v3433
        %v3528 = vadd.f32 %v3057, %v3436
        %v3529 = vadd.f32 %v3058, %v3441
        %v3530 = vadd.f32 %v3059, %v3444
        %v3531 = vadd.f32 %v3060, %v3449
        %v3532 = vadd.f32 %v3061, %v3452
        %v3533 = vadd.f32 %v3062, %v3457
        %v3534 = vadd.f32 %v3063, %v3460
        %v3535 = vadd.f32 %v3064, %v3465
        %v3536 = vadd.f32 %v3065, %v3468
        %v3537 = vadd.f32 %v3066, %v3473
        %v3538 = vadd.f32 %v3067, %v3476
        %v3539 = vadd.f32 %v3068, %v3481
        %v3540 = vadd.f32 %v3069, %v3484
        %v3541 = vadd.f32 %v3070, %v3489
        %v3542 = vadd.f32 %v3071, %v3492
        %v3543 = vadd.f32 %v3072, %v3497
        %v3544 = vadd.f32 %v3073, %v3500
        %v3545 = vadd.f32 %v3074, %v3505
        %v3546 = vadd.f32 %v3075, %v3508
        %v3547 = vld [vmem:[%s177 + $0x10] sm:$0x8]
        %s3548 = scalar_lea.vmem [#allocation5], 512
        %v3549 = vld [vmem:[%s3548] sm:$0xf]
        %v3550 = vld [vmem:[%s3548 + $0x4] sm:$0xf]
        %v3551 = vld [vmem:[%s3548 + $0x8] sm:$0xf]
        %v3552 = vld [vmem:[%s3548 + $0xc] sm:$0xf]
        %v3553 = vld [vmem:[%s3548 + $0x10] sm:$0xf]
        %v3554 = vld [vmem:[%s3548 + $0x14] sm:$0xf]
        %v3555 = vld [vmem:[%s3548 + $0x18] sm:$0xf]
        %v3556 = vld [vmem:[%s3548 + $0x1c] sm:$0xf]
        %v3557 = vld [vmem:[%s3548 + $0x20] sm:$0xf]
        %v3558 = vld [vmem:[%s3548 + $0x24] sm:$0xf]
        %v3559 = vld [vmem:[%s3548 + $0x28] sm:$0xf]
        %v3560 = vld [vmem:[%s3548 + $0x2c] sm:$0xf]
        %v3561 = vld [vmem:[%s3548 + $0x30] sm:$0xf]
        %v3562 = vld [vmem:[%s3548 + $0x34] sm:$0xf]
        %v3563 = vld [vmem:[%s3548 + $0x38] sm:$0xf]
        %v3564 = vld [vmem:[%s3548 + $0x3c] sm:$0xf]
        %v3566 = vunpack.c.l.b16 %v3547
        %v3567 = vpack.c.b16 %v2705, %v3566
        %vm3568 = vcmask 1044480
        %v3569 = vrot.slane %v3567, 3
        %v3570 = vrot.slane %v2742, 3
        %v3571 = vsel %vm3568, %v3569, %v3570
        %v3572 = vrot.slane %v2743, 3
        %v3573 = vsel %vm3568, %v3570, %v3572
        %v3574 = vrot.slane %v2744, 3
        %v3575 = vsel %vm3568, %v3572, %v3574
        %v3576 = vrot.slane %v2745, 3
        %v3577 = vsel %vm3568, %v3574, %v3576
        %v3578 = vrot.slane %v2746, 3
        %v3579 = vsel %vm3568, %v3576, %v3578
        %v3580 = vrot.slane %v2747, 3
        %v3581 = vsel %vm3568, %v3578, %v3580
        %v3582 = vrot.slane %v2748, 3
        %v3583 = vsel %vm3568, %v3580, %v3582
        %v3584 = vrot.slane %v2749, 3
        %v3585 = vsel %vm3568, %v3582, %v3584
        %v3586 = vrot.slane %v2750, 3
        %v3587 = vsel %vm3568, %v3584, %v3586
        %v3588 = vrot.slane %v2751, 3
        %v3589 = vsel %vm3568, %v3586, %v3588
        %v3590 = vrot.slane %v2752, 3
        %v3591 = vsel %vm3568, %v3588, %v3590
        %v3592 = vrot.slane %v2753, 3
        %v3593 = vsel %vm3568, %v3590, %v3592
        %v3594 = vrot.slane %v2754, 3
        %v3595 = vsel %vm3568, %v3592, %v3594
        %v3596 = vrot.slane %v2755, 3
        %v3597 = vsel %vm3568, %v3594, %v3596
        %v3598 = vrot.slane %v2756, 3
        %v3599 = vsel %vm3568, %v3596, %v3598
        %v3600 = vrot.slane %v2757, 3
        %v3601 = vsel %vm3568, %v3598, %v3600
        %v3602 = vrot.slane %v2758, 3
        %v3603 = vsel %vm3568, %v3600, %v3602
        %v3604 = vrot.slane %v3096, 3
        %v3605 = vsel %vm3568, %v3602, %v3604
        %v3640 = vunpack.c.l.b16 %v3549
        %v3641 = vunpack.c.l.b16 %v3550
        %v3642 = vunpack.c.l.b16 %v3551
        %v3643 = vunpack.c.l.b16 %v3552
        %v3644 = vunpack.c.l.b16 %v3553
        %v3645 = vunpack.c.l.b16 %v3554
        %v3646 = vunpack.c.l.b16 %v3555
        %v3647 = vunpack.c.l.b16 %v3556
        %v3648 = vunpack.c.l.b16 %v3557
        %v3649 = vunpack.c.l.b16 %v3558
        %v3650 = vunpack.c.l.b16 %v3559
        %v3651 = vunpack.c.l.b16 %v3560
        %v3652 = vunpack.c.l.b16 %v3561
        %v3653 = vunpack.c.l.b16 %v3562
        %v3654 = vunpack.c.l.b16 %v3563
        %v3655 = vunpack.c.l.b16 %v3564
        %v3656 = vpack.c.b16 %v3641, %v3640
        %v3657 = vpack.c.b16 %v3643, %v3642
        %v3658 = vpack.c.b16 %v3645, %v3644
        %v3659 = vpack.c.b16 %v3647, %v3646
        %v3660 = vpack.c.b16 %v3649, %v3648
        %v3661 = vpack.c.b16 %v3651, %v3650
        %v3662 = vpack.c.b16 %v3653, %v3652
        %v3663 = vpack.c.b16 %v3655, %v3654
        %3672 = vmatprep.subr.bf16.mxu0 0
        %3673 = vmatpush1.bf16.msra.mxu0 %v3656
        %3674 = vmatprep.subr.bf16.mxu0 0
        %3675 = vmatpush1.bf16.msra.mxu0 %v3657
        %3676 = vmatprep.subr.bf16.mxu0 0
        %3677 = vmatpush1.bf16.msra.mxu0 %v3658
        %3678 = vmatprep.subr.bf16.mxu0 0
        %3679 = vmatpush1.bf16.msra.mxu0 %v3659
        %3680 = vmatprep.subr.bf16.mxu0 0
        %3681 = vmatpush1.bf16.msra.mxu0 %v3660
        %3682 = vmatprep.subr.bf16.mxu0 0
        %3683 = vmatpush1.bf16.msra.mxu0 %v3661
        %3684 = vmatprep.subr.bf16.mxu0 0
        %3685 = vmatpush1.bf16.msra.mxu0 %v3662
        %3686 = vmatprep.subr.bf16.mxu0 0
        %3687 = vmatpush1.bf16.msra.mxu0 %v3663
        %3688 = vmatprep.subr.bf16.mxu0 0
        %3689 = vmatpush1.bf16.msra.mxu0 0
        %3690 = vmatprep.subr.bf16.mxu0 0
        %3691 = vmatpush1.bf16.msra.mxu0 0
        %3692 = vmatprep.subr.bf16.mxu0 0
        %3693 = vmatpush1.bf16.msra.mxu0 0
        %3694 = vmatprep.subr.bf16.mxu0 0
        %3695 = vmatpush1.bf16.msra.mxu0 0
        %3696 = vmatprep.subr.bf16.mxu0 0
        %3697 = vmatpush1.bf16.msra.mxu0 0
        %3698 = vmatprep.subr.bf16.mxu0 0
        %3699 = vmatpush1.bf16.msra.mxu0 0
        %3700 = vmatprep.subr.bf16.mxu0 0
        %3701 = vmatpush1.bf16.msra.mxu0 0
        %3702 = vmatprep.subr.bf16.mxu0 0
        %3703 = vmatpush1.bf16.msra.mxu0 0
        %3704 = vmatprep.mubr.bf16.mxu0 0
        %3705 = vmatmul.mubr.bf16.gmra.mrb[0].mxu0 %v3571
        %v3706 = vpop.f32.mrb[0].mxu0
        %v3707 = vadd.f32 0.0, %v3706
        %v3708 = vpop.f32.mrb[0].mxu0
        %v3709 = vpop.f32.mrb[0].mxu0
        %v3710 = vadd.f32 0.0, %v3709
        %v3711 = vpop.f32.mrb[0].mxu0
        %3712 = vmatprep.mubr.bf16.mxu0 0
        %3713 = vmatmul.mubr.bf16.gmra.mrb[0].mxu0 %v3573
        %v3714 = vpop.f32.mrb[0].mxu0
        %v3715 = vadd.f32 0.0, %v3714
        %v3716 = vpop.f32.mrb[0].mxu0
        %v3717 = vpop.f32.mrb[0].mxu0
        %v3718 = vadd.f32 0.0, %v3717
        %v3719 = vpop.f32.mrb[0].mxu0
        %3720 = vmatprep.mubr.bf16.mxu0 0
        %3721 = vmatmul.mubr.bf16.gmra.mrb[0].mxu0 %v3575
        %v3722 = vpop.f32.mrb[0].mxu0
        %v3723 = vadd.f32 0.0, %v3722
        %v3724 = vpop.f32.mrb[0].mxu0
        %v3725 = vpop.f32.mrb[0].mxu0
        %v3726 = vadd.f32 0.0, %v3725
        %v3727 = vpop.f32.mrb[0].mxu0
        %3728 = vmatprep.mubr.bf16.mxu0 0
        %3729 = vmatmul.mubr.bf16.gmra.mrb[0].mxu0 %v3577
        %v3730 = vpop.f32.mrb[0].mxu0
        %v3731 = vadd.f32 0.0, %v3730
        %v3732 = vpop.f32.mrb[0].mxu0
        %v3733 = vpop.f32.mrb[0].mxu0
        %v3734 = vadd.f32 0.0, %v3733
        %v3735 = vpop.f32.mrb[0].mxu0
        %3736 = vmatprep.mubr.bf16.mxu0 0
        %3737 = vmatmul.mubr.bf16.gmra.mrb[0].mxu0 %v3579
        %v3738 = vpop.f32.mrb[0].mxu0
        %v3739 = vadd.f32 0.0, %v3738
        %v3740 = vpop.f32.mrb[0].mxu0
        %v3741 = vpop.f32.mrb[0].mxu0
        %v3742 = vadd.f32 0.0, %v3741
        %v3743 = vpop.f32.mrb[0].mxu0
        %3744 = vmatprep.mubr.bf16.mxu0 0
        %3745 = vmatmul.mubr.bf16.gmra.mrb[0].mxu0 %v3581
        %v3746 = vpop.f32.mrb[0].mxu0
        %v3747 = vadd.f32 0.0, %v3746
        %v3748 = vpop.f32.mrb[0].mxu0
        %v3749 = vpop.f32.mrb[0].mxu0
        %v3750 = vadd.f32 0.0, %v3749
        %v3751 = vpop.f32.mrb[0].mxu0
        %3752 = vmatprep.mubr.bf16.mxu0 0
        %3753 = vmatmul.mubr.bf16.gmra.mrb[0].mxu0 %v3583
        %v3754 = vpop.f32.mrb[0].mxu0
        %v3755 = vadd.f32 0.0, %v3754
        %v3756 = vpop.f32.mrb[0].mxu0
        %v3757 = vpop.f32.mrb[0].mxu0
        %v3758 = vadd.f32 0.0, %v3757
        %v3759 = vpop.f32.mrb[0].mxu0
        %3760 = vmatprep.mubr.bf16.mxu0 0
        %3761 = vmatmul.mubr.bf16.gmra.mrb[0].mxu0 %v3585
        %v3762 = vpop.f32.mrb[0].mxu0
        %v3763 = vadd.f32 0.0, %v3762
        %v3764 = vpop.f32.mrb[0].mxu0
        %v3765 = vpop.f32.mrb[0].mxu0
        %v3766 = vadd.f32 0.0, %v3765
        %v3767 = vpop.f32.mrb[0].mxu0
        %3768 = vmatprep.mubr.bf16.mxu0 0
        %3769 = vmatmul.mubr.bf16.gmra.mrb[0].mxu0 %v3587
        %v3770 = vpop.f32.mrb[0].mxu0
        %v3771 = vadd.f32 0.0, %v3770
        %v3772 = vpop.f32.mrb[0].mxu0
        %v3773 = vpop.f32.mrb[0].mxu0
        %v3774 = vadd.f32 0.0, %v3773
        %v3775 = vpop.f32.mrb[0].mxu0
        %3776 = vmatprep.mubr.bf16.mxu0 0
        %3777 = vmatmul.mubr.bf16.gmra.mrb[0].mxu0 %v3589
        %v3778 = vpop.f32.mrb[0].mxu0
        %v3779 = vadd.f32 0.0, %v3778
        %v3780 = vpop.f32.mrb[0].mxu0
        %v3781 = vpop.f32.mrb[0].mxu0
        %v3782 = vadd.f32 0.0, %v3781
        %v3783 = vpop.f32.mrb[0].mxu0
        %3784 = vmatprep.mubr.bf16.mxu0 0
        %3785 = vmatmul.mubr.bf16.gmra.mrb[0].mxu0 %v3591
        %v3786 = vpop.f32.mrb[0].mxu0
        %v3787 = vadd.f32 0.0, %v3786
        %v3788 = vpop.f32.mrb[0].mxu0
        %v3789 = vpop.f32.mrb[0].mxu0
        %v3790 = vadd.f32 0.0, %v3789
        %v3791 = vpop.f32.mrb[0].mxu0
        %3792 = vmatprep.mubr.bf16.mxu0 0
        %3793 = vmatmul.mubr.bf16.gmra.mrb[0].mxu0 %v3593
        %v3794 = vpop.f32.mrb[0].mxu0
        %v3795 = vadd.f32 0.0, %v3794
        %v3796 = vpop.f32.mrb[0].mxu0
        %v3797 = vpop.f32.mrb[0].mxu0
        %v3798 = vadd.f32 0.0, %v3797
        %v3799 = vpop.f32.mrb[0].mxu0
        %3800 = vmatprep.mubr.bf16.mxu0 0
        %3801 = vmatmul.mubr.bf16.gmra.mrb[0].mxu0 %v3595
        %v3802 = vpop.f32.mrb[0].mxu0
        %v3803 = vadd.f32 0.0, %v3802
        %v3804 = vpop.f32.mrb[0].mxu0
        %v3805 = vpop.f32.mrb[0].mxu0
        %v3806 = vadd.f32 0.0, %v3805
        %v3807 = vpop.f32.mrb[0].mxu0
        %3808 = vmatprep.mubr.bf16.mxu0 0
        %3809 = vmatmul.mubr.bf16.gmra.mrb[0].mxu0 %v3597
        %v3810 = vpop.f32.mrb[0].mxu0
        %v3811 = vadd.f32 0.0, %v3810
        %v3812 = vpop.f32.mrb[0].mxu0
        %v3813 = vpop.f32.mrb[0].mxu0
        %v3814 = vadd.f32 0.0, %v3813
        %v3815 = vpop.f32.mrb[0].mxu0
        %3816 = vmatprep.mubr.bf16.mxu0 0
        %3817 = vmatmul.mubr.bf16.gmra.mrb[0].mxu0 %v3599
        %v3818 = vpop.f32.mrb[0].mxu0
        %v3819 = vadd.f32 0.0, %v3818
        %v3820 = vpop.f32.mrb[0].mxu0
        %v3821 = vpop.f32.mrb[0].mxu0
        %v3822 = vadd.f32 0.0, %v3821
        %v3823 = vpop.f32.mrb[0].mxu0
        %3824 = vmatprep.mubr.bf16.mxu0 0
        %3825 = vmatmul.mubr.bf16.gmra.mrb[0].mxu0 %v3601
        %v3826 = vpop.f32.mrb[0].mxu0
        %v3827 = vadd.f32 0.0, %v3826
        %v3828 = vpop.f32.mrb[0].mxu0
        %v3829 = vpop.f32.mrb[0].mxu0
        %v3830 = vadd.f32 0.0, %v3829
        %v3831 = vpop.f32.mrb[0].mxu0
        %3832 = vmatprep.mubr.bf16.mxu0 0
        %3833 = vmatmul.mubr.bf16.gmra.mrb[0].mxu0 %v3603
        %v3834 = vpop.f32.mrb[0].mxu0
        %v3835 = vadd.f32 0.0, %v3834
        %v3836 = vpop.f32.mrb[0].mxu0
        %v3837 = vpop.f32.mrb[0].mxu0
        %v3838 = vadd.f32 0.0, %v3837
        %v3839 = vpop.f32.mrb[0].mxu0
        %3840 = vmatprep.mubr.bf16.mxu0 0
        %3841 = vmatmul.mubr.bf16.gmra.mrb[0].mxu0 %v3605
        %v3842 = vpop.f32.mrb[0].mxu0
        %v3843 = vadd.f32 0.0, %v3842
        %v3844 = vpop.f32.mrb[0].mxu0
        %v3845 = vpop.f32.mrb[0].mxu0
        %v3846 = vadd.f32 0.0, %v3845
        %v3847 = vpop.f32.mrb[0].mxu0
        %3848 = vdwg.mxu0
        %v3849 = vadd.f32 %v3511, %v3707
        %v3850 = vadd.f32 %v3512, %v3710
        %v3851 = vadd.f32 %v3513, %v3715
        %v3852 = vadd.f32 %v3514, %v3718
        %v3853 = vadd.f32 %v3515, %v3723
        %v3854 = vadd.f32 %v3516, %v3726
        %v3855 = vadd.f32 %v3517, %v3731
        %v3856 = vadd.f32 %v3518, %v3734
        %v3857 = vadd.f32 %v3519, %v3739
        %v3858 = vadd.f32 %v3520, %v3742
        %v3859 = vadd.f32 %v3521, %v3747
        %v3860 = vadd.f32 %v3522, %v3750
        %v3861 = vadd.f32 %v3523, %v3755
        %v3862 = vadd.f32 %v3524, %v3758
        %v3863 = vadd.f32 %v3525, %v3763
        %v3864 = vadd.f32 %v3526, %v3766
        %v3865 = vadd.f32 %v3527, %v3771
        %v3866 = vadd.f32 %v3528, %v3774
        %v3867 = vadd.f32 %v3529, %v3779
        %v3868 = vadd.f32 %v3530, %v3782
        %v3869 = vadd.f32 %v3531, %v3787
        %v3870 = vadd.f32 %v3532, %v3790
        %v3871 = vadd.f32 %v3533, %v3795
        %v3872 = vadd.f32 %v3534, %v3798
        %v3873 = vadd.f32 %v3535, %v3803
        %v3874 = vadd.f32 %v3536, %v3806
        %v3875 = vadd.f32 %v3537, %v3811
        %v3876 = vadd.f32 %v3538, %v3814
        %v3877 = vadd.f32 %v3539, %v3819
        %v3878 = vadd.f32 %v3540, %v3822
        %v3879 = vadd.f32 %v3541, %v3827
        %v3880 = vadd.f32 %v3542, %v3830
        %v3881 = vadd.f32 %v3543, %v3835
        %v3882 = vadd.f32 %v3544, %v3838
        %v3883 = vadd.f32 %v3545, %v3843
        %v3884 = vadd.f32 %v3546, %v3846
        %vm3888 = vcmask 1045504
        %v3889 = vrot.slane %v3851, 2
        %v3890 = vrot.slane %v3852, 2
        %v3891 = vsel %vm3888, %v3889, %v3890
        %v3892 = vrot.slane %v3853, 2
        %v3893 = vsel %vm3888, %v3890, %v3892
        %vm3898 = vcmask 1043456
        %v3899 = vrot.slane %v3853, 4
        %v3900 = vrot.slane %v3854, 4
        %v3901 = vsel %vm3898, %v3899, %v3900
        %v3902 = vrot.slane %v3855, 4
        %v3903 = vsel %vm3898, %v3900, %v3902
        %vm3908 = vcmask 1041408
        %v3909 = vrot.slane %v3855, 6
        %v3910 = vrot.slane %v3856, 6
        %v3911 = vsel %vm3908, %v3909, %v3910
        %v3912 = vrot.slane %v3857, 6
        %v3913 = vsel %vm3908, %v3910, %v3912
        %v3919 = vrot.slane %v3860, 2
        %v3920 = vrot.slane %v3861, 2
        %v3921 = vsel %vm3888, %v3919, %v3920
        %v3922 = vrot.slane %v3862, 2
        %v3923 = vsel %vm3888, %v3920, %v3922
        %v3928 = vrot.slane %v3862, 4
        %v3929 = vrot.slane %v3863, 4
        %v3930 = vsel %vm3898, %v3928, %v3929
        %v3931 = vrot.slane %v3864, 4
        %v3932 = vsel %vm3898, %v3929, %v3931
        %v3937 = vrot.slane %v3864, 6
        %v3938 = vrot.slane %v3865, 6
        %v3939 = vsel %vm3908, %v3937, %v3938
        %v3940 = vrot.slane %v3866, 6
        %v3941 = vsel %vm3908, %v3938, %v3940
        %v3947 = vrot.slane %v3869, 2
        %v3948 = vrot.slane %v3870, 2
        %v3949 = vsel %vm3888, %v3947, %v3948
        %v3950 = vrot.slane %v3871, 2
        %v3951 = vsel %vm3888, %v3948, %v3950
        %v3956 = vrot.slane %v3871, 4
        %v3957 = vrot.slane %v3872, 4
        %v3958 = vsel %vm3898, %v3956, %v3957
        %v3959 = vrot.slane %v3873, 4
        %v3960 = vsel %vm3898, %v3957, %v3959
        %v3965 = vrot.slane %v3873, 6
        %v3966 = vrot.slane %v3874, 6
        %v3967 = vsel %vm3908, %v3965, %v3966
        %v3968 = vrot.slane %v3875, 6
        %v3969 = vsel %vm3908, %v3966, %v3968
        %v3975 = vrot.slane %v3878, 2
        %v3976 = vrot.slane %v3879, 2
        %v3977 = vsel %vm3888, %v3975, %v3976
        %v3978 = vrot.slane %v3880, 2
        %v3979 = vsel %vm3888, %v3976, %v3978
        %v3984 = vrot.slane %v3880, 4
        %v3985 = vrot.slane %v3881, 4
        %v3986 = vsel %vm3898, %v3984, %v3985
        %v3987 = vrot.slane %v3882, 4
        %v3988 = vsel %vm3898, %v3985, %v3987
        %v3993 = vrot.slane %v3882, 6
        %v3994 = vrot.slane %v3883, 6
        %v3995 = vsel %vm3908, %v3993, %v3994
        %v3996 = vrot.slane %v3884, 6
        %v3997 = vsel %vm3908, %v3994, %v3996
        %v4000 = vld [vmem:[%s2] sm:$0x1]
        %v4002 = vlaneseq
        %v4003 = vshrl.u32 %v4002, 7
        %v4004 = vsub.s32 0, %v4003
        %v4005 = vrot.slane %v4000, %v4004
        %v4007 = vadd.f32 %v3849, %v4005
        %v4008 = vadd.f32 %v3850, %v4005
        %v4009 = vadd.f32 %v3891, %v4005
        %v4010 = vadd.f32 %v3893, %v4005
        %v4011 = vadd.f32 %v3901, %v4005
        %v4012 = vadd.f32 %v3903, %v4005
        %v4013 = vadd.f32 %v3911, %v4005
        %v4014 = vadd.f32 %v3913, %v4005
        %v4015 = vadd.f32 %v3858, %v4005
        %v4016 = vadd.f32 %v3859, %v4005
        %v4017 = vadd.f32 %v3921, %v4005
        %v4018 = vadd.f32 %v3923, %v4005
        %v4019 = vadd.f32 %v3930, %v4005
        %v4020 = vadd.f32 %v3932, %v4005
        %v4021 = vadd.f32 %v3939, %v4005
        %v4022 = vadd.f32 %v3941, %v4005
        %v4023 = vadd.f32 %v3867, %v4005
        %v4024 = vadd.f32 %v3868, %v4005
        %v4025 = vadd.f32 %v3949, %v4005
        %v4026 = vadd.f32 %v3951, %v4005
        %v4027 = vadd.f32 %v3958, %v4005
        %v4028 = vadd.f32 %v3960, %v4005
        %v4029 = vadd.f32 %v3967, %v4005
        %v4030 = vadd.f32 %v3969, %v4005
        %v4031 = vadd.f32 %v3876, %v4005
        %v4032 = vadd.f32 %v3877, %v4005
        %v4033 = vadd.f32 %v3977, %v4005
        %v4034 = vadd.f32 %v3979, %v4005
        %v4035 = vadd.f32 %v3986, %v4005
        %v4036 = vadd.f32 %v3988, %v4005
        %v4037 = vadd.f32 %v3995, %v4005
        %v4038 = vadd.f32 %v3997, %v4005
        %v4039 = vmax.f32 %v4007, 0.0
        %v4040 = vmax.f32 %v4008, 0.0
        %v4041 = vmax.f32 %v4009, 0.0
        %v4042 = vmax.f32 %v4010, 0.0
        %v4043 = vmax.f32 %v4011, 0.0
        %v4044 = vmax.f32 %v4012, 0.0
        %v4045 = vmax.f32 %v4013, 0.0
        %v4046 = vmax.f32 %v4014, 0.0
        %v4047 = vmax.f32 %v4015, 0.0
        %v4048 = vmax.f32 %v4016, 0.0
        %v4049 = vmax.f32 %v4017, 0.0
        %v4050 = vmax.f32 %v4018, 0.0
        %v4051 = vmax.f32 %v4019, 0.0
        %v4052 = vmax.f32 %v4020, 0.0
        %v4053 = vmax.f32 %v4021, 0.0
        %v4054 = vmax.f32 %v4022, 0.0
        %v4055 = vmax.f32 %v4023, 0.0
        %v4056 = vmax.f32 %v4024, 0.0
        %v4057 = vmax.f32 %v4025, 0.0
        %v4058 = vmax.f32 %v4026, 0.0
        %v4059 = vmax.f32 %v4027, 0.0
        %v4060 = vmax.f32 %v4028, 0.0
        %v4061 = vmax.f32 %v4029, 0.0
        %v4062 = vmax.f32 %v4030, 0.0
        %v4063 = vmax.f32 %v4031, 0.0
        %v4064 = vmax.f32 %v4032, 0.0
        %v4065 = vmax.f32 %v4033, 0.0
        %v4066 = vmax.f32 %v4034, 0.0
        %v4067 = vmax.f32 %v4035, 0.0
        %v4068 = vmax.f32 %v4036, 0.0
        %v4069 = vmax.f32 %v4037, 0.0
        %v4070 = vmax.f32 %v4038, 0.0
        %v4071 = vpack.c.bf16 %v4040, %v4039
        %v4072 = vpack.c.bf16 %v4042, %v4041
        %v4073 = vpack.c.bf16 %v4044, %v4043
        %v4074 = vpack.c.bf16 %v4046, %v4045
        %v4075 = vpack.c.bf16 %v4048, %v4047
        %v4076 = vpack.c.bf16 %v4050, %v4049
        %v4077 = vpack.c.bf16 %v4052, %v4051
        %v4078 = vpack.c.bf16 %v4054, %v4053
        %v4079 = vpack.c.bf16 %v4056, %v4055
        %v4080 = vpack.c.bf16 %v4058, %v4057
        %v4081 = vpack.c.bf16 %v4060, %v4059
        %v4082 = vpack.c.bf16 %v4062, %v4061
        %v4083 = vpack.c.bf16 %v4064, %v4063
        %v4084 = vpack.c.bf16 %v4066, %v4065
        %v4085 = vpack.c.bf16 %v4068, %v4067
        %v4086 = vpack.c.bf16 %v4070, %v4069
        %v4103 = vunpack.c.l.b16 %v4071
        %v4104 = vunpack.c.h.b16 %v4071
        %v4105 = vunpack.c.l.b16 %v4072
        %v4106 = vunpack.c.h.b16 %v4072
        %v4107 = vunpack.c.l.b16 %v4073
        %v4108 = vunpack.c.h.b16 %v4073
        %v4109 = vunpack.c.l.b16 %v4074
        %v4110 = vunpack.c.h.b16 %v4074
        %v4111 = vunpack.c.l.b16 %v4075
        %v4112 = vunpack.c.h.b16 %v4075
        %v4113 = vunpack.c.l.b16 %v4076
        %v4114 = vunpack.c.h.b16 %v4076
        %v4115 = vunpack.c.l.b16 %v4077
        %v4116 = vunpack.c.h.b16 %v4077
        %v4117 = vunpack.c.l.b16 %v4078
        %v4118 = vunpack.c.h.b16 %v4078
        %v4119 = vunpack.c.l.b16 %v4079
        %v4120 = vunpack.c.h.b16 %v4079
        %v4121 = vunpack.c.l.b16 %v4080
        %v4122 = vunpack.c.h.b16 %v4080
        %v4123 = vunpack.c.l.b16 %v4081
        %v4124 = vunpack.c.h.b16 %v4081
        %v4125 = vunpack.c.l.b16 %v4082
        %v4126 = vunpack.c.h.b16 %v4082
        %v4127 = vunpack.c.l.b16 %v4083
        %v4128 = vunpack.c.h.b16 %v4083
        %v4129 = vunpack.c.l.b16 %v4084
        %v4130 = vunpack.c.h.b16 %v4084
        %v4131 = vunpack.c.l.b16 %v4085
        %v4132 = vunpack.c.h.b16 %v4085
        %v4133 = vunpack.c.l.b16 %v4086
        %v4134 = vunpack.c.h.b16 %v4086
        %v4135 = vpack.c.b16 %v4103, %v4103
        %v4136 = vpack.c.b16 %v4104, %v4104
        %v4137 = vpack.c.b16 %v4105, %v4105
        %v4138 = vpack.c.b16 %v4106, %v4106
        %v4139 = vpack.c.b16 %v4107, %v4107
        %v4140 = vpack.c.b16 %v4108, %v4108
        %v4141 = vpack.c.b16 %v4109, %v4109
        %v4142 = vpack.c.b16 %v4110, %v4110
        %v4143 = vpack.c.b16 %v4111, %v4111
        %v4144 = vpack.c.b16 %v4112, %v4112
        %v4145 = vpack.c.b16 %v4113, %v4113
        %v4146 = vpack.c.b16 %v4114, %v4114
        %v4147 = vpack.c.b16 %v4115, %v4115
        %v4148 = vpack.c.b16 %v4116, %v4116
        %v4149 = vpack.c.b16 %v4117, %v4117
        %v4150 = vpack.c.b16 %v4118, %v4118
        %v4151 = vpack.c.b16 %v4119, %v4119
        %v4152 = vpack.c.b16 %v4120, %v4120
        %v4153 = vpack.c.b16 %v4121, %v4121
        %v4154 = vpack.c.b16 %v4122, %v4122
        %v4155 = vpack.c.b16 %v4123, %v4123
        %v4156 = vpack.c.b16 %v4124, %v4124
        %v4157 = vpack.c.b16 %v4125, %v4125
        %v4158 = vpack.c.b16 %v4126, %v4126
        %v4159 = vpack.c.b16 %v4127, %v4127
        %v4160 = vpack.c.b16 %v4128, %v4128
        %v4161 = vpack.c.b16 %v4129, %v4129
        %v4162 = vpack.c.b16 %v4130, %v4130
        %v4163 = vpack.c.b16 %v4131, %v4131
        %v4164 = vpack.c.b16 %v4132, %v4132
        %v4165 = vpack.c.b16 %v4133, %v4133
        %v4166 = vpack.c.b16 %v4134, %v4134
        %4199 = vst [vmem:[%s203] sm:$0xf] %v4135
        %4200 = vst [vmem:[%s203 + $0x4] sm:$0xf] %v4136
        %4201 = vst [vmem:[%s203 + $0x8] sm:$0xf] %v4137
        %4202 = vst [vmem:[%s203 + $0xc] sm:$0xf] %v4138
        %4203 = vst [vmem:[%s203 + $0x10] sm:$0xf] %v4139
        %4204 = vst [vmem:[%s203 + $0x14] sm:$0xf] %v4140
        %4205 = vst [vmem:[%s203 + $0x18] sm:$0xf] %v4141
        %4206 = vst [vmem:[%s203 + $0x1c] sm:$0xf] %v4142
        %4207 = vst [vmem:[%s203 + $0x20] sm:$0xf] %v4143
        %4208 = vst [vmem:[%s203 + $0x24] sm:$0xf] %v4144
        %4209 = vst [vmem:[%s203 + $0x28] sm:$0xf] %v4145
        %4210 = vst [vmem:[%s203 + $0x2c] sm:$0xf] %v4146
        %4211 = vst [vmem:[%s203 + $0x30] sm:$0xf] %v4147
        %4212 = vst [vmem:[%s203 + $0x34] sm:$0xf] %v4148
        %4213 = vst [vmem:[%s203 + $0x38] sm:$0xf] %v4149
        %4214 = vst [vmem:[%s203 + $0x3c] sm:$0xf] %v4150
        %4215 = vst [vmem:[%s203 + $0x40] sm:$0xf] %v4151
        %4216 = vst [vmem:[%s203 + $0x44] sm:$0xf] %v4152
        %4217 = vst [vmem:[%s203 + $0x48] sm:$0xf] %v4153
        %4218 = vst [vmem:[%s203 + $0x4c] sm:$0xf] %v4154
        %4219 = vst [vmem:[%s203 + $0x50] sm:$0xf] %v4155
        %4220 = vst [vmem:[%s203 + $0x54] sm:$0xf] %v4156
        %4221 = vst [vmem:[%s203 + $0x58] sm:$0xf] %v4157
        %4222 = vst [vmem:[%s203 + $0x5c] sm:$0xf] %v4158
        %4223 = vst [vmem:[%s203 + $0x60] sm:$0xf] %v4159
        %4224 = vst [vmem:[%s203 + $0x64] sm:$0xf] %v4160
        %4225 = vst [vmem:[%s203 + $0x68] sm:$0xf] %v4161
        %4226 = vst [vmem:[%s203 + $0x6c] sm:$0xf] %v4162
        %4227 = vst [vmem:[%s203 + $0x70] sm:$0xf] %v4163
        %4228 = vst [vmem:[%s203 + $0x74] sm:$0xf] %v4164
        %4229 = vst [vmem:[%s203 + $0x78] sm:$0xf] %v4165
        %4230 = vst [vmem:[%s203 + $0x7c] sm:$0xf] %v4166
        %s4231 = sand.u32 %s97, 1
        %s4232 = scalar_lea.sflag [#allocation4], %s4231
        %s4233 = sand.u32 %s97, 1
        %s4234 = smul.addr %s4233, 128
        %s4235 = scalar_lea.vmem [#allocation7], %s4234
        // Predicated region
        $region41: #{tpu_custom_call.1} parent=31 // pred_check
          %p4236 = pneg %p107
        $region42: #{tpu_custom_call.1} parent=31 // pred_check_branch
          %4238 = sbr.rel (%p4236) target = $region44
        $region43: #{tpu_custom_call.1} parent=31 // pred_region
          %s4240 = ssub.s32 2048, 2048
          %4241 = vsyncadd %s4232, %s4240
          %s4242 = smul.addr %s21, 32
          %s4243 = smul.addr %s4242, 64
          %s4244 = scalar_lea.hbm %s3, %s4243
          %s4245 = sshll.u32 %s4235, 4
          %s4246 = int_to_ptr.vmem [resolvable:$true] %s4245
          %4251 = dma.vmem_to_hbm [thread:$0]  %s4246, 2048, %s4244, %s4232, 64, 64, 4
        $region44: #{tpu_custom_call.1} parent=31 // pred_fallthru
          _
      $region32: #{tpu_custom_call.1} parent=5 // pred_fallthru
        _
      %p4252 = scmp.le.s32.totalorder 2, %s16
      // Predicated region
      $region45: #{tpu_custom_call.1} parent=5 // pred_check
        %p4253 = pneg %p4252
      $region46: #{tpu_custom_call.1} parent=5 // pred_check_branch
        %4255 = sbr.rel (%p4253) target = $region48
      $region47: #{tpu_custom_call.1} parent=5 // pred_region
        %s4256 = ssub.s32 %s16, 2
        // Predicated region
        $region49: #{tpu_custom_call.1} parent=47 // pred_check
          %p4257 = pneg %p113
        $region50: #{tpu_custom_call.1} parent=47 // pred_check_branch
          %4259 = sbr.rel (%p4257) target = $region52
        $region51: #{tpu_custom_call.1} parent=47 // pred_region
          %s4260 = sand.u32 %s98, 1
          %s4261 = scalar_lea.sflag [#allocation4], %s4260
          %s4262 = sand.u32 %s98, 1
          %s4263 = smul.addr %s4262, 128
          %s4264 = scalar_lea.vmem [#allocation7], %s4263
          %4265 = dma.done %s4261, 2048
        $region52: #{tpu_custom_call.1} parent=47 // pred_fallthru
          _
      $region48: #{tpu_custom_call.1} parent=5 // pred_fallthru
        _
    $region6: #{tpu_custom_call.1} parent=1 // loop_footer
      %s20 = sadd.s32 1, %s16
    $region7: #{tpu_custom_call.1} parent=1 // loop_footer_branch
      %15 = sbr.rel target = $region3
    $region8: #{tpu_custom_call.1} parent=1 // loop_exit
      _
    %4266 = vsyncpa [#allocation3], 1
    %s4267 = scalar_lea.sflag [#allocation3], 1
    %4268 = vsyncpa %s4267, 1
    %4269 = vsyncpa [#allocation6], 1
    %4270 = vsyncpa [#allocation4], 1
    %s4271 = scalar_lea.sflag [#allocation4], 1
    %4272 = vsyncpa %s4271, 1

</llo_original>
